<compile_context>
chip_gen: v5e
topology: v5e:2x2
jax: 0.10.0
libtpu: 0.0.40
codegen_flags: <defaults>
</compile_context>

<pallas_src>
import functools

import numpy as np

import jax
import jax.numpy as jnp
from jax.experimental import pallas as pl
from jax.experimental.pallas import tpu as pltpu

EPS = 1e-5
NEG_SLOPE = 0.2
_TAPS = tuple((dh, dw) for dh in range(3) for dw in range(3))   # kh-major, kw-minor


# --------------------------------------------------------------------------------------
# Fused kernel.  grid = (phase, image):
#   phase 0: conv1 (9 shifted bf16 matmuls) -> y1 scratch, accumulate BN1 sum/sumsq
#   phase 1: BN1 + LeakyReLU, 2x2 maxpool + reflect-pad + conv2 (gather matmuls),
#            stage conv2 output in the resident out block, accumulate BN2 sum/sumsq
#   phase 2: BN2 + LeakyReLU in place on the out block
# --------------------------------------------------------------------------------------
def _classifier_kernel(x_ref, w1_ref, w2_ref, g1_ref, b1_ref, g2_ref, b2_ref,
                       pool_ref, tap_ref, o_ref, y1_scr, s1_ref, s2_ref,
                       *, H, W, n_img):
    p = pl.program_id(0)          # phase
    i = pl.program_id(1)          # image index
    Ho, Wo = H // 2, W // 2
    P = Ho * Wo

    @pl.when((p == 0) & (i == 0))
    def _init():
        s1_ref[...] = jnp.zeros_like(s1_ref)
        s2_ref[...] = jnp.zeros_like(s2_ref)

    @pl.when(p == 0)
    def _conv1():
        xp = x_ref[0]                                           # (H+2, W+2, Cin) bf16
        cin = xp.shape[-1]
        acc = None
        for t, (dh, dw) in enumerate(_TAPS):
            tap = xp[dh:dh + H, dw:dw + W, :].reshape(H * W, cin)
            part = jnp.dot(tap, w1_ref[t], preferred_element_type=jnp.float32)
            acc = part if acc is None else acc + part           # (H*W, 64) f32
        y1_scr[i] = acc                                         # raw conv1 output
        s1_ref[0:1, :] = s1_ref[0:1, :] + jnp.sum(acc, axis=0, keepdims=True)
        s1_ref[1:2, :] = s1_ref[1:2, :] + jnp.sum(acc * acc, axis=0, keepdims=True)

    @pl.when(p == 1)
    def _stage2():
        inv_cnt = 1.0 / float(n_img * H * W)
        mean = s1_ref[0:1, :] * inv_cnt
        var = s1_ref[1:2, :] * inv_cnt - mean * mean            # biased (train) var
        scale = jax.lax.rsqrt(var + EPS) * g1_ref[...]

        y1 = y1_scr[i]                                          # (H*W, 64) f32
        yh = (y1 - mean) * scale + b1_ref[...]
        yh = jnp.where(yh >= 0.0, yh, NEG_SLOPE * yh)           # LeakyReLU(0.2)

        # 2x2 max-pool: gather the four window corners with a one-hot matmul (MXU),
        # then take the elementwise max.  (No strided slicing needed.)
        corners = jnp.dot(pool_ref[...], yh.astype(jnp.bfloat16),
                          preferred_element_type=jnp.float32)   # (4*P, 64)
        pooled = jnp.maximum(
            jnp.maximum(corners[0:P], corners[P:2 * P]),
            jnp.maximum(corners[2 * P:3 * P], corners[3 * P:4 * P]))   # (P, 64)

        # conv2: the one-hot tap matrix applies reflect padding + the 3x3 spatial
        # gather in one matmul; then 9 small matmuls with the per-tap weights.
        taps = jnp.dot(tap_ref[...], pooled.astype(jnp.bfloat16),
                       preferred_element_type=jnp.float32)      # (9*P, 64)
        taps = taps.astype(jnp.bfloat16)
        acc = None
        for t in range(9):
            part = jnp.dot(taps[t * P:(t + 1) * P], w2_ref[t],
                           preferred_element_type=jnp.float32)  # (P, 32)
            acc = part if acc is None else acc + part
        o_ref[i] = acc                                          # stage conv2 output
        s2_ref[0:1, :] = s2_ref[0:1, :] + jnp.sum(acc, axis=0, keepdims=True)
        s2_ref[1:2, :] = s2_ref[1:2, :] + jnp.sum(acc * acc, axis=0, keepdims=True)

    @pl.when(p == 2)
    def _bn2():
        inv_cnt = 1.0 / float(n_img * P)
        mean = s2_ref[0:1, :] * inv_cnt
        var = s2_ref[1:2, :] * inv_cnt - mean * mean
        scale = jax.lax.rsqrt(var + EPS) * g2_ref[...]
        y2 = o_ref[i]
        yh = (y2 - mean) * scale + b2_ref[...]
        o_ref[i] = jnp.where(yh >= 0.0, yh, NEG_SLOPE * yh)


# --------------------------------------------------------------------------------------
# One-hot selector matrices (built at trace time; become VMEM-resident bf16 constants)
# --------------------------------------------------------------------------------------
def _pool_selector(H, W):
    """(4*P, H*W): rows [q*P + ho*Wo+wo] pick input pixel (2ho+qh, 2wo+qw)."""
    Ho, Wo = H // 2, W // 2
    P = Ho * Wo
    sel = np.zeros((4 * P, H * W), np.float32)
    for q, (qh, qw) in enumerate(((0, 0), (0, 1), (1, 0), (1, 1))):
        for ho in range(Ho):
            for wo in range(Wo):
                sel[q * P + ho * Wo + wo, (2 * ho + qh) * W + (2 * wo + qw)] = 1.0
    return sel


def _reflect(i, n):
    if i < 0:
        return -i
    if i > n - 1:
        return 2 * (n - 1) - i
    return i


def _tap_selector(Ho, Wo):
    """(9*P, P): rows [t*P + a*Wo+b] pick pooled pixel (refl(a+dh-1), refl(b+dw-1))."""
    P = Ho * Wo
    sel = np.zeros((9 * P, P), np.float32)
    for t, (dh, dw) in enumerate(_TAPS):
        for a in range(Ho):
            for b in range(Wo):
                sh = _reflect(a + dh - 1, Ho)
                sw = _reflect(b + dw - 1, Wo)
                sel[t * P + a * Wo + b, sh * Wo + sw] = 1.0
    return sel


# --------------------------------------------------------------------------------------
# Wrapper
# --------------------------------------------------------------------------------------
@jax.jit
def classifier_forward(x_nchw, params):
    x = jnp.transpose(x_nchw, (0, 2, 3, 1)).astype(jnp.float32)     # NCHW -> NHWC
    N, H, W, Cin = x.shape
    Ho, Wo = H // 2, W // 2
    P = Ho * Wo

    # Reflect halo pad + bf16 cast in the wrapper (halves the input DMA bytes).
    xpad = jnp.pad(x, ((0, 0), (1, 1), (1, 1), (0, 0)), mode="reflect")
    xpad = xpad.astype(jnp.bfloat16)

    pool_sel = jnp.asarray(_pool_selector(H, W), jnp.bfloat16)      # (4*P, H*W)
    tap_sel = jnp.asarray(_tap_selector(Ho, Wo), jnp.bfloat16)      # (9*P, P)

    kernel = functools.partial(_classifier_kernel, H=H, W=W, n_img=N)

    # Rough VMEM budget (lane-padded), doubled for headroom, clamped to v7x physical.
    vmem_est = (
        2 * (H + 2) * (W + 2) * Cin * 2               # double-buffered input block
        + (9 * Cin * 128 + 9 * 64 * 128) * 2          # conv weights (bf16)
        + (4 * P * H * W + 9 * P * 128) * 2           # pool / tap selectors (bf16)
        + N * P * 128 * 4 * 2                         # resident output block (f32)
        + N * H * W * 128 * 4                         # y1 scratch (f32)
        + (1 << 20)                                   # stats + slack
    )
    vmem_limit = int(min(max(2 * vmem_est, 16 << 20), 64 << 20))

    out = pl.pallas_call(
        kernel,
        out_shape=jax.ShapeDtypeStruct((N, P, 32), jnp.float32),
        grid=(3, N),                                  # (phase, image); phase outermost
        in_specs=[
            # input image: only fetched during phase 0 (stays on block 0 afterwards)
            pl.BlockSpec((1, H + 2, W + 2, Cin),
                         lambda p, i: (jnp.where(p == 0, i, 0), 0, 0, 0)),
            pl.BlockSpec((9, Cin, 64), lambda p, i: (0, 0, 0)),     # w1 (resident)
            pl.BlockSpec((9, 64, 32), lambda p, i: (0, 0, 0)),      # w2 (resident)
            pl.BlockSpec((1, 64), lambda p, i: (0, 0)),             # gamma1
            pl.BlockSpec((1, 64), lambda p, i: (0, 0)),             # beta1
            pl.BlockSpec((1, 32), lambda p, i: (0, 0)),             # gamma2
            pl.BlockSpec((1, 32), lambda p, i: (0, 0)),             # beta2
            pl.BlockSpec((4 * P, H * W), lambda p, i: (0, 0)),      # pool selector
            pl.BlockSpec((9 * P, P), lambda p, i: (0, 0)),          # tap selector
        ],
        out_specs=pl.BlockSpec((N, P, 32), lambda p, i: (0, 0, 0)),  # resident output
        scratch_shapes=[
            pltpu.VMEM((N, H * W, 64), jnp.float32),  # raw conv1 output (whole batch)
            pltpu.VMEM((2, 64), jnp.float32),         # BN1 sum / sumsq
            pltpu.VMEM((2, 32), jnp.float32),         # BN2 sum / sumsq
        ],
        compiler_params=pltpu.CompilerParams(
            dimension_semantics=("arbitrary", "arbitrary"),
            vmem_limit_bytes=vmem_limit,
        ),
    )(xpad, params["w1"], params["w2"], params["g1"], params["b1"],
      params["g2"], params["b2"], pool_sel, tap_sel)

    # (N, P, 32) -> (N, Ho, Wo, 32) -> NCHW (metadata-only reshape + final transpose)
    return jnp.transpose(out.reshape(N, Ho, Wo, 32), (0, 3, 1, 2))


def make_params(w1_oihw, w2_oihw, g1, b1, g2, b2):
    """Convert PyTorch-layout parameters to the kernel's per-tap bf16 layout."""
    def to_taps(w):
        co, ci, kh, kw = w.shape
        return jnp.transpose(w, (2, 3, 1, 0)).reshape(kh * kw, ci, co).astype(jnp.bfloat16)
    return {"w1": to_taps(w1_oihw), "w2": to_taps(w2_oihw),
            "g1": g1, "b1": b1, "g2": g2, "b2": b2}


# --------------------------------------------------------------------------------------
# Pure-JAX f32 reference (for a loose self-check against the bf16 Pallas pipeline)
# --------------------------------------------------------------------------------------
@jax.jit
def _reference_forward(x, w1, w2, g1, b1, g2, b2):
    def conv_reflect(y, w):
        yp = jnp.pad(y, ((0, 0), (0, 0), (1, 1), (1, 1)), mode="reflect")
        return jax.lax.conv_general_dilated(
            yp, w, window_strides=(1, 1), padding="VALID",
            dimension_numbers=("NCHW", "OIHW", "NCHW"))

    def bn_lrelu(y, g, b):
        mean = jnp.mean(y, axis=(0, 2, 3), keepdims=True)
        var = jnp.mean(jnp.square(y - mean), axis=(0, 2, 3), keepdims=True)
        yh = (y - mean) * jax.lax.rsqrt(var + EPS)
        yh = yh * g.reshape(1, -1, 1, 1) + b.reshape(1, -1, 1, 1)
        return jnp.where(yh >= 0.0, yh, NEG_SLOPE * yh)

    y = bn_lrelu(conv_reflect(x, w1), g1, b1)
    y = jax.lax.reduce_window(y, -jnp.inf, jax.lax.max,
                              (1, 1, 2, 2), (1, 1, 2, 2), "VALID")
    return bn_lrelu(conv_reflect(y, w2), g2, b2)


if __name__ == "__main__":
    key = jax.random.PRNGKey(0)
    kx, k1, k2 = jax.random.split(key, 3)

    # Input must have 128 channels (conv1); small batch / spatial for the smoke test.
    x = jax.random.normal(kx, (2, 128, 16, 16), jnp.float32)        # NCHW, like PyTorch
    w1_oihw = jax.random.normal(k1, (64, 128, 3, 3), jnp.float32) * 0.05
    w2_oihw = jax.random.normal(k2, (32, 64, 3, 3), jnp.float32) * 0.05
    g1 = jnp.ones((1, 64), jnp.float32)
    b1 = jnp.zeros((1, 64), jnp.float32)
    g2 = jnp.ones((1, 32), jnp.float32)
    b2 = jnp.zeros((1, 32), jnp.float32)

    params = make_params(w1_oihw, w2_oihw, g1, b1, g2, b2)

    out = jax.block_until_ready(classifier_forward(x, params))
    assert out.shape == (2, 32, 8, 8), out.shape
    assert bool(jnp.all(jnp.isfinite(out)))

    ref = jax.block_until_ready(_reference_forward(x, w1_oihw, w2_oihw, g1, b1, g2, b2))
    max_err = float(jnp.max(jnp.abs(out - ref)))
    assert max_err < 0.2, f"max abs err vs f32 reference: {max_err}"

    print("KERNEL_OK")
</pallas_src>

<mosaic_0001>
module attributes {stable_mosaic.version = 11 : i64} {
  func.func @_classifier_kernel(%arg0: i32, %arg1: i32, %arg2: memref<1x18x18x128xbf16, #tpu.memory_space<vmem>>, %arg3: memref<9x128x64xbf16, #tpu.memory_space<vmem>>, %arg4: memref<9x64x32xbf16, #tpu.memory_space<vmem>>, %arg5: memref<1x64xf32, #tpu.memory_space<vmem>>, %arg6: memref<1x64xf32, #tpu.memory_space<vmem>>, %arg7: memref<1x32xf32, #tpu.memory_space<vmem>>, %arg8: memref<1x32xf32, #tpu.memory_space<vmem>>, %arg9: memref<256x256xbf16, #tpu.memory_space<vmem>>, %arg10: memref<576x64xbf16, #tpu.memory_space<vmem>>, %arg11: memref<2x64x32xf32, #tpu.memory_space<vmem>>, %arg12: memref<2x256x64xf32, #tpu.memory_space<vmem>>, %arg13: memref<2x64xf32, #tpu.memory_space<vmem>>, %arg14: memref<2x32xf32, #tpu.memory_space<vmem>>) attributes {dimension_semantics = [#tpu.dimension_semantics<arbitrary>, #tpu.dimension_semantics<arbitrary>], iteration_bounds = array<i64: 3, 2>, scalar_prefetch = 0 : i64, scratch_operands = 3 : i64, tpu.core_type = #tpu.core_type<tc>, window_params = [{transform_indices = @transform_0, window_bounds = array<i64: 1, 18, 18, 128>}, {pipeline_mode = #tpu.pipeline_mode<synchronous>, transform_indices = @transform_1, window_bounds = array<i64: 9, 128, 64>}, {pipeline_mode = #tpu.pipeline_mode<synchronous>, transform_indices = @transform_2, window_bounds = array<i64: 9, 64, 32>}, {pipeline_mode = #tpu.pipeline_mode<synchronous>, transform_indices = @transform_3, window_bounds = array<i64: 1, 64>}, {pipeline_mode = #tpu.pipeline_mode<synchronous>, transform_indices = @transform_4, window_bounds = array<i64: 1, 64>}, {pipeline_mode = #tpu.pipeline_mode<synchronous>, transform_indices = @transform_5, window_bounds = array<i64: 1, 32>}, {pipeline_mode = #tpu.pipeline_mode<synchronous>, transform_indices = @transform_6, window_bounds = array<i64: 1, 32>}, {pipeline_mode = #tpu.pipeline_mode<synchronous>, transform_indices = @transform_7, window_bounds = array<i64: 256, 256>}, {pipeline_mode = #tpu.pipeline_mode<synchronous>, transform_indices = @transform_8, window_bounds = array<i64: 576, 64>}, {pipeline_mode = #tpu.pipeline_mode<synchronous>, transform_indices = @transform_9, window_bounds = array<i64: 2, 64, 32>}]} {
    %c0_i32 = arith.constant 0 : i32
    %0 = arith.cmpi eq, %arg0, %c0_i32 : i32
    %c0_i32_0 = arith.constant 0 : i32
    %1 = arith.cmpi eq, %arg1, %c0_i32_0 : i32
    %2 = arith.andi %0, %1 : i1
    %3 = arith.extui %2 : i1 to i32
    %c0_i32_1 = arith.constant 0 : i32
    %4 = arith.cmpi ne, %3, %c0_i32_1 : i32
    scf.if %4 {
      %cst = arith.constant 0.000000e+00 : f32
      %14 = vector.broadcast %cst : f32 to vector<2x64xf32>
      %c0 = arith.constant 0 : index
      %c0_6 = arith.constant 0 : index
      %15 = vector.load %arg13[%c0, %c0_6] : memref<2x64xf32, #tpu.memory_space<vmem>>, vector<2x64xf32>
      tpu.vector_store %arg13[%c0, %c0_6], %14 {strides = array<i32>} : memref<2x64xf32, #tpu.memory_space<vmem>>, vector<2x64xf32>,
      %cst_7 = arith.constant 0.000000e+00 : f32
      %16 = vector.broadcast %cst_7 : f32 to vector<2x32xf32>
      %c0_8 = arith.constant 0 : index
      %c0_9 = arith.constant 0 : index
      %17 = vector.load %arg14[%c0_8, %c0_9] : memref<2x32xf32, #tpu.memory_space<vmem>>, vector<2x32xf32>
      tpu.vector_store %arg14[%c0_8, %c0_9], %16 {strides = array<i32>} : memref<2x32xf32, #tpu.memory_space<vmem>>, vector<2x32xf32>,
    } else {
    }
    %c0_i32_2 = arith.constant 0 : i32
    %5 = arith.cmpi eq, %arg0, %c0_i32_2 : i32
    %6 = arith.extui %5 : i1 to i32
    %c0_i32_3 = arith.constant 0 : i32
    %7 = arith.cmpi ne, %6, %c0_i32_3 : i32
    scf.if %7 {
      %c0 = arith.constant 0 : index
      %c0_6 = arith.constant 0 : index
      %c0_7 = arith.constant 0 : index
      %c0_8 = arith.constant 0 : index
      %14 = vector.load %arg2[%c0, %c0_6, %c0_7, %c0_8] : memref<1x18x18x128xbf16, #tpu.memory_space<vmem>>, vector<1x18x18x128xbf16>
      %15 = vector.shape_cast %14 : vector<1x18x18x128xbf16> to vector<18x18x128xbf16>
      %16 = vector.extract_strided_slice %15 {offsets = [0, 0, 0], sizes = [16, 16, 128], strides = [1, 1, 1]} : vector<18x18x128xbf16> to vector<16x16x128xbf16>
      %17 = vector.shape_cast %16 : vector<16x16x128xbf16> to vector<256x128xbf16>
      %c0_9 = arith.constant 0 : index
      %c0_10 = arith.constant 0 : index
      %c0_11 = arith.constant 0 : index
      %18 = vector.load %arg3[%c0_9, %c0_10, %c0_11] : memref<9x128x64xbf16, #tpu.memory_space<vmem>>, vector<1x128x64xbf16>
      %19 = vector.shape_cast %18 : vector<1x128x64xbf16> to vector<128x64xbf16>
      %cst = arith.constant dense<0.000000e+00> : vector<256x64xf32>
      %20 = tpu.matmul %17, %19, %cst {dimension_numbers = #tpu.dot_dimension_numbers<[1], [0], [0], [1], [0, 0, 1, 1], [], []>} : vector<256x128xbf16>, vector<128x64xbf16>, vector<256x64xf32> -> vector<256x64xf32>
      %21 = vector.extract_strided_slice %15 {offsets = [0, 1, 0], sizes = [16, 16, 128], strides = [1, 1, 1]} : vector<18x18x128xbf16> to vector<16x16x128xbf16>
      %22 = vector.shape_cast %21 : vector<16x16x128xbf16> to vector<256x128xbf16>
      %c1 = arith.constant 1 : index
      %c0_12 = arith.constant 0 : index
      %c0_13 = arith.constant 0 : index
      %23 = vector.load %arg3[%c1, %c0_12, %c0_13] : memref<9x128x64xbf16, #tpu.memory_space<vmem>>, vector<1x128x64xbf16>
      %24 = vector.shape_cast %23 : vector<1x128x64xbf16> to vector<128x64xbf16>
      %cst_14 = arith.constant dense<0.000000e+00> : vector<256x64xf32>
      %25 = tpu.matmul %22, %24, %cst_14 {dimension_numbers = #tpu.dot_dimension_numbers<[1], [0], [0], [1], [0, 0, 1, 1], [], []>} : vector<256x128xbf16>, vector<128x64xbf16>, vector<256x64xf32> -> vector<256x64xf32>
      %26 = arith.addf %20, %25 : vector<256x64xf32>
      %27 = vector.extract_strided_slice %15 {offsets = [0, 2, 0], sizes = [16, 16, 128], strides = [1, 1, 1]} : vector<18x18x128xbf16> to vector<16x16x128xbf16>
      %28 = vector.shape_cast %27 : vector<16x16x128xbf16> to vector<256x128xbf16>
      %c2 = arith.constant 2 : index
      %c0_15 = arith.constant 0 : index
      %c0_16 = arith.constant 0 : index
      %29 = vector.load %arg3[%c2, %c0_15, %c0_16] : memref<9x128x64xbf16, #tpu.memory_space<vmem>>, vector<1x128x64xbf16>
      %30 = vector.shape_cast %29 : vector<1x128x64xbf16> to vector<128x64xbf16>
      %cst_17 = arith.constant dense<0.000000e+00> : vector<256x64xf32>
      %31 = tpu.matmul %28, %30, %cst_17 {dimension_numbers = #tpu.dot_dimension_numbers<[1], [0], [0], [1], [0, 0, 1, 1], [], []>} : vector<256x128xbf16>, vector<128x64xbf16>, vector<256x64xf32> -> vector<256x64xf32>
      %32 = arith.addf %26, %31 : vector<256x64xf32>
      %33 = vector.extract_strided_slice %15 {offsets = [1, 0, 0], sizes = [16, 16, 128], strides = [1, 1, 1]} : vector<18x18x128xbf16> to vector<16x16x128xbf16>
      %34 = vector.shape_cast %33 : vector<16x16x128xbf16> to vector<256x128xbf16>
      %c3 = arith.constant 3 : index
      %c0_18 = arith.constant 0 : index
      %c0_19 = arith.constant 0 : index
      %35 = vector.load %arg3[%c3, %c0_18, %c0_19] : memref<9x128x64xbf16, #tpu.memory_space<vmem>>, vector<1x128x64xbf16>
      %36 = vector.shape_cast %35 : vector<1x128x64xbf16> to vector<128x64xbf16>
      %cst_20 = arith.constant dense<0.000000e+00> : vector<256x64xf32>
      %37 = tpu.matmul %34, %36, %cst_20 {dimension_numbers = #tpu.dot_dimension_numbers<[1], [0], [0], [1], [0, 0, 1, 1], [], []>} : vector<256x128xbf16>, vector<128x64xbf16>, vector<256x64xf32> -> vector<256x64xf32>
      %38 = arith.addf %32, %37 : vector<256x64xf32>
      %39 = vector.extract_strided_slice %15 {offsets = [1, 1, 0], sizes = [16, 16, 128], strides = [1, 1, 1]} : vector<18x18x128xbf16> to vector<16x16x128xbf16>
      %40 = vector.shape_cast %39 : vector<16x16x128xbf16> to vector<256x128xbf16>
      %c4 = arith.constant 4 : index
      %c0_21 = arith.constant 0 : index
      %c0_22 = arith.constant 0 : index
      %41 = vector.load %arg3[%c4, %c0_21, %c0_22] : memref<9x128x64xbf16, #tpu.memory_space<vmem>>, vector<1x128x64xbf16>
      %42 = vector.shape_cast %41 : vector<1x128x64xbf16> to vector<128x64xbf16>
      %cst_23 = arith.constant dense<0.000000e+00> : vector<256x64xf32>
      %43 = tpu.matmul %40, %42, %cst_23 {dimension_numbers = #tpu.dot_dimension_numbers<[1], [0], [0], [1], [0, 0, 1, 1], [], []>} : vector<256x128xbf16>, vector<128x64xbf16>, vector<256x64xf32> -> vector<256x64xf32>
      %44 = arith.addf %38, %43 : vector<256x64xf32>
      %45 = vector.extract_strided_slice %15 {offsets = [1, 2, 0], sizes = [16, 16, 128], strides = [1, 1, 1]} : vector<18x18x128xbf16> to vector<16x16x128xbf16>
      %46 = vector.shape_cast %45 : vector<16x16x128xbf16> to vector<256x128xbf16>
      %c5 = arith.constant 5 : index
      %c0_24 = arith.constant 0 : index
      %c0_25 = arith.constant 0 : index
      %47 = vector.load %arg3[%c5, %c0_24, %c0_25] : memref<9x128x64xbf16, #tpu.memory_space<vmem>>, vector<1x128x64xbf16>
      %48 = vector.shape_cast %47 : vector<1x128x64xbf16> to vector<128x64xbf16>
      %cst_26 = arith.constant dense<0.000000e+00> : vector<256x64xf32>
      %49 = tpu.matmul %46, %48, %cst_26 {dimension_numbers = #tpu.dot_dimension_numbers<[1], [0], [0], [1], [0, 0, 1, 1], [], []>} : vector<256x128xbf16>, vector<128x64xbf16>, vector<256x64xf32> -> vector<256x64xf32>
      %50 = arith.addf %44, %49 : vector<256x64xf32>
      %51 = vector.extract_strided_slice %15 {offsets = [2, 0, 0], sizes = [16, 16, 128], strides = [1, 1, 1]} : vector<18x18x128xbf16> to vector<16x16x128xbf16>
      %52 = vector.shape_cast %51 : vector<16x16x128xbf16> to vector<256x128xbf16>
      %c6 = arith.constant 6 : index
      %c0_27 = arith.constant 0 : index
      %c0_28 = arith.constant 0 : index
      %53 = vector.load %arg3[%c6, %c0_27, %c0_28] : memref<9x128x64xbf16, #tpu.memory_space<vmem>>, vector<1x128x64xbf16>
      %54 = vector.shape_cast %53 : vector<1x128x64xbf16> to vector<128x64xbf16>
      %cst_29 = arith.constant dense<0.000000e+00> : vector<256x64xf32>
      %55 = tpu.matmul %52, %54, %cst_29 {dimension_numbers = #tpu.dot_dimension_numbers<[1], [0], [0], [1], [0, 0, 1, 1], [], []>} : vector<256x128xbf16>, vector<128x64xbf16>, vector<256x64xf32> -> vector<256x64xf32>
      %56 = arith.addf %50, %55 : vector<256x64xf32>
      %57 = vector.extract_strided_slice %15 {offsets = [2, 1, 0], sizes = [16, 16, 128], strides = [1, 1, 1]} : vector<18x18x128xbf16> to vector<16x16x128xbf16>
      %58 = vector.shape_cast %57 : vector<16x16x128xbf16> to vector<256x128xbf16>
      %c7 = arith.constant 7 : index
      %c0_30 = arith.constant 0 : index
      %c0_31 = arith.constant 0 : index
      %59 = vector.load %arg3[%c7, %c0_30, %c0_31] : memref<9x128x64xbf16, #tpu.memory_space<vmem>>, vector<1x128x64xbf16>
      %60 = vector.shape_cast %59 : vector<1x128x64xbf16> to vector<128x64xbf16>
      %cst_32 = arith.constant dense<0.000000e+00> : vector<256x64xf32>
      %61 = tpu.matmul %58, %60, %cst_32 {dimension_numbers = #tpu.dot_dimension_numbers<[1], [0], [0], [1], [0, 0, 1, 1], [], []>} : vector<256x128xbf16>, vector<128x64xbf16>, vector<256x64xf32> -> vector<256x64xf32>
      %62 = arith.addf %56, %61 : vector<256x64xf32>
      %63 = vector.extract_strided_slice %15 {offsets = [2, 2, 0], sizes = [16, 16, 128], strides = [1, 1, 1]} : vector<18x18x128xbf16> to vector<16x16x128xbf16>
      %64 = vector.shape_cast %63 : vector<16x16x128xbf16> to vector<256x128xbf16>
      %c8 = arith.constant 8 : index
      %c0_33 = arith.constant 0 : index
      %c0_34 = arith.constant 0 : index
      %65 = vector.load %arg3[%c8, %c0_33, %c0_34] : memref<9x128x64xbf16, #tpu.memory_space<vmem>>, vector<1x128x64xbf16>
      %66 = vector.shape_cast %65 : vector<1x128x64xbf16> to vector<128x64xbf16>
      %cst_35 = arith.constant dense<0.000000e+00> : vector<256x64xf32>
      %67 = tpu.matmul %64, %66, %cst_35 {dimension_numbers = #tpu.dot_dimension_numbers<[1], [0], [0], [1], [0, 0, 1, 1], [], []>} : vector<256x128xbf16>, vector<128x64xbf16>, vector<256x64xf32> -> vector<256x64xf32>
      %68 = arith.addf %62, %67 : vector<256x64xf32>
      %69 = arith.index_cast %arg1 : i32 to index
      %c0_36 = arith.constant 0 : index
      %c0_37 = arith.constant 0 : index
      %70 = vector.load %arg12[%69, %c0_36, %c0_37] : memref<2x256x64xf32, #tpu.memory_space<vmem>>, vector<1x256x64xf32>
      %71 = vector.shape_cast %70 : vector<1x256x64xf32> to vector<256x64xf32>
      %72 = vector.shape_cast %68 : vector<256x64xf32> to vector<1x256x64xf32>
      tpu.vector_store %arg12[%69, %c0_36, %c0_37], %72 {strides = array<i32>} : memref<2x256x64xf32, #tpu.memory_space<vmem>>, vector<1x256x64xf32>,
      %c0_38 = arith.constant 0 : index
      %c0_39 = arith.constant 0 : index
      %73 = vector.load %arg13[%c0_38, %c0_39] : memref<2x64xf32, #tpu.memory_space<vmem>>, vector<1x64xf32>
      %cst_40 = arith.constant dense<0.000000e+00> : vector<64xf32>
      %74 = vector.multi_reduction <add>, %68, %cst_40 [0] : vector<256x64xf32> to vector<64xf32>
      %75 = vector.shape_cast %74 : vector<64xf32> to vector<1x64xf32>
      %76 = arith.addf %73, %75 : vector<1x64xf32>
      %c0_41 = arith.constant 0 : index
      %c0_42 = arith.constant 0 : index
      %77 = vector.load %arg13[%c0_41, %c0_42] : memref<2x64xf32, #tpu.memory_space<vmem>>, vector<1x64xf32>
      tpu.vector_store %arg13[%c0_41, %c0_42], %76 {strides = array<i32>} : memref<2x64xf32, #tpu.memory_space<vmem>>, vector<1x64xf32>,
      %c1_43 = arith.constant 1 : index
      %c0_44 = arith.constant 0 : index
      %78 = vector.load %arg13[%c1_43, %c0_44] : memref<2x64xf32, #tpu.memory_space<vmem>>, vector<1x64xf32>
      %79 = arith.mulf %68, %68 : vector<256x64xf32>
      %cst_45 = arith.constant dense<0.000000e+00> : vector<64xf32>
      %80 = vector.multi_reduction <add>, %79, %cst_45 [0] : vector<256x64xf32> to vector<64xf32>
      %81 = vector.shape_cast %80 : vector<64xf32> to vector<1x64xf32>
      %82 = arith.addf %78, %81 : vector<1x64xf32>
      %c1_46 = arith.constant 1 : index
      %c0_47 = arith.constant 0 : index
      %83 = vector.load %arg13[%c1_46, %c0_47] : memref<2x64xf32, #tpu.memory_space<vmem>>, vector<1x64xf32>
      tpu.vector_store %arg13[%c1_46, %c0_47], %82 {strides = array<i32>} : memref<2x64xf32, #tpu.memory_space<vmem>>, vector<1x64xf32>,
    } else {
    }
    %c1_i32 = arith.constant 1 : i32
    %8 = arith.cmpi eq, %arg0, %c1_i32 : i32
    %9 = arith.extui %8 : i1 to i32
    %c0_i32_4 = arith.constant 0 : i32
    %10 = arith.cmpi ne, %9, %c0_i32_4 : i32
    scf.if %10 {
      %c0 = arith.constant 0 : index
      %c0_6 = arith.constant 0 : index
      %14 = vector.load %arg13[%c0, %c0_6] : memref<2x64xf32, #tpu.memory_space<vmem>>, vector<1x64xf32>
      %cst = arith.constant 0.001953125 : f32
      %15 = vector.broadcast %cst : f32 to vector<1x64xf32>
      %16 = arith.mulf %14, %15 : vector<1x64xf32>
      %c1 = arith.constant 1 : index
      %c0_7 = arith.constant 0 : index
      %17 = vector.load %arg13[%c1, %c0_7] : memref<2x64xf32, #tpu.memory_space<vmem>>, vector<1x64xf32>
      %cst_8 = arith.constant 0.001953125 : f32
      %18 = vector.broadcast %cst_8 : f32 to vector<1x64xf32>
      %19 = arith.mulf %17, %18 : vector<1x64xf32>
      %20 = arith.mulf %16, %16 : vector<1x64xf32>
      %21 = arith.subf %19, %20 : vector<1x64xf32>
      %cst_9 = arith.constant 9.99999974E-6 : f32
      %22 = vector.broadcast %cst_9 : f32 to vector<1x64xf32>
      %23 = arith.addf %21, %22 : vector<1x64xf32>
      %24 = math.rsqrt %23 : vector<1x64xf32>
      %c0_10 = arith.constant 0 : index
      %c0_11 = arith.constant 0 : index
      %25 = vector.load %arg5[%c0_10, %c0_11] : memref<1x64xf32, #tpu.memory_space<vmem>>, vector<1x64xf32>
      %26 = arith.mulf %24, %25 : vector<1x64xf32>
      %27 = arith.index_cast %arg1 : i32 to index
      %c0_12 = arith.constant 0 : index
      %c0_13 = arith.constant 0 : index
      %28 = vector.load %arg12[%27, %c0_12, %c0_13] : memref<2x256x64xf32, #tpu.memory_space<vmem>>, vector<1x256x64xf32>
      %29 = vector.shape_cast %28 : vector<1x256x64xf32> to vector<256x64xf32>
      %30 = vector.broadcast %16 : vector<1x64xf32> to vector<256x64xf32>
      %31 = arith.subf %29, %30 : vector<256x64xf32>
      %32 = vector.broadcast %26 : vector<1x64xf32> to vector<256x64xf32>
      %33 = arith.mulf %31, %32 : vector<256x64xf32>
      %c0_14 = arith.constant 0 : index
      %c0_15 = arith.constant 0 : index
      %34 = vector.load %arg6[%c0_14, %c0_15] : memref<1x64xf32, #tpu.memory_space<vmem>>, vector<1x64xf32>
      %35 = vector.broadcast %34 : vector<1x64xf32> to vector<256x64xf32>
      %36 = arith.addf %33, %35 : vector<256x64xf32>
      %cst_16 = arith.constant 0.000000e+00 : f32
      %37 = vector.broadcast %cst_16 : f32 to vector<256x64xf32>
      %38 = arith.cmpf oge, %36, %37 : vector<256x64xf32>
      %cst_17 = arith.constant 2.000000e-01 : f32
      %39 = vector.broadcast %cst_17 : f32 to vector<256x64xf32>
      %40 = arith.mulf %39, %36 : vector<256x64xf32>
      %41 = arith.select %38, %36, %40 : vector<256x64xi1>, vector<256x64xf32>
      %c0_18 = arith.constant 0 : index
      %c0_19 = arith.constant 0 : index
      %42 = vector.load %arg9[%c0_18, %c0_19] : memref<256x256xbf16, #tpu.memory_space<vmem>>, vector<256x256xbf16>
      %43 = arith.truncf %41 : vector<256x64xf32> to vector<256x64xbf16>
      %cst_20 = arith.constant dense<0.000000e+00> : vector<256x64xf32>
      %44 = tpu.matmul %42, %43, %cst_20 {dimension_numbers = #tpu.dot_dimension_numbers<[1], [0], [0], [1], [0, 0, 1, 1], [], []>} : vector<256x256xbf16>, vector<256x64xbf16>, vector<256x64xf32> -> vector<256x64xf32>
      %45 = vector.extract_strided_slice %44 {offsets = [0, 0], sizes = [64, 64], strides = [1, 1]} : vector<256x64xf32> to vector<64x64xf32>
      %46 = vector.extract_strided_slice %44 {offsets = [64, 0], sizes = [64, 64], strides = [1, 1]} : vector<256x64xf32> to vector<64x64xf32>
      %47 = arith.maximumf %45, %46 : vector<64x64xf32>
      %48 = vector.extract_strided_slice %44 {offsets = [128, 0], sizes = [64, 64], strides = [1, 1]} : vector<256x64xf32> to vector<64x64xf32>
      %49 = vector.extract_strided_slice %44 {offsets = [192, 0], sizes = [64, 64], strides = [1, 1]} : vector<256x64xf32> to vector<64x64xf32>
      %50 = arith.maximumf %48, %49 : vector<64x64xf32>
      %51 = arith.maximumf %47, %50 : vector<64x64xf32>
      %c0_21 = arith.constant 0 : index
      %c0_22 = arith.constant 0 : index
      %52 = vector.load %arg10[%c0_21, %c0_22] : memref<576x64xbf16, #tpu.memory_space<vmem>>, vector<576x64xbf16>
      %53 = arith.truncf %51 : vector<64x64xf32> to vector<64x64xbf16>
      %cst_23 = arith.constant dense<0.000000e+00> : vector<576x64xf32>
      %54 = tpu.matmul %52, %53, %cst_23 {dimension_numbers = #tpu.dot_dimension_numbers<[1], [0], [0], [1], [0, 0, 1, 1], [], []>} : vector<576x64xbf16>, vector<64x64xbf16>, vector<576x64xf32> -> vector<576x64xf32>
      %55 = arith.truncf %54 : vector<576x64xf32> to vector<576x64xbf16>
      %56 = vector.extract_strided_slice %55 {offsets = [0, 0], sizes = [64, 64], strides = [1, 1]} : vector<576x64xbf16> to vector<64x64xbf16>
      %c0_24 = arith.constant 0 : index
      %c0_25 = arith.constant 0 : index
      %c0_26 = arith.constant 0 : index
      %57 = vector.load %arg4[%c0_24, %c0_25, %c0_26] : memref<9x64x32xbf16, #tpu.memory_space<vmem>>, vector<1x64x32xbf16>
      %58 = vector.shape_cast %57 : vector<1x64x32xbf16> to vector<64x32xbf16>
      %cst_27 = arith.constant dense<0.000000e+00> : vector<64x32xf32>
      %59 = tpu.matmul %56, %58, %cst_27 {dimension_numbers = #tpu.dot_dimension_numbers<[1], [0], [0], [1], [0, 0, 1, 1], [], []>} : vector<64x64xbf16>, vector<64x32xbf16>, vector<64x32xf32> -> vector<64x32xf32>
      %60 = vector.extract_strided_slice %55 {offsets = [64, 0], sizes = [64, 64], strides = [1, 1]} : vector<576x64xbf16> to vector<64x64xbf16>
      %c1_28 = arith.constant 1 : index
      %c0_29 = arith.constant 0 : index
      %c0_30 = arith.constant 0 : index
      %61 = vector.load %arg4[%c1_28, %c0_29, %c0_30] : memref<9x64x32xbf16, #tpu.memory_space<vmem>>, vector<1x64x32xbf16>
      %62 = vector.shape_cast %61 : vector<1x64x32xbf16> to vector<64x32xbf16>
      %cst_31 = arith.constant dense<0.000000e+00> : vector<64x32xf32>
      %63 = tpu.matmul %60, %62, %cst_31 {dimension_numbers = #tpu.dot_dimension_numbers<[1], [0], [0], [1], [0, 0, 1, 1], [], []>} : vector<64x64xbf16>, vector<64x32xbf16>, vector<64x32xf32> -> vector<64x32xf32>
      %64 = arith.addf %59, %63 : vector<64x32xf32>
      %65 = vector.extract_strided_slice %55 {offsets = [128, 0], sizes = [64, 64], strides = [1, 1]} : vector<576x64xbf16> to vector<64x64xbf16>
      %c2 = arith.constant 2 : index
      %c0_32 = arith.constant 0 : index
      %c0_33 = arith.constant 0 : index
      %66 = vector.load %arg4[%c2, %c0_32, %c0_33] : memref<9x64x32xbf16, #tpu.memory_space<vmem>>, vector<1x64x32xbf16>
      %67 = vector.shape_cast %66 : vector<1x64x32xbf16> to vector<64x32xbf16>
      %cst_34 = arith.constant dense<0.000000e+00> : vector<64x32xf32>
      %68 = tpu.matmul %65, %67, %cst_34 {dimension_numbers = #tpu.dot_dimension_numbers<[1], [0], [0], [1], [0, 0, 1, 1], [], []>} : vector<64x64xbf16>, vector<64x32xbf16>, vector<64x32xf32> -> vector<64x32xf32>
      %69 = arith.addf %64, %68 : vector<64x32xf32>
      %70 = vector.extract_strided_slice %55 {offsets = [192, 0], sizes = [64, 64], strides = [1, 1]} : vector<576x64xbf16> to vector<64x64xbf16>
      %c3 = arith.constant 3 : index
      %c0_35 = arith.constant 0 : index
      %c0_36 = arith.constant 0 : index
      %71 = vector.load %arg4[%c3, %c0_35, %c0_36] : memref<9x64x32xbf16, #tpu.memory_space<vmem>>, vector<1x64x32xbf16>
      %72 = vector.shape_cast %71 : vector<1x64x32xbf16> to vector<64x32xbf16>
      %cst_37 = arith.constant dense<0.000000e+00> : vector<64x32xf32>
      %73 = tpu.matmul %70, %72, %cst_37 {dimension_numbers = #tpu.dot_dimension_numbers<[1], [0], [0], [1], [0, 0, 1, 1], [], []>} : vector<64x64xbf16>, vector<64x32xbf16>, vector<64x32xf32> -> vector<64x32xf32>
      %74 = arith.addf %69, %73 : vector<64x32xf32>
      %75 = vector.extract_strided_slice %55 {offsets = [256, 0], sizes = [64, 64], strides = [1, 1]} : vector<576x64xbf16> to vector<64x64xbf16>
      %c4 = arith.constant 4 : index
      %c0_38 = arith.constant 0 : index
      %c0_39 = arith.constant 0 : index
      %76 = vector.load %arg4[%c4, %c0_38, %c0_39] : memref<9x64x32xbf16, #tpu.memory_space<vmem>>, vector<1x64x32xbf16>
      %77 = vector.shape_cast %76 : vector<1x64x32xbf16> to vector<64x32xbf16>
      %cst_40 = arith.constant dense<0.000000e+00> : vector<64x32xf32>
      %78 = tpu.matmul %75, %77, %cst_40 {dimension_numbers = #tpu.dot_dimension_numbers<[1], [0], [0], [1], [0, 0, 1, 1], [], []>} : vector<64x64xbf16>, vector<64x32xbf16>, vector<64x32xf32> -> vector<64x32xf32>
      %79 = arith.addf %74, %78 : vector<64x32xf32>
      %80 = vector.extract_strided_slice %55 {offsets = [320, 0], sizes = [64, 64], strides = [1, 1]} : vector<576x64xbf16> to vector<64x64xbf16>
      %c5 = arith.constant 5 : index
      %c0_41 = arith.constant 0 : index
      %c0_42 = arith.constant 0 : index
      %81 = vector.load %arg4[%c5, %c0_41, %c0_42] : memref<9x64x32xbf16, #tpu.memory_space<vmem>>, vector<1x64x32xbf16>
      %82 = vector.shape_cast %81 : vector<1x64x32xbf16> to vector<64x32xbf16>
      %cst_43 = arith.constant dense<0.000000e+00> : vector<64x32xf32>
      %83 = tpu.matmul %80, %82, %cst_43 {dimension_numbers = #tpu.dot_dimension_numbers<[1], [0], [0], [1], [0, 0, 1, 1], [], []>} : vector<64x64xbf16>, vector<64x32xbf16>, vector<64x32xf32> -> vector<64x32xf32>
      %84 = arith.addf %79, %83 : vector<64x32xf32>
      %85 = vector.extract_strided_slice %55 {offsets = [384, 0], sizes = [64, 64], strides = [1, 1]} : vector<576x64xbf16> to vector<64x64xbf16>
      %c6 = arith.constant 6 : index
      %c0_44 = arith.constant 0 : index
      %c0_45 = arith.constant 0 : index
      %86 = vector.load %arg4[%c6, %c0_44, %c0_45] : memref<9x64x32xbf16, #tpu.memory_space<vmem>>, vector<1x64x32xbf16>
      %87 = vector.shape_cast %86 : vector<1x64x32xbf16> to vector<64x32xbf16>
      %cst_46 = arith.constant dense<0.000000e+00> : vector<64x32xf32>
      %88 = tpu.matmul %85, %87, %cst_46 {dimension_numbers = #tpu.dot_dimension_numbers<[1], [0], [0], [1], [0, 0, 1, 1], [], []>} : vector<64x64xbf16>, vector<64x32xbf16>, vector<64x32xf32> -> vector<64x32xf32>
      %89 = arith.addf %84, %88 : vector<64x32xf32>
      %90 = vector.extract_strided_slice %55 {offsets = [448, 0], sizes = [64, 64], strides = [1, 1]} : vector<576x64xbf16> to vector<64x64xbf16>
      %c7 = arith.constant 7 : index
      %c0_47 = arith.constant 0 : index
      %c0_48 = arith.constant 0 : index
      %91 = vector.load %arg4[%c7, %c0_47, %c0_48] : memref<9x64x32xbf16, #tpu.memory_space<vmem>>, vector<1x64x32xbf16>
      %92 = vector.shape_cast %91 : vector<1x64x32xbf16> to vector<64x32xbf16>
      %cst_49 = arith.constant dense<0.000000e+00> : vector<64x32xf32>
      %93 = tpu.matmul %90, %92, %cst_49 {dimension_numbers = #tpu.dot_dimension_numbers<[1], [0], [0], [1], [0, 0, 1, 1], [], []>} : vector<64x64xbf16>, vector<64x32xbf16>, vector<64x32xf32> -> vector<64x32xf32>
      %94 = arith.addf %89, %93 : vector<64x32xf32>
      %95 = vector.extract_strided_slice %55 {offsets = [512, 0], sizes = [64, 64], strides = [1, 1]} : vector<576x64xbf16> to vector<64x64xbf16>
      %c8 = arith.constant 8 : index
      %c0_50 = arith.constant 0 : index
      %c0_51 = arith.constant 0 : index
      %96 = vector.load %arg4[%c8, %c0_50, %c0_51] : memref<9x64x32xbf16, #tpu.memory_space<vmem>>, vector<1x64x32xbf16>
      %97 = vector.shape_cast %96 : vector<1x64x32xbf16> to vector<64x32xbf16>
      %cst_52 = arith.constant dense<0.000000e+00> : vector<64x32xf32>
      %98 = tpu.matmul %95, %97, %cst_52 {dimension_numbers = #tpu.dot_dimension_numbers<[1], [0], [0], [1], [0, 0, 1, 1], [], []>} : vector<64x64xbf16>, vector<64x32xbf16>, vector<64x32xf32> -> vector<64x32xf32>
      %99 = arith.addf %94, %98 : vector<64x32xf32>
      %100 = arith.index_cast %arg1 : i32 to index
      %c0_53 = arith.constant 0 : index
      %c0_54 = arith.constant 0 : index
      %101 = vector.load %arg11[%100, %c0_53, %c0_54] : memref<2x64x32xf32, #tpu.memory_space<vmem>>, vector<1x64x32xf32>
      %102 = vector.shape_cast %101 : vector<1x64x32xf32> to vector<64x32xf32>
      %103 = vector.shape_cast %99 : vector<64x32xf32> to vector<1x64x32xf32>
      tpu.vector_store %arg11[%100, %c0_53, %c0_54], %103 {strides = array<i32>} : memref<2x64x32xf32, #tpu.memory_space<vmem>>, vector<1x64x32xf32>,
      %c0_55 = arith.constant 0 : index
      %c0_56 = arith.constant 0 : index
      %104 = vector.load %arg14[%c0_55, %c0_56] : memref<2x32xf32, #tpu.memory_space<vmem>>, vector<1x32xf32>
      %cst_57 = arith.constant dense<0.000000e+00> : vector<32xf32>
      %105 = vector.multi_reduction <add>, %99, %cst_57 [0] : vector<64x32xf32> to vector<32xf32>
      %106 = vector.shape_cast %105 : vector<32xf32> to vector<1x32xf32>
      %107 = arith.addf %104, %106 : vector<1x32xf32>
      %c0_58 = arith.constant 0 : index
      %c0_59 = arith.constant 0 : index
      %108 = vector.load %arg14[%c0_58, %c0_59] : memref<2x32xf32, #tpu.memory_space<vmem>>, vector<1x32xf32>
      tpu.vector_store %arg14[%c0_58, %c0_59], %107 {strides = array<i32>} : memref<2x32xf32, #tpu.memory_space<vmem>>, vector<1x32xf32>,
      %c1_60 = arith.constant 1 : index
      %c0_61 = arith.constant 0 : index
      %109 = vector.load %arg14[%c1_60, %c0_61] : memref<2x32xf32, #tpu.memory_space<vmem>>, vector<1x32xf32>
      %110 = arith.mulf %99, %99 : vector<64x32xf32>
      %cst_62 = arith.constant dense<0.000000e+00> : vector<32xf32>
      %111 = vector.multi_reduction <add>, %110, %cst_62 [0] : vector<64x32xf32> to vector<32xf32>
      %112 = vector.shape_cast %111 : vector<32xf32> to vector<1x32xf32>
      %113 = arith.addf %109, %112 : vector<1x32xf32>
      %c1_63 = arith.constant 1 : index
      %c0_64 = arith.constant 0 : index
      %114 = vector.load %arg14[%c1_63, %c0_64] : memref<2x32xf32, #tpu.memory_space<vmem>>, vector<1x32xf32>
      tpu.vector_store %arg14[%c1_63, %c0_64], %113 {strides = array<i32>} : memref<2x32xf32, #tpu.memory_space<vmem>>, vector<1x32xf32>,
    } else {
    }
    %c2_i32 = arith.constant 2 : i32
    %11 = arith.cmpi eq, %arg0, %c2_i32 : i32
    %12 = arith.extui %11 : i1 to i32
    %c0_i32_5 = arith.constant 0 : i32
    %13 = arith.cmpi ne, %12, %c0_i32_5 : i32
    scf.if %13 {
      %c0 = arith.constant 0 : index
      %c0_6 = arith.constant 0 : index
      %14 = vector.load %arg14[%c0, %c0_6] : memref<2x32xf32, #tpu.memory_space<vmem>>, vector<1x32xf32>
      %cst = arith.constant 7.812500e-03 : f32
      %15 = vector.broadcast %cst : f32 to vector<1x32xf32>
      %16 = arith.mulf %14, %15 : vector<1x32xf32>
      %c1 = arith.constant 1 : index
      %c0_7 = arith.constant 0 : index
      %17 = vector.load %arg14[%c1, %c0_7] : memref<2x32xf32, #tpu.memory_space<vmem>>, vector<1x32xf32>
      %cst_8 = arith.constant 7.812500e-03 : f32
      %18 = vector.broadcast %cst_8 : f32 to vector<1x32xf32>
      %19 = arith.mulf %17, %18 : vector<1x32xf32>
      %20 = arith.mulf %16, %16 : vector<1x32xf32>
      %21 = arith.subf %19, %20 : vector<1x32xf32>
      %cst_9 = arith.constant 9.99999974E-6 : f32
      %22 = vector.broadcast %cst_9 : f32 to vector<1x32xf32>
      %23 = arith.addf %21, %22 : vector<1x32xf32>
      %24 = math.rsqrt %23 : vector<1x32xf32>
      %c0_10 = arith.constant 0 : index
      %c0_11 = arith.constant 0 : index
      %25 = vector.load %arg7[%c0_10, %c0_11] : memref<1x32xf32, #tpu.memory_space<vmem>>, vector<1x32xf32>
      %26 = arith.mulf %24, %25 : vector<1x32xf32>
      %27 = arith.index_cast %arg1 : i32 to index
      %c0_12 = arith.constant 0 : index
      %c0_13 = arith.constant 0 : index
      %28 = vector.load %arg11[%27, %c0_12, %c0_13] : memref<2x64x32xf32, #tpu.memory_space<vmem>>, vector<1x64x32xf32>
      %29 = vector.shape_cast %28 : vector<1x64x32xf32> to vector<64x32xf32>
      %30 = vector.broadcast %16 : vector<1x32xf32> to vector<64x32xf32>
      %31 = arith.subf %29, %30 : vector<64x32xf32>
      %32 = vector.broadcast %26 : vector<1x32xf32> to vector<64x32xf32>
      %33 = arith.mulf %31, %32 : vector<64x32xf32>
      %c0_14 = arith.constant 0 : index
      %c0_15 = arith.constant 0 : index
      %34 = vector.load %arg8[%c0_14, %c0_15] : memref<1x32xf32, #tpu.memory_space<vmem>>, vector<1x32xf32>
      %35 = vector.broadcast %34 : vector<1x32xf32> to vector<64x32xf32>
      %36 = arith.addf %33, %35 : vector<64x32xf32>
      %cst_16 = arith.constant 0.000000e+00 : f32
      %37 = vector.broadcast %cst_16 : f32 to vector<64x32xf32>
      %38 = arith.cmpf oge, %36, %37 : vector<64x32xf32>
      %cst_17 = arith.constant 2.000000e-01 : f32
      %39 = vector.broadcast %cst_17 : f32 to vector<64x32xf32>
      %40 = arith.mulf %39, %36 : vector<64x32xf32>
      %41 = arith.select %38, %36, %40 : vector<64x32xi1>, vector<64x32xf32>
      %42 = arith.index_cast %arg1 : i32 to index
      %c0_18 = arith.constant 0 : index
      %c0_19 = arith.constant 0 : index
      %43 = vector.load %arg11[%42, %c0_18, %c0_19] : memref<2x64x32xf32, #tpu.memory_space<vmem>>, vector<1x64x32xf32>
      %44 = vector.shape_cast %43 : vector<1x64x32xf32> to vector<64x32xf32>
      %45 = vector.shape_cast %41 : vector<64x32xf32> to vector<1x64x32xf32>
      tpu.vector_store %arg11[%42, %c0_18, %c0_19], %45 {strides = array<i32>} : memref<2x64x32xf32, #tpu.memory_space<vmem>>, vector<1x64x32xf32>,
    } else {
    }
    return
  }
  func.func @transform_0(%arg0: i32, %arg1: i32) -> (i32, i32, i32, i32) {
    %c0_i32 = arith.constant 0 : i32
    %0 = arith.cmpi eq, %arg0, %c0_i32 : i32
    %c0_i32_0 = arith.constant 0 : i32
    %1 = arith.select %0, %arg1, %c0_i32_0 : i32
    %c0_i32_1 = arith.constant 0 : i32
    %c0_i32_2 = arith.constant 0 : i32
    %c0_i32_3 = arith.constant 0 : i32
    %c0_i32_4 = arith.constant 0 : i32
    return %1, %c0_i32_1, %c0_i32_2, %c0_i32_3 : i32, i32, i32, i32
  }
  func.func @transform_1(%arg0: i32, %arg1: i32) -> (i32, i32, i32) {
    %c0_i32 = arith.constant 0 : i32
    %c0_i32_0 = arith.constant 0 : i32
    %c0_i32_1 = arith.constant 0 : i32
    %c0_i32_2 = arith.constant 0 : i32
    return %c0_i32, %c0_i32_0, %c0_i32_1 : i32, i32, i32
  }
  func.func @transform_2(%arg0: i32, %arg1: i32) -> (i32, i32, i32) {
    %c0_i32 = arith.constant 0 : i32
    %c0_i32_0 = arith.constant 0 : i32
    %c0_i32_1 = arith.constant 0 : i32
    %c0_i32_2 = arith.constant 0 : i32
    return %c0_i32, %c0_i32_0, %c0_i32_1 : i32, i32, i32
  }
  func.func @transform_3(%arg0: i32, %arg1: i32) -> (i32, i32) {
    %c0_i32 = arith.constant 0 : i32
    %c0_i32_0 = arith.constant 0 : i32
    %c0_i32_1 = arith.constant 0 : i32
    return %c0_i32, %c0_i32_0 : i32, i32
  }
  func.func @transform_4(%arg0: i32, %arg1: i32) -> (i32, i32) {
    %c0_i32 = arith.constant 0 : i32
    %c0_i32_0 = arith.constant 0 : i32
    %c0_i32_1 = arith.constant 0 : i32
    return %c0_i32, %c0_i32_0 : i32, i32
  }
  func.func @transform_5(%arg0: i32, %arg1: i32) -> (i32, i32) {
    %c0_i32 = arith.constant 0 : i32
    %c0_i32_0 = arith.constant 0 : i32
    %c0_i32_1 = arith.constant 0 : i32
    return %c0_i32, %c0_i32_0 : i32, i32
  }
  func.func @transform_6(%arg0: i32, %arg1: i32) -> (i32, i32) {
    %c0_i32 = arith.constant 0 : i32
    %c0_i32_0 = arith.constant 0 : i32
    %c0_i32_1 = arith.constant 0 : i32
    return %c0_i32, %c0_i32_0 : i32, i32
  }
  func.func @transform_7(%arg0: i32, %arg1: i32) -> (i32, i32) {
    %c0_i32 = arith.constant 0 : i32
    %c0_i32_0 = arith.constant 0 : i32
    %c0_i32_1 = arith.constant 0 : i32
    return %c0_i32, %c0_i32_0 : i32, i32
  }
  func.func @transform_8(%arg0: i32, %arg1: i32) -> (i32, i32) {
    %c0_i32 = arith.constant 0 : i32
    %c0_i32_0 = arith.constant 0 : i32
    %c0_i32_1 = arith.constant 0 : i32
    return %c0_i32, %c0_i32_0 : i32, i32
  }
  func.func @transform_9(%arg0: i32, %arg1: i32) -> (i32, i32, i32) {
    %c0_i32 = arith.constant 0 : i32
    %c0_i32_0 = arith.constant 0 : i32
    %c0_i32_1 = arith.constant 0 : i32
    %c0_i32_2 = arith.constant 0 : i32
    return %c0_i32, %c0_i32_0, %c0_i32_1 : i32, i32, i32
  }
}

</mosaic_0001>

<llo_original>
// kernel: classifier_forward.1
$region0: #{classifier_forward.1}
  #allocation0 [shape = 'u32[]', space=smem, size = 0x4, offset = 0x4, fixed_abs, tag = 'smem constant byte address 0x4 - core index']
  #allocation1 [shape = 'u32[72,128]{1,0:T(1,128)}', space=vmem, size = 0x9000, scoped, tag = 'internal scratch']
  #allocation2 [shape = 'f32[2,256,64]{2,1,0:T(8,128)}', space=vmem, size = 0x40000, scoped, tag = 'scratch operand']
  #allocation3 [shape = 'f32[2,64]{1,0:T(2,128)}', space=vmem, size = 0x400, scoped, tag = 'scratch operand']
  #allocation4 [shape = 'f32[2,32]{1,0:T(2,128)}', space=vmem, size = 0x400, scoped, tag = 'scratch operand']
  %s0 = inlined_call_operand.vmem [shape: bf16[2,18,18,128], index: 0, kind: input, shape index: {}]
  %s1 = inlined_call_operand.vmem [shape: bf16[9,128,64], index: 1, kind: input, shape index: {}]
  %s2 = inlined_call_operand.vmem [shape: bf16[9,64,32], index: 2, kind: input, shape index: {}]
  %s3 = inlined_call_operand.vmem [shape: f32[1,64], index: 3, kind: input, shape index: {}]
  %s4 = inlined_call_operand.vmem [shape: f32[1,64], index: 4, kind: input, shape index: {}]
  %s5 = inlined_call_operand.vmem [shape: f32[1,32], index: 5, kind: input, shape index: {}]
  %s6 = inlined_call_operand.vmem [shape: f32[1,32], index: 6, kind: input, shape index: {}]
  %s7 = inlined_call_operand.vmem [shape: bf16[256,256], index: 7, kind: input, shape index: {}]
  %s8 = inlined_call_operand.vmem [shape: bf16[576,64], index: 8, kind: input, shape index: {}]
  %s9 = inlined_call_operand.hbm [shape: f32[2,64,32], index: 9, kind: output, shape index: {}]
  %s10 = sld [smem:[#allocation0]]
  $region85: #{classifier_forward.1} parent=0
    _
  %s12 = ssub.s32 1, %s10
  %s13 = scalar_select 0, %s12, %s10
  $region1: #{classifier_forward.1} parent=0
    #allocation5 [shape = 'u8[65536]{0}', space=vmem, size = 0x10000, scoped, tag = 'output window, operand 0, single buffered']
    #allocation6 [shape = 's32[2]{0}', space=sflag, size = 0x8, scoped, tag = 'scoped memory for classifier_forward.1']
    %14 = vsyncpa [#allocation6], 0
    loop: start=0, step=1, limit=8
    $region2: #{classifier_forward.1} parent=1 // loop_pre_header
      _
    $region3: #{classifier_forward.1} parent=1 // loop_header
      %s16 = sphi 0, %s20
      %p17 = scmp.ge.s32.totalorder %s16, 8
      %s23 = sphi 0, %s35
      %s24 = sphi 0, %s31
      %s25 = sphi 0, %s23
      %s26 = sphi 0, %s24
      %s27 = sphi 0, %s25
      %s28 = sphi 0, %s26
      %s42 = sphi 0, %s44
      %s45 = sphi 0, %s42
      %s46 = sphi 0, %s45
      %s62 = sphi 0, %s46
      %s66 = sphi 0, %s66
      %s68 = sphi 0, %s66
      %s69 = sphi 0, %s68
      %s83 = sphi 0, %s69
      %s87 = sphi 0, %s87
      %s89 = sphi 0, %s87
      %s90 = sphi 0, %s89
      %s104 = sphi 0, %s90
      %s108 = sphi 0, %s108
      %s110 = sphi 0, %s108
      %s111 = sphi 0, %s110
      %s125 = sphi 0, %s111
      %s129 = sphi 0, %s129
      %s131 = sphi 0, %s129
      %s132 = sphi 0, %s131
      %s146 = sphi 0, %s132
      %s150 = sphi 0, %s150
      %s152 = sphi 0, %s150
      %s153 = sphi 0, %s152
      %s167 = sphi 0, %s153
      %s171 = sphi 0, %s171
      %s173 = sphi 0, %s171
      %s174 = sphi 0, %s173
      %s188 = sphi 0, %s174
      %s192 = sphi 0, %s192
      %s194 = sphi 0, %s192
      %s195 = sphi 0, %s194
      %s209 = sphi 0, %s195
      %s213 = sphi 0, %s213
      %s215 = sphi 0, %s213
      %s216 = sphi 0, %s215
      %s230 = sphi 0, %s216
      %s234 = sphi 0, %s234
      %s236 = sphi 0, %s234
      %s237 = sphi 0, %s236
      %s251 = sphi 0, %s237
    $region4: #{classifier_forward.1} parent=1 // loop_header_branch
      %19 = sbr.rel (%p17) target = $region8
    $region5: #{classifier_forward.1} parent=1 // loop_body
      %s21 = ssub.s32 %s16, 1
      %s22 = ssub.s32 %s16, 2
      %s29 = sadd.s32 1, %s24
      %p30 = scmp.ge.s32.totalorder %s29, 2
      %s31 = scalar_select %p30, 0, %s29
      %s32 = sadd.s32 1, %s23
      %s33 = scalar_select %p30, %s32, %s23
      %p34 = scmp.ge.s32.totalorder %s33, 3
      %s35 = scalar_select %p34, 0, %s33
      %p36 = scmp.eq.s32.totalorder %s23, 0
      %s37 = scalar_select %p36, %s24, 0
      %p38 = scmp.eq.s32.totalorder %s35, 0
      %s39 = scalar_select %p38, %s31, 0
      %s40 = ssub.s32 %s37, %s39
      %p41 = scmp.eq.s32.totalorder %s40, 0
      %s43 = sadd.s32 %s42, 1
      %s44 = scalar_select %p41, %s42, %s43
      %p47 = pneg %p41
      %p48 = scmp.eq.s32.totalorder %s16, 5
      %p49 = por %p47, %p48
      %p50 = scmp.ne.s32.totalorder %s42, %s45
      %p51 = scmp.eq.s32.totalorder %s16, 0
      %p52 = por %p50, %p51
      %p53 = scmp.ne.s32.totalorder %s42, %s45
      %p54 = scmp.eq.s32.totalorder %s21, 5
      %p55 = por %p53, %p54
      %p56 = scmp.ne.s32.totalorder %s45, %s46
      %p57 = scmp.eq.s32.totalorder %s21, 0
      %p58 = por %p56, %p57
      %p59 = scmp.ne.s32.totalorder %s45, %s46
      %p60 = scmp.eq.s32.totalorder %s22, 5
      %p61 = por %p59, %p60
      %p63 = scmp.ne.s32.totalorder %s46, %s62
      %p64 = scmp.eq.s32.totalorder %s22, 0
      %p65 = por %p63, %p64
      %s67 = sadd.s32 %s66, 1
      %p70 = scmp.eq.s32.totalorder %s16, 5
      %p71 = scmp.ne.s32.totalorder %s66, %s68
      %p72 = scmp.eq.s32.totalorder %s16, 0
      %p73 = por %p71, %p72
      %p74 = scmp.ne.s32.totalorder %s66, %s68
      %p75 = scmp.eq.s32.totalorder %s21, 5
      %p76 = por %p74, %p75
      %p77 = scmp.ne.s32.totalorder %s68, %s69
      %p78 = scmp.eq.s32.totalorder %s21, 0
      %p79 = por %p77, %p78
      %p80 = scmp.ne.s32.totalorder %s68, %s69
      %p81 = scmp.eq.s32.totalorder %s22, 5
      %p82 = por %p80, %p81
      %p84 = scmp.ne.s32.totalorder %s69, %s83
      %p85 = scmp.eq.s32.totalorder %s22, 0
      %p86 = por %p84, %p85
      %s88 = sadd.s32 %s87, 1
      %p91 = scmp.eq.s32.totalorder %s16, 5
      %p92 = scmp.ne.s32.totalorder %s87, %s89
      %p93 = scmp.eq.s32.totalorder %s16, 0
      %p94 = por %p92, %p93
      %p95 = scmp.ne.s32.totalorder %s87, %s89
      %p96 = scmp.eq.s32.totalorder %s21, 5
      %p97 = por %p95, %p96
      %p98 = scmp.ne.s32.totalorder %s89, %s90
      %p99 = scmp.eq.s32.totalorder %s21, 0
      %p100 = por %p98, %p99
      %p101 = scmp.ne.s32.totalorder %s89, %s90
      %p102 = scmp.eq.s32.totalorder %s22, 5
      %p103 = por %p101, %p102
      %p105 = scmp.ne.s32.totalorder %s90, %s104
      %p106 = scmp.eq.s32.totalorder %s22, 0
      %p107 = por %p105, %p106
      %s109 = sadd.s32 %s108, 1
      %p112 = scmp.eq.s32.totalorder %s16, 5
      %p113 = scmp.ne.s32.totalorder %s108, %s110
      %p114 = scmp.eq.s32.totalorder %s16, 0
      %p115 = por %p113, %p114
      %p116 = scmp.ne.s32.totalorder %s108, %s110
      %p117 = scmp.eq.s32.totalorder %s21, 5
      %p118 = por %p116, %p117
      %p119 = scmp.ne.s32.totalorder %s110, %s111
      %p120 = scmp.eq.s32.totalorder %s21, 0
      %p121 = por %p119, %p120
      %p122 = scmp.ne.s32.totalorder %s110, %s111
      %p123 = scmp.eq.s32.totalorder %s22, 5
      %p124 = por %p122, %p123
      %p126 = scmp.ne.s32.totalorder %s111, %s125
      %p127 = scmp.eq.s32.totalorder %s22, 0
      %p128 = por %p126, %p127
      %s130 = sadd.s32 %s129, 1
      %p133 = scmp.eq.s32.totalorder %s16, 5
      %p134 = scmp.ne.s32.totalorder %s129, %s131
      %p135 = scmp.eq.s32.totalorder %s16, 0
      %p136 = por %p134, %p135
      %p137 = scmp.ne.s32.totalorder %s129, %s131
      %p138 = scmp.eq.s32.totalorder %s21, 5
      %p139 = por %p137, %p138
      %p140 = scmp.ne.s32.totalorder %s131, %s132
      %p141 = scmp.eq.s32.totalorder %s21, 0
      %p142 = por %p140, %p141
      %p143 = scmp.ne.s32.totalorder %s131, %s132
      %p144 = scmp.eq.s32.totalorder %s22, 5
      %p145 = por %p143, %p144
      %p147 = scmp.ne.s32.totalorder %s132, %s146
      %p148 = scmp.eq.s32.totalorder %s22, 0
      %p149 = por %p147, %p148
      %s151 = sadd.s32 %s150, 1
      %p154 = scmp.eq.s32.totalorder %s16, 5
      %p155 = scmp.ne.s32.totalorder %s150, %s152
      %p156 = scmp.eq.s32.totalorder %s16, 0
      %p157 = por %p155, %p156
      %p158 = scmp.ne.s32.totalorder %s150, %s152
      %p159 = scmp.eq.s32.totalorder %s21, 5
      %p160 = por %p158, %p159
      %p161 = scmp.ne.s32.totalorder %s152, %s153
      %p162 = scmp.eq.s32.totalorder %s21, 0
      %p163 = por %p161, %p162
      %p164 = scmp.ne.s32.totalorder %s152, %s153
      %p165 = scmp.eq.s32.totalorder %s22, 5
      %p166 = por %p164, %p165
      %p168 = scmp.ne.s32.totalorder %s153, %s167
      %p169 = scmp.eq.s32.totalorder %s22, 0
      %p170 = por %p168, %p169
      %s172 = sadd.s32 %s171, 1
      %p175 = scmp.eq.s32.totalorder %s16, 5
      %p176 = scmp.ne.s32.totalorder %s171, %s173
      %p177 = scmp.eq.s32.totalorder %s16, 0
      %p178 = por %p176, %p177
      %p179 = scmp.ne.s32.totalorder %s171, %s173
      %p180 = scmp.eq.s32.totalorder %s21, 5
      %p181 = por %p179, %p180
      %p182 = scmp.ne.s32.totalorder %s173, %s174
      %p183 = scmp.eq.s32.totalorder %s21, 0
      %p184 = por %p182, %p183
      %p185 = scmp.ne.s32.totalorder %s173, %s174
      %p186 = scmp.eq.s32.totalorder %s22, 5
      %p187 = por %p185, %p186
      %p189 = scmp.ne.s32.totalorder %s174, %s188
      %p190 = scmp.eq.s32.totalorder %s22, 0
      %p191 = por %p189, %p190
      %s193 = sadd.s32 %s192, 1
      %p196 = scmp.eq.s32.totalorder %s16, 5
      %p197 = scmp.ne.s32.totalorder %s192, %s194
      %p198 = scmp.eq.s32.totalorder %s16, 0
      %p199 = por %p197, %p198
      %p200 = scmp.ne.s32.totalorder %s192, %s194
      %p201 = scmp.eq.s32.totalorder %s21, 5
      %p202 = por %p200, %p201
      %p203 = scmp.ne.s32.totalorder %s194, %s195
      %p204 = scmp.eq.s32.totalorder %s21, 0
      %p205 = por %p203, %p204
      %p206 = scmp.ne.s32.totalorder %s194, %s195
      %p207 = scmp.eq.s32.totalorder %s22, 5
      %p208 = por %p206, %p207
      %p210 = scmp.ne.s32.totalorder %s195, %s209
      %p211 = scmp.eq.s32.totalorder %s22, 0
      %p212 = por %p210, %p211
      %s214 = sadd.s32 %s213, 1
      %p217 = scmp.eq.s32.totalorder %s16, 5
      %p218 = scmp.ne.s32.totalorder %s213, %s215
      %p219 = scmp.eq.s32.totalorder %s16, 0
      %p220 = por %p218, %p219
      %p221 = scmp.ne.s32.totalorder %s213, %s215
      %p222 = scmp.eq.s32.totalorder %s21, 5
      %p223 = por %p221, %p222
      %p224 = scmp.ne.s32.totalorder %s215, %s216
      %p225 = scmp.eq.s32.totalorder %s21, 0
      %p226 = por %p224, %p225
      %p227 = scmp.ne.s32.totalorder %s215, %s216
      %p228 = scmp.eq.s32.totalorder %s22, 5
      %p229 = por %p227, %p228
      %p231 = scmp.ne.s32.totalorder %s216, %s230
      %p232 = scmp.eq.s32.totalorder %s22, 0
      %p233 = por %p231, %p232
      %s235 = sadd.s32 %s234, 1
      %p238 = scmp.eq.s32.totalorder %s16, 5
      %p239 = scmp.ne.s32.totalorder %s234, %s236
      %p240 = scmp.eq.s32.totalorder %s16, 0
      %p241 = por %p239, %p240
      %p242 = scmp.ne.s32.totalorder %s234, %s236
      %p243 = scmp.eq.s32.totalorder %s21, 5
      %p244 = por %p242, %p243
      %p245 = scmp.ne.s32.totalorder %s236, %s237
      %p246 = scmp.eq.s32.totalorder %s21, 0
      %p247 = por %p245, %p246
      %p248 = scmp.ne.s32.totalorder %s236, %s237
      %p249 = scmp.eq.s32.totalorder %s22, 5
      %p250 = por %p248, %p249
      %p252 = scmp.ne.s32.totalorder %s237, %s251
      %p253 = scmp.eq.s32.totalorder %s22, 0
      %p254 = por %p252, %p253
      %p255 = scmp.le.s32.totalorder 1, %s16
      %p256 = scmp.lt.s32.totalorder %s16, 7
      %p257 = pnand %p255, %p256
      %p258 = pneg %p257
      // Predicated region
      $region9: #{classifier_forward.1} parent=5 // pred_check
        _
      $region10: #{classifier_forward.1} parent=5 // pred_check_branch
        %260 = sbr.rel (%p257) target = $region12
      $region11: #{classifier_forward.1} parent=5 // pred_region
        %s261 = ssub.s32 %s16, 1
        // Predicated region
        $region13: #{classifier_forward.1} parent=11 // pred_check
          %p262 = pneg %p79
        $region14: #{classifier_forward.1} parent=11 // pred_check_branch
          %264 = sbr.rel (%p262) target = $region16
        $region15: #{classifier_forward.1} parent=11 // pred_region
          _
        $region16: #{classifier_forward.1} parent=11 // pred_fallthru
          _
        // Predicated region
        $region17: #{classifier_forward.1} parent=11 // pred_check
          %p265 = pneg %p100
        $region18: #{classifier_forward.1} parent=11 // pred_check_branch
          %267 = sbr.rel (%p265) target = $region20
        $region19: #{classifier_forward.1} parent=11 // pred_region
          _
        $region20: #{classifier_forward.1} parent=11 // pred_fallthru
          _
        // Predicated region
        $region21: #{classifier_forward.1} parent=11 // pred_check
          %p268 = pneg %p121
        $region22: #{classifier_forward.1} parent=11 // pred_check_branch
          %270 = sbr.rel (%p268) target = $region24
        $region23: #{classifier_forward.1} parent=11 // pred_region
          _
        $region24: #{classifier_forward.1} parent=11 // pred_fallthru
          _
        // Predicated region
        $region25: #{classifier_forward.1} parent=11 // pred_check
          %p271 = pneg %p142
        $region26: #{classifier_forward.1} parent=11 // pred_check_branch
          %273 = sbr.rel (%p271) target = $region28
        $region27: #{classifier_forward.1} parent=11 // pred_region
          _
        $region28: #{classifier_forward.1} parent=11 // pred_fallthru
          _
        // Predicated region
        $region29: #{classifier_forward.1} parent=11 // pred_check
          %p274 = pneg %p163
        $region30: #{classifier_forward.1} parent=11 // pred_check_branch
          %276 = sbr.rel (%p274) target = $region32
        $region31: #{classifier_forward.1} parent=11 // pred_region
          _
        $region32: #{classifier_forward.1} parent=11 // pred_fallthru
          _
        // Predicated region
        $region33: #{classifier_forward.1} parent=11 // pred_check
          %p277 = pneg %p184
        $region34: #{classifier_forward.1} parent=11 // pred_check_branch
          %279 = sbr.rel (%p277) target = $region36
        $region35: #{classifier_forward.1} parent=11 // pred_region
          _
        $region36: #{classifier_forward.1} parent=11 // pred_fallthru
          _
        // Predicated region
        $region37: #{classifier_forward.1} parent=11 // pred_check
          %p280 = pneg %p205
        $region38: #{classifier_forward.1} parent=11 // pred_check_branch
          %282 = sbr.rel (%p280) target = $region40
        $region39: #{classifier_forward.1} parent=11 // pred_region
          _
        $region40: #{classifier_forward.1} parent=11 // pred_fallthru
          _
        // Predicated region
        $region41: #{classifier_forward.1} parent=11 // pred_check
          %p283 = pneg %p226
        $region42: #{classifier_forward.1} parent=11 // pred_check_branch
          %285 = sbr.rel (%p283) target = $region44
        $region43: #{classifier_forward.1} parent=11 // pred_region
          _
        $region44: #{classifier_forward.1} parent=11 // pred_fallthru
          _
      $region12: #{classifier_forward.1} parent=5 // pred_fallthru
        _
      %p286 = scmp.lt.s32.totalorder %s16, 6
      // Predicated region
      $region45: #{classifier_forward.1} parent=5 // pred_check
        %p287 = pneg %p286
      $region46: #{classifier_forward.1} parent=5 // pred_check_branch
        %289 = sbr.rel (%p287) target = $region48
      $region47: #{classifier_forward.1} parent=5 // pred_region
        // Predicated region
        $region49: #{classifier_forward.1} parent=47 // pred_check
          %p290 = pneg %p52
        $region50: #{classifier_forward.1} parent=47 // pred_check_branch
          %292 = sbr.rel (%p290) target = $region52
        $region51: #{classifier_forward.1} parent=47 // pred_region
          %p293 = scmp.eq.s32.totalorder %s23, 0
          %s294 = scalar_select %p293, %s24, 0
          %p295 = scmp.lt.s32.totalorder %s294, 1
          %s296 = scalar_select %p295, %s294, 1
          %s297 = smul.addr %s296, 54
          %s298 = smul.addr %s297, 4
          %s299 = scalar_lea.vmem %s0, %s298
          %p300 = scmp.eq.s32.totalorder %s23, 0
          %s301 = scalar_select %p300, %s24, 0
        $region52: #{classifier_forward.1} parent=47 // pred_fallthru
          _
      $region48: #{classifier_forward.1} parent=5 // pred_fallthru
        _
      %p302 = scmp.le.s32.totalorder 1, %s16
      %p303 = scmp.lt.s32.totalorder %s16, 7
      %p304 = pnand %p302, %p303
      %p305 = pneg %p304
      // Predicated region
      $region53: #{classifier_forward.1} parent=5 // pred_check
        _
      $region54: #{classifier_forward.1} parent=5 // pred_check_branch
        %307 = sbr.rel (%p304) target = $region56
      $region55: #{classifier_forward.1} parent=5 // pred_region
        %s308 = ssub.s32 %s16, 1
        %p309 = scmp.eq.s32.totalorder %s25, 0
        %s310 = scalar_select %p309, %s26, 0
        %p311 = scmp.lt.s32.totalorder %s310, 1
        %s312 = scalar_select %p311, %s310, 1
        %s313 = smul.addr %s312, 54
        %s314 = smul.addr %s313, 4
        %s315 = scalar_lea.vmem %s0, %s314
        %p316 = pneg %p58
        %p317 = pneg %p55
        %p318 = pneg %p79
        %p319 = pneg %p76
        %p320 = pneg %p100
        %p321 = pneg %p97
        %p322 = pneg %p121
        %p323 = pneg %p118
        %p324 = pneg %p142
        %p325 = pneg %p139
        %p326 = pneg %p163
        %p327 = pneg %p160
        %p328 = pneg %p184
        %p329 = pneg %p181
        %p330 = pneg %p205
        %p331 = pneg %p202
        %p332 = pneg %p226
        %p333 = pneg %p223
        %p334 = pneg %p247
        %p335 = pneg %p244
        %p336 = scmp.eq.s32.totalorder %s25, 0
        %s337 = scalar_select %p336, %s26, 0
        %p338 = scmp.lt.s32.totalorder %s337, 1
        %s339 = scalar_select %p338, %s337, 1
        %s340 = smul.addr %s339, 54
        %s341 = smul.addr %s340, 4
        %s342 = scalar_lea.vmem %s0, %s341
        %p343 = scmp.eq.s32.totalorder %s25, 0
        %s344 = scalar_select %p343, %s26, 0
        %p346 = scmp.eq.s32.totalorder %s25, 0
        %p347 = scmp.eq.s32.totalorder %s26, 0
        %p348 = pnand %p346, %p347
        %p349 = pneg %p348
        // Predicated region
        $region57: #{classifier_forward.1} parent=55 // pred_check
          _
        $region58: #{classifier_forward.1} parent=55 // pred_check_branch
          %351 = sbr.rel (%p348) target = $region60
        $region59: #{classifier_forward.1} parent=55 // pred_region
          %vm352 = vcmask 517120
          %353 = vst.msk [vmem:[#allocation3] sm:$0x3] %vm352, 0.0
          %vm354 = vcmask 254976
          %355 = vst.msk [vmem:[#allocation4] sm:$0x3] %vm354, 0.0
        $region60: #{classifier_forward.1} parent=55 // pred_fallthru
          _
        // Predicated region
        $region61: #{classifier_forward.1} parent=55 // pred_check
          %p356 = pneg %p346
        $region62: #{classifier_forward.1} parent=55 // pred_check_branch
          %358 = sbr.rel (%p356) target = $region64
        $region63: #{classifier_forward.1} parent=55 // pred_region
          %v359 = vld [vmem:[%s342] sm:$0xf]
          %v360 = vld [vmem:[%s342 + $0x4] sm:$0xf]
          %v361 = vld [vmem:[%s342 + $0x8] sm:$0x1]
          %v362 = vld [vmem:[%s342 + $0xc] sm:$0xf]
          %v363 = vld [vmem:[%s342 + $0x10] sm:$0xf]
          %v364 = vld [vmem:[%s342 + $0x14] sm:$0x1]
          %v365 = vld [vmem:[%s342 + $0x18] sm:$0xf]
          %v366 = vld [vmem:[%s342 + $0x1c] sm:$0xf]
          %v367 = vld [vmem:[%s342 + $0x20] sm:$0x1]
          %v368 = vld [vmem:[%s342 + $0x24] sm:$0xf]
          %v369 = vld [vmem:[%s342 + $0x28] sm:$0xf]
          %v370 = vld [vmem:[%s342 + $0x2c] sm:$0x1]
          %v371 = vld [vmem:[%s342 + $0x30] sm:$0xf]
          %v372 = vld [vmem:[%s342 + $0x34] sm:$0xf]
          %v373 = vld [vmem:[%s342 + $0x38] sm:$0x1]
          %v374 = vld [vmem:[%s342 + $0x3c] sm:$0xf]
          %v375 = vld [vmem:[%s342 + $0x40] sm:$0xf]
          %v376 = vld [vmem:[%s342 + $0x44] sm:$0x1]
          %v377 = vld [vmem:[%s342 + $0x48] sm:$0xf]
          %v378 = vld [vmem:[%s342 + $0x4c] sm:$0xf]
          %v379 = vld [vmem:[%s342 + $0x50] sm:$0x1]
          %v380 = vld [vmem:[%s342 + $0x54] sm:$0xf]
          %v381 = vld [vmem:[%s342 + $0x58] sm:$0xf]
          %v382 = vld [vmem:[%s342 + $0x5c] sm:$0x1]
          %v383 = vld [vmem:[%s342 + $0x60] sm:$0xf]
          %v384 = vld [vmem:[%s342 + $0x64] sm:$0xf]
          %v385 = vld [vmem:[%s342 + $0x68] sm:$0x1]
          %v386 = vld [vmem:[%s342 + $0x6c] sm:$0xf]
          %v387 = vld [vmem:[%s342 + $0x70] sm:$0xf]
          %v388 = vld [vmem:[%s342 + $0x74] sm:$0x1]
          %v389 = vld [vmem:[%s342 + $0x78] sm:$0xf]
          %v390 = vld [vmem:[%s342 + $0x7c] sm:$0xf]
          %v391 = vld [vmem:[%s342 + $0x80] sm:$0x1]
          %v392 = vld [vmem:[%s342 + $0x84] sm:$0xf]
          %v393 = vld [vmem:[%s342 + $0x88] sm:$0xf]
          %v394 = vld [vmem:[%s342 + $0x8c] sm:$0x1]
          %v395 = vld [vmem:[%s342 + $0x90] sm:$0xf]
          %v396 = vld [vmem:[%s342 + $0x94] sm:$0xf]
          %v397 = vld [vmem:[%s342 + $0x98] sm:$0x1]
          %v398 = vld [vmem:[%s342 + $0x9c] sm:$0xf]
          %v399 = vld [vmem:[%s342 + $0xa0] sm:$0xf]
          %v400 = vld [vmem:[%s342 + $0xa4] sm:$0x1]
          %v401 = vld [vmem:[%s342 + $0xa8] sm:$0xf]
          %v402 = vld [vmem:[%s342 + $0xac] sm:$0xf]
          %v403 = vld [vmem:[%s342 + $0xb0] sm:$0x1]
          %v404 = vld [vmem:[%s342 + $0xb4] sm:$0xf]
          %v405 = vld [vmem:[%s342 + $0xb8] sm:$0xf]
          %v406 = vld [vmem:[%s342 + $0xbc] sm:$0x1]
          %v407 = vld [vmem:[%s342 + $0xc0] sm:$0xf]
          %v408 = vld [vmem:[%s342 + $0xc4] sm:$0xf]
          %v409 = vld [vmem:[%s342 + $0xc8] sm:$0x1]
          %v410 = vld [vmem:[%s342 + $0xcc] sm:$0xf]
          %v411 = vld [vmem:[%s342 + $0xd0] sm:$0xf]
          %v412 = vld [vmem:[%s342 + $0xd4] sm:$0x1]
          %v413 = vld [vmem:[%s1] sm:$0xf]
          %v414 = vld [vmem:[%s1 + $0x4] sm:$0xf]
          %v415 = vld [vmem:[%s1 + $0x8] sm:$0xf]
          %v416 = vld [vmem:[%s1 + $0xc] sm:$0xf]
          %v417 = vld [vmem:[%s1 + $0x10] sm:$0xf]
          %v418 = vld [vmem:[%s1 + $0x14] sm:$0xf]
          %v419 = vld [vmem:[%s1 + $0x18] sm:$0xf]
          %v420 = vld [vmem:[%s1 + $0x1c] sm:$0xf]
          %v421 = vld [vmem:[%s1 + $0x20] sm:$0xf]
          %v422 = vld [vmem:[%s1 + $0x24] sm:$0xf]
          %v423 = vld [vmem:[%s1 + $0x28] sm:$0xf]
          %v424 = vld [vmem:[%s1 + $0x2c] sm:$0xf]
          %v425 = vld [vmem:[%s1 + $0x30] sm:$0xf]
          %v426 = vld [vmem:[%s1 + $0x34] sm:$0xf]
          %v427 = vld [vmem:[%s1 + $0x38] sm:$0xf]
          %v428 = vld [vmem:[%s1 + $0x3c] sm:$0xf]
          %vm429 = vsmask.f32 3328
          %vm430 = vsmask.f32 7440
          %vm431 = vmor %vm429, %vm430
          %v433 = vshrl.u32 %v359, 16
          %v435 = vrot.slane %v433, 4
          %v436 = vshll.u32 %v359, 16
          %v438 = vrot.slane %v436, 5
          %v439 = vor.u32 %v435, %v438
          %v440 = vrot.slane %v439, 4
          %v442 = vshll.u32 %v360, 16
          %v444 = vrot.slane %v442, 5
          %v445 = vsel %vm431, %v440, %v444
          %v446 = vshrl.u32 %v360, 16
          %v448 = vrot.slane %v446, 4
          %v449 = vor.u32 %v448, %v444
          %v450 = vrot.slane %v449, 4
          %v452 = vshll.u32 %v361, 16
          %v454 = vrot.slane %v452, 5
          %v455 = vsel %vm431, %v450, %v454
          %v457 = vshrl.u32 %v362, 16
          %v459 = vrot.slane %v457, 4
          %v460 = vshll.u32 %v362, 16
          %v462 = vrot.slane %v460, 5
          %v463 = vor.u32 %v459, %v462
          %v464 = vrot.slane %v463, 4
          %v466 = vshll.u32 %v363, 16
          %v468 = vrot.slane %v466, 5
          %v469 = vsel %vm431, %v464, %v468
          %v470 = vshrl.u32 %v363, 16
          %v472 = vrot.slane %v470, 4
          %v473 = vor.u32 %v472, %v468
          %v474 = vrot.slane %v473, 4
          %v476 = vshll.u32 %v364, 16
          %v478 = vrot.slane %v476, 5
          %v479 = vsel %vm431, %v474, %v478
          %v481 = vshrl.u32 %v365, 16
          %v483 = vrot.slane %v481, 4
          %v484 = vshll.u32 %v365, 16
          %v486 = vrot.slane %v484, 5
          %v487 = vor.u32 %v483, %v486
          %v488 = vrot.slane %v487, 4
          %v490 = vshll.u32 %v366, 16
          %v492 = vrot.slane %v490, 5
          %v493 = vsel %vm431, %v488, %v492
          %v494 = vshrl.u32 %v366, 16
          %v496 = vrot.slane %v494, 4
          %v497 = vor.u32 %v496, %v492
          %v498 = vrot.slane %v497, 4
          %v500 = vshll.u32 %v367, 16
          %v502 = vrot.slane %v500, 5
          %v503 = vsel %vm431, %v498, %v502
          %v505 = vshrl.u32 %v368, 16
          %v507 = vrot.slane %v505, 4
          %v508 = vshll.u32 %v368, 16
          %v510 = vrot.slane %v508, 5
          %v511 = vor.u32 %v507, %v510
          %v512 = vrot.slane %v511, 4
          %v514 = vshll.u32 %v369, 16
          %v516 = vrot.slane %v514, 5
          %v517 = vsel %vm431, %v512, %v516
          %v518 = vshrl.u32 %v369, 16
          %v520 = vrot.slane %v518, 4
          %v521 = vor.u32 %v520, %v516
          %v522 = vrot.slane %v521, 4
          %v524 = vshll.u32 %v370, 16
          %v526 = vrot.slane %v524, 5
          %v527 = vsel %vm431, %v522, %v526
          %v529 = vshrl.u32 %v371, 16
          %v531 = vrot.slane %v529, 4
          %v532 = vshll.u32 %v371, 16
          %v534 = vrot.slane %v532, 5
          %v535 = vor.u32 %v531, %v534
          %v536 = vrot.slane %v535, 4
          %v538 = vshll.u32 %v372, 16
          %v540 = vrot.slane %v538, 5
          %v541 = vsel %vm431, %v536, %v540
          %v542 = vshrl.u32 %v372, 16
          %v544 = vrot.slane %v542, 4
          %v545 = vor.u32 %v544, %v540
          %v546 = vrot.slane %v545, 4
          %v548 = vshll.u32 %v373, 16
          %v550 = vrot.slane %v548, 5
          %v551 = vsel %vm431, %v546, %v550
          %v553 = vshrl.u32 %v374, 16
          %v555 = vrot.slane %v553, 4
          %v556 = vshll.u32 %v374, 16
          %v558 = vrot.slane %v556, 5
          %v559 = vor.u32 %v555, %v558
          %v560 = vrot.slane %v559, 4
          %v562 = vshll.u32 %v375, 16
          %v564 = vrot.slane %v562, 5
          %v565 = vsel %vm431, %v560, %v564
          %v566 = vshrl.u32 %v375, 16
          %v568 = vrot.slane %v566, 4
          %v569 = vor.u32 %v568, %v564
          %v570 = vrot.slane %v569, 4
          %v572 = vshll.u32 %v376, 16
          %v574 = vrot.slane %v572, 5
          %v575 = vsel %vm431, %v570, %v574
          %v577 = vshrl.u32 %v377, 16
          %v579 = vrot.slane %v577, 4
          %v580 = vshll.u32 %v377, 16
          %v582 = vrot.slane %v580, 5
          %v583 = vor.u32 %v579, %v582
          %v584 = vrot.slane %v583, 4
          %v586 = vshll.u32 %v378, 16
          %v588 = vrot.slane %v586, 5
          %v589 = vsel %vm431, %v584, %v588
          %v590 = vshrl.u32 %v378, 16
          %v592 = vrot.slane %v590, 4
          %v593 = vor.u32 %v592, %v588
          %v594 = vrot.slane %v593, 4
          %v596 = vshll.u32 %v379, 16
          %v598 = vrot.slane %v596, 5
          %v599 = vsel %vm431, %v594, %v598
          %v601 = vshrl.u32 %v380, 16
          %v603 = vrot.slane %v601, 4
          %v604 = vshll.u32 %v380, 16
          %v606 = vrot.slane %v604, 5
          %v607 = vor.u32 %v603, %v606
          %v608 = vrot.slane %v607, 4
          %v610 = vshll.u32 %v381, 16
          %v612 = vrot.slane %v610, 5
          %v613 = vsel %vm431, %v608, %v612
          %v614 = vshrl.u32 %v381, 16
          %v616 = vrot.slane %v614, 4
          %v617 = vor.u32 %v616, %v612
          %v618 = vrot.slane %v617, 4
          %v620 = vshll.u32 %v382, 16
          %v622 = vrot.slane %v620, 5
          %v623 = vsel %vm431, %v618, %v622
          %v625 = vshrl.u32 %v383, 16
          %v627 = vrot.slane %v625, 4
          %v628 = vshll.u32 %v383, 16
          %v630 = vrot.slane %v628, 5
          %v631 = vor.u32 %v627, %v630
          %v632 = vrot.slane %v631, 4
          %v634 = vshll.u32 %v384, 16
          %v636 = vrot.slane %v634, 5
          %v637 = vsel %vm431, %v632, %v636
          %v638 = vshrl.u32 %v384, 16
          %v640 = vrot.slane %v638, 4
          %v641 = vor.u32 %v640, %v636
          %v642 = vrot.slane %v641, 4
          %v644 = vshll.u32 %v385, 16
          %v646 = vrot.slane %v644, 5
          %v647 = vsel %vm431, %v642, %v646
          %v649 = vshrl.u32 %v386, 16
          %v651 = vrot.slane %v649, 4
          %v652 = vshll.u32 %v386, 16
          %v654 = vrot.slane %v652, 5
          %v655 = vor.u32 %v651, %v654
          %v656 = vrot.slane %v655, 4
          %v658 = vshll.u32 %v387, 16
          %v660 = vrot.slane %v658, 5
          %v661 = vsel %vm431, %v656, %v660
          %v662 = vshrl.u32 %v387, 16
          %v664 = vrot.slane %v662, 4
          %v665 = vor.u32 %v664, %v660
          %v666 = vrot.slane %v665, 4
          %v668 = vshll.u32 %v388, 16
          %v670 = vrot.slane %v668, 5
          %v671 = vsel %vm431, %v666, %v670
          %v673 = vshrl.u32 %v389, 16
          %v675 = vrot.slane %v673, 4
          %v676 = vshll.u32 %v389, 16
          %v678 = vrot.slane %v676, 5
          %v679 = vor.u32 %v675, %v678
          %v680 = vrot.slane %v679, 4
          %v682 = vshll.u32 %v390, 16
          %v684 = vrot.slane %v682, 5
          %v685 = vsel %vm431, %v680, %v684
          %v686 = vshrl.u32 %v390, 16
          %v688 = vrot.slane %v686, 4
          %v689 = vor.u32 %v688, %v684
          %v690 = vrot.slane %v689, 4
          %v692 = vshll.u32 %v391, 16
          %v694 = vrot.slane %v692, 5
          %v695 = vsel %vm431, %v690, %v694
          %v697 = vshrl.u32 %v392, 16
          %v699 = vrot.slane %v697, 4
          %v700 = vshll.u32 %v392, 16
          %v702 = vrot.slane %v700, 5
          %v703 = vor.u32 %v699, %v702
          %v704 = vrot.slane %v703, 4
          %v706 = vshll.u32 %v393, 16
          %v708 = vrot.slane %v706, 5
          %v709 = vsel %vm431, %v704, %v708
          %v710 = vshrl.u32 %v393, 16
          %v712 = vrot.slane %v710, 4
          %v713 = vor.u32 %v712, %v708
          %v714 = vrot.slane %v713, 4
          %v716 = vshll.u32 %v394, 16
          %v718 = vrot.slane %v716, 5
          %v719 = vsel %vm431, %v714, %v718
          %v721 = vshrl.u32 %v395, 16
          %v723 = vrot.slane %v721, 4
          %v724 = vshll.u32 %v395, 16
          %v726 = vrot.slane %v724, 5
          %v727 = vor.u32 %v723, %v726
          %v728 = vrot.slane %v727, 4
          %v730 = vshll.u32 %v396, 16
          %v732 = vrot.slane %v730, 5
          %v733 = vsel %vm431, %v728, %v732
          %v734 = vshrl.u32 %v396, 16
          %v736 = vrot.slane %v734, 4
          %v737 = vor.u32 %v736, %v732
          %v738 = vrot.slane %v737, 4
          %v740 = vshll.u32 %v397, 16
          %v742 = vrot.slane %v740, 5
          %v743 = vsel %vm431, %v738, %v742
          %v745 = vshrl.u32 %v398, 16
          %v747 = vrot.slane %v745, 4
          %v748 = vshll.u32 %v398, 16
          %v750 = vrot.slane %v748, 5
          %v751 = vor.u32 %v747, %v750
          %v752 = vrot.slane %v751, 4
          %v754 = vshll.u32 %v399, 16
          %v756 = vrot.slane %v754, 5
          %v757 = vsel %vm431, %v752, %v756
          %v758 = vshrl.u32 %v399, 16
          %v760 = vrot.slane %v758, 4
          %v761 = vor.u32 %v760, %v756
          %v762 = vrot.slane %v761, 4
          %v764 = vshll.u32 %v400, 16
          %v766 = vrot.slane %v764, 5
          %v767 = vsel %vm431, %v762, %v766
          %v769 = vshrl.u32 %v401, 16
          %v771 = vrot.slane %v769, 4
          %v772 = vshll.u32 %v401, 16
          %v774 = vrot.slane %v772, 5
          %v775 = vor.u32 %v771, %v774
          %v776 = vrot.slane %v775, 4
          %v778 = vshll.u32 %v402, 16
          %v780 = vrot.slane %v778, 5
          %v781 = vsel %vm431, %v776, %v780
          %v782 = vshrl.u32 %v402, 16
          %v784 = vrot.slane %v782, 4
          %v785 = vor.u32 %v784, %v780
          %v786 = vrot.slane %v785, 4
          %v788 = vshll.u32 %v403, 16
          %v790 = vrot.slane %v788, 5
          %v791 = vsel %vm431, %v786, %v790
          %v793 = vshrl.u32 %v404, 16
          %v795 = vrot.slane %v793, 4
          %v796 = vshll.u32 %v404, 16
          %v798 = vrot.slane %v796, 5
          %v799 = vor.u32 %v795, %v798
          %v800 = vrot.slane %v799, 4
          %v802 = vshll.u32 %v405, 16
          %v804 = vrot.slane %v802, 5
          %v805 = vsel %vm431, %v800, %v804
          %v806 = vshrl.u32 %v405, 16
          %v808 = vrot.slane %v806, 4
          %v809 = vor.u32 %v808, %v804
          %v810 = vrot.slane %v809, 4
          %v812 = vshll.u32 %v406, 16
          %v814 = vrot.slane %v812, 5
          %v815 = vsel %vm431, %v810, %v814
          %s816 = scalar_lea.vmem %s1, 64
          %v817 = vld [vmem:[%s816] sm:$0xf]
          %v818 = vld [vmem:[%s816 + $0x4] sm:$0xf]
          %v819 = vld [vmem:[%s816 + $0x8] sm:$0xf]
          %v820 = vld [vmem:[%s816 + $0xc] sm:$0xf]
          %v821 = vld [vmem:[%s816 + $0x10] sm:$0xf]
          %v822 = vld [vmem:[%s816 + $0x14] sm:$0xf]
          %v823 = vld [vmem:[%s816 + $0x18] sm:$0xf]
          %v824 = vld [vmem:[%s816 + $0x1c] sm:$0xf]
          %v825 = vld [vmem:[%s816 + $0x20] sm:$0xf]
          %v826 = vld [vmem:[%s816 + $0x24] sm:$0xf]
          %v827 = vld [vmem:[%s816 + $0x28] sm:$0xf]
          %v828 = vld [vmem:[%s816 + $0x2c] sm:$0xf]
          %v829 = vld [vmem:[%s816 + $0x30] sm:$0xf]
          %v830 = vld [vmem:[%s816 + $0x34] sm:$0xf]
          %v831 = vld [vmem:[%s816 + $0x38] sm:$0xf]
          %v832 = vld [vmem:[%s816 + $0x3c] sm:$0xf]
          %v833 = vunpack.c.l.b16 %v445
          %v834 = vunpack.c.l.b16 %v455
          %v835 = vunpack.c.l.b16 %v469
          %v836 = vunpack.c.l.b16 %v479
          %v837 = vunpack.c.l.b16 %v493
          %v838 = vunpack.c.l.b16 %v503
          %v839 = vunpack.c.l.b16 %v517
          %v840 = vunpack.c.l.b16 %v527
          %v841 = vunpack.c.l.b16 %v541
          %v842 = vunpack.c.l.b16 %v551
          %v843 = vunpack.c.l.b16 %v565
          %v844 = vunpack.c.l.b16 %v575
          %v845 = vunpack.c.l.b16 %v589
          %v846 = vunpack.c.l.b16 %v599
          %v847 = vunpack.c.l.b16 %v613
          %v848 = vunpack.c.l.b16 %v623
          %v849 = vunpack.c.l.b16 %v637
          %v850 = vunpack.c.l.b16 %v647
          %v851 = vunpack.c.l.b16 %v661
          %v852 = vunpack.c.l.b16 %v671
          %v853 = vunpack.c.l.b16 %v685
          %v854 = vunpack.c.l.b16 %v695
          %v855 = vunpack.c.l.b16 %v709
          %v856 = vunpack.c.l.b16 %v719
          %v857 = vunpack.c.l.b16 %v733
          %v858 = vunpack.c.l.b16 %v743
          %v859 = vunpack.c.l.b16 %v757
          %v860 = vunpack.c.l.b16 %v767
          %v861 = vunpack.c.l.b16 %v781
          %v862 = vunpack.c.l.b16 %v791
          %v863 = vunpack.c.l.b16 %v805
          %v864 = vunpack.c.l.b16 %v815
          %v865 = vpack.c.b16 %v834, %v833
          %v866 = vpack.c.b16 %v836, %v835
          %v867 = vpack.c.b16 %v838, %v837
          %v868 = vpack.c.b16 %v840, %v839
          %v869 = vpack.c.b16 %v842, %v841
          %v870 = vpack.c.b16 %v844, %v843
          %v871 = vpack.c.b16 %v846, %v845
          %v872 = vpack.c.b16 %v848, %v847
          %v873 = vpack.c.b16 %v850, %v849
          %v874 = vpack.c.b16 %v852, %v851
          %v875 = vpack.c.b16 %v854, %v853
          %v876 = vpack.c.b16 %v856, %v855
          %v877 = vpack.c.b16 %v858, %v857
          %v878 = vpack.c.b16 %v860, %v859
          %v879 = vpack.c.b16 %v862, %v861
          %v880 = vpack.c.b16 %v864, %v863
          %v913 = vunpack.c.l.b16 %v817
          %v914 = vunpack.c.l.b16 %v818
          %v915 = vunpack.c.l.b16 %v819
          %v916 = vunpack.c.l.b16 %v820
          %v917 = vunpack.c.l.b16 %v821
          %v918 = vunpack.c.l.b16 %v822
          %v919 = vunpack.c.l.b16 %v823
          %v920 = vunpack.c.l.b16 %v824
          %v921 = vunpack.c.l.b16 %v825
          %v922 = vunpack.c.l.b16 %v826
          %v923 = vunpack.c.l.b16 %v827
          %v924 = vunpack.c.l.b16 %v828
          %v925 = vunpack.c.l.b16 %v829
          %v926 = vunpack.c.l.b16 %v830
          %v927 = vunpack.c.l.b16 %v831
          %v928 = vunpack.c.l.b16 %v832
          %v929 = vpack.c.b16 %v914, %v913
          %v930 = vpack.c.b16 %v916, %v915
          %v931 = vpack.c.b16 %v918, %v917
          %v932 = vpack.c.b16 %v920, %v919
          %v933 = vpack.c.b16 %v922, %v921
          %v934 = vpack.c.b16 %v924, %v923
          %v935 = vpack.c.b16 %v926, %v925
          %v936 = vpack.c.b16 %v928, %v927
          %945 = vmatpush.bf16.msra.mxu0 %v936
          %946 = vmatpush.bf16.msra.mxu0 %v935
          %947 = vmatpush.bf16.msra.mxu0 %v934
          %948 = vmatpush.bf16.msra.mxu0 %v933
          %949 = vmatpush.bf16.msra.mxu0 %v932
          %950 = vmatpush.bf16.msra.mxu0 %v931
          %951 = vmatpush.bf16.msra.mxu0 %v930
          %952 = vmatpush.bf16.msra.mxu0 %v929
          %953 = vmatmul.bf16.gmra.mxu0 %v865
          %v954 = vpop.f32.mrf.mxu0
          %v955 = vadd.f32 0.0, %v954
          %v956 = vpop.f32.mrf.mxu0
          %v957 = vadd.f32 0.0, %v956
          %958 = vmatmul.bf16.gmra.mxu0 %v866
          %v959 = vpop.f32.mrf.mxu0
          %v960 = vadd.f32 0.0, %v959
          %v961 = vpop.f32.mrf.mxu0
          %v962 = vadd.f32 0.0, %v961
          %963 = vmatmul.bf16.gmra.mxu0 %v867
          %v964 = vpop.f32.mrf.mxu0
          %v965 = vadd.f32 0.0, %v964
          %v966 = vpop.f32.mrf.mxu0
          %v967 = vadd.f32 0.0, %v966
          %968 = vmatmul.bf16.gmra.mxu0 %v868
          %v969 = vpop.f32.mrf.mxu0
          %v970 = vadd.f32 0.0, %v969
          %v971 = vpop.f32.mrf.mxu0
          %v972 = vadd.f32 0.0, %v971
          %973 = vmatmul.bf16.gmra.mxu0 %v869
          %v974 = vpop.f32.mrf.mxu0
          %v975 = vadd.f32 0.0, %v974
          %v976 = vpop.f32.mrf.mxu0
          %v977 = vadd.f32 0.0, %v976
          %978 = vmatmul.bf16.gmra.mxu0 %v870
          %v979 = vpop.f32.mrf.mxu0
          %v980 = vadd.f32 0.0, %v979
          %v981 = vpop.f32.mrf.mxu0
          %v982 = vadd.f32 0.0, %v981
          %983 = vmatmul.bf16.gmra.mxu0 %v871
          %v984 = vpop.f32.mrf.mxu0
          %v985 = vadd.f32 0.0, %v984
          %v986 = vpop.f32.mrf.mxu0
          %v987 = vadd.f32 0.0, %v986
          %988 = vmatmul.bf16.gmra.mxu0 %v872
          %v989 = vpop.f32.mrf.mxu0
          %v990 = vadd.f32 0.0, %v989
          %v991 = vpop.f32.mrf.mxu0
          %v992 = vadd.f32 0.0, %v991
          %993 = vmatmul.bf16.gmra.mxu0 %v873
          %v994 = vpop.f32.mrf.mxu0
          %v995 = vadd.f32 0.0, %v994
          %v996 = vpop.f32.mrf.mxu0
          %v997 = vadd.f32 0.0, %v996
          %998 = vmatmul.bf16.gmra.mxu0 %v874
          %v999 = vpop.f32.mrf.mxu0
          %v1000 = vadd.f32 0.0, %v999
          %v1001 = vpop.f32.mrf.mxu0
          %v1002 = vadd.f32 0.0, %v1001
          %1003 = vmatmul.bf16.gmra.mxu0 %v875
          %v1004 = vpop.f32.mrf.mxu0
          %v1005 = vadd.f32 0.0, %v1004
          %v1006 = vpop.f32.mrf.mxu0
          %v1007 = vadd.f32 0.0, %v1006
          %1008 = vmatmul.bf16.gmra.mxu0 %v876
          %v1009 = vpop.f32.mrf.mxu0
          %v1010 = vadd.f32 0.0, %v1009
          %v1011 = vpop.f32.mrf.mxu0
          %v1012 = vadd.f32 0.0, %v1011
          %1013 = vmatmul.bf16.gmra.mxu0 %v877
          %v1014 = vpop.f32.mrf.mxu0
          %v1015 = vadd.f32 0.0, %v1014
          %v1016 = vpop.f32.mrf.mxu0
          %v1017 = vadd.f32 0.0, %v1016
          %1018 = vmatmul.bf16.gmra.mxu0 %v878
          %v1019 = vpop.f32.mrf.mxu0
          %v1020 = vadd.f32 0.0, %v1019
          %v1021 = vpop.f32.mrf.mxu0
          %v1022 = vadd.f32 0.0, %v1021
          %1023 = vmatmul.bf16.gmra.mxu0 %v879
          %v1024 = vpop.f32.mrf.mxu0
          %v1025 = vadd.f32 0.0, %v1024
          %v1026 = vpop.f32.mrf.mxu0
          %v1027 = vadd.f32 0.0, %v1026
          %1028 = vmatmul.bf16.gmra.mxu0 %v880
          %v1029 = vpop.f32.mrf.mxu0
          %v1030 = vadd.f32 0.0, %v1029
          %v1031 = vpop.f32.mrf.mxu0
          %v1032 = vadd.f32 0.0, %v1031
          %1033 = vdwg.mxu0
          %v1066 = vunpack.c.l.b16 %v359
          %v1067 = vunpack.c.l.b16 %v360
          %v1068 = vunpack.c.l.b16 %v362
          %v1069 = vunpack.c.l.b16 %v363
          %v1070 = vunpack.c.l.b16 %v365
          %v1071 = vunpack.c.l.b16 %v366
          %v1072 = vunpack.c.l.b16 %v368
          %v1073 = vunpack.c.l.b16 %v369
          %v1074 = vunpack.c.l.b16 %v371
          %v1075 = vunpack.c.l.b16 %v372
          %v1076 = vunpack.c.l.b16 %v374
          %v1077 = vunpack.c.l.b16 %v375
          %v1078 = vunpack.c.l.b16 %v377
          %v1079 = vunpack.c.l.b16 %v378
          %v1080 = vunpack.c.l.b16 %v380
          %v1081 = vunpack.c.l.b16 %v381
          %v1082 = vunpack.c.l.b16 %v383
          %v1083 = vunpack.c.l.b16 %v384
          %v1084 = vunpack.c.l.b16 %v386
          %v1085 = vunpack.c.l.b16 %v387
          %v1086 = vunpack.c.l.b16 %v389
          %v1087 = vunpack.c.l.b16 %v390
          %v1088 = vunpack.c.l.b16 %v392
          %v1089 = vunpack.c.l.b16 %v393
          %v1090 = vunpack.c.l.b16 %v395
          %v1091 = vunpack.c.l.b16 %v396
          %v1092 = vunpack.c.l.b16 %v398
          %v1093 = vunpack.c.l.b16 %v399
          %v1094 = vunpack.c.l.b16 %v401
          %v1095 = vunpack.c.l.b16 %v402
          %v1096 = vunpack.c.l.b16 %v404
          %v1097 = vunpack.c.l.b16 %v405
          %v1098 = vpack.c.b16 %v1067, %v1066
          %v1099 = vpack.c.b16 %v1069, %v1068
          %v1100 = vpack.c.b16 %v1071, %v1070
          %v1101 = vpack.c.b16 %v1073, %v1072
          %v1102 = vpack.c.b16 %v1075, %v1074
          %v1103 = vpack.c.b16 %v1077, %v1076
          %v1104 = vpack.c.b16 %v1079, %v1078
          %v1105 = vpack.c.b16 %v1081, %v1080
          %v1106 = vpack.c.b16 %v1083, %v1082
          %v1107 = vpack.c.b16 %v1085, %v1084
          %v1108 = vpack.c.b16 %v1087, %v1086
          %v1109 = vpack.c.b16 %v1089, %v1088
          %v1110 = vpack.c.b16 %v1091, %v1090
          %v1111 = vpack.c.b16 %v1093, %v1092
          %v1112 = vpack.c.b16 %v1095, %v1094
          %v1113 = vpack.c.b16 %v1097, %v1096
          %v1146 = vunpack.c.l.b16 %v413
          %v1147 = vunpack.c.l.b16 %v414
          %v1148 = vunpack.c.l.b16 %v415
          %v1149 = vunpack.c.l.b16 %v416
          %v1150 = vunpack.c.l.b16 %v417
          %v1151 = vunpack.c.l.b16 %v418
          %v1152 = vunpack.c.l.b16 %v419
          %v1153 = vunpack.c.l.b16 %v420
          %v1154 = vunpack.c.l.b16 %v421
          %v1155 = vunpack.c.l.b16 %v422
          %v1156 = vunpack.c.l.b16 %v423
          %v1157 = vunpack.c.l.b16 %v424
          %v1158 = vunpack.c.l.b16 %v425
          %v1159 = vunpack.c.l.b16 %v426
          %v1160 = vunpack.c.l.b16 %v427
          %v1161 = vunpack.c.l.b16 %v428
          %v1162 = vpack.c.b16 %v1147, %v1146
          %v1163 = vpack.c.b16 %v1149, %v1148
          %v1164 = vpack.c.b16 %v1151, %v1150
          %v1165 = vpack.c.b16 %v1153, %v1152
          %v1166 = vpack.c.b16 %v1155, %v1154
          %v1167 = vpack.c.b16 %v1157, %v1156
          %v1168 = vpack.c.b16 %v1159, %v1158
          %v1169 = vpack.c.b16 %v1161, %v1160
          %1178 = vmatpush.bf16.msra.mxu0 %v1169
          %1179 = vmatpush.bf16.msra.mxu0 %v1168
          %1180 = vmatpush.bf16.msra.mxu0 %v1167
          %1181 = vmatpush.bf16.msra.mxu0 %v1166
          %1182 = vmatpush.bf16.msra.mxu0 %v1165
          %1183 = vmatpush.bf16.msra.mxu0 %v1164
          %1184 = vmatpush.bf16.msra.mxu0 %v1163
          %1185 = vmatpush.bf16.msra.mxu0 %v1162
          %1186 = vmatmul.bf16.gmra.mxu0 %v1098
          %v1187 = vpop.f32.mrf.mxu0
          %v1188 = vadd.f32 %v955, %v1187
          %v1189 = vpop.f32.mrf.mxu0
          %v1190 = vadd.f32 %v957, %v1189
          %1191 = vmatmul.bf16.gmra.mxu0 %v1099
          %v1192 = vpop.f32.mrf.mxu0
          %v1193 = vadd.f32 %v960, %v1192
          %v1194 = vpop.f32.mrf.mxu0
          %v1195 = vadd.f32 %v962, %v1194
          %1196 = vmatmul.bf16.gmra.mxu0 %v1100
          %v1197 = vpop.f32.mrf.mxu0
          %v1198 = vadd.f32 %v965, %v1197
          %v1199 = vpop.f32.mrf.mxu0
          %v1200 = vadd.f32 %v967, %v1199
          %1201 = vmatmul.bf16.gmra.mxu0 %v1101
          %v1202 = vpop.f32.mrf.mxu0
          %v1203 = vadd.f32 %v970, %v1202
          %v1204 = vpop.f32.mrf.mxu0
          %v1205 = vadd.f32 %v972, %v1204
          %1206 = vmatmul.bf16.gmra.mxu0 %v1102
          %v1207 = vpop.f32.mrf.mxu0
          %v1208 = vadd.f32 %v975, %v1207
          %v1209 = vpop.f32.mrf.mxu0
          %v1210 = vadd.f32 %v977, %v1209
          %1211 = vmatmul.bf16.gmra.mxu0 %v1103
          %v1212 = vpop.f32.mrf.mxu0
          %v1213 = vadd.f32 %v980, %v1212
          %v1214 = vpop.f32.mrf.mxu0
          %v1215 = vadd.f32 %v982, %v1214
          %1216 = vmatmul.bf16.gmra.mxu0 %v1104
          %v1217 = vpop.f32.mrf.mxu0
          %v1218 = vadd.f32 %v985, %v1217
          %v1219 = vpop.f32.mrf.mxu0
          %v1220 = vadd.f32 %v987, %v1219
          %1221 = vmatmul.bf16.gmra.mxu0 %v1105
          %v1222 = vpop.f32.mrf.mxu0
          %v1223 = vadd.f32 %v990, %v1222
          %v1224 = vpop.f32.mrf.mxu0
          %v1225 = vadd.f32 %v992, %v1224
          %1226 = vmatmul.bf16.gmra.mxu0 %v1106
          %v1227 = vpop.f32.mrf.mxu0
          %v1228 = vadd.f32 %v995, %v1227
          %v1229 = vpop.f32.mrf.mxu0
          %v1230 = vadd.f32 %v997, %v1229
          %1231 = vmatmul.bf16.gmra.mxu0 %v1107
          %v1232 = vpop.f32.mrf.mxu0
          %v1233 = vadd.f32 %v1000, %v1232
          %v1234 = vpop.f32.mrf.mxu0
          %v1235 = vadd.f32 %v1002, %v1234
          %1236 = vmatmul.bf16.gmra.mxu0 %v1108
          %v1237 = vpop.f32.mrf.mxu0
          %v1238 = vadd.f32 %v1005, %v1237
          %v1239 = vpop.f32.mrf.mxu0
          %v1240 = vadd.f32 %v1007, %v1239
          %1241 = vmatmul.bf16.gmra.mxu0 %v1109
          %v1242 = vpop.f32.mrf.mxu0
          %v1243 = vadd.f32 %v1010, %v1242
          %v1244 = vpop.f32.mrf.mxu0
          %v1245 = vadd.f32 %v1012, %v1244
          %1246 = vmatmul.bf16.gmra.mxu0 %v1110
          %v1247 = vpop.f32.mrf.mxu0
          %v1248 = vadd.f32 %v1015, %v1247
          %v1249 = vpop.f32.mrf.mxu0
          %v1250 = vadd.f32 %v1017, %v1249
          %1251 = vmatmul.bf16.gmra.mxu0 %v1111
          %v1252 = vpop.f32.mrf.mxu0
          %v1253 = vadd.f32 %v1020, %v1252
          %v1254 = vpop.f32.mrf.mxu0
          %v1255 = vadd.f32 %v1022, %v1254
          %1256 = vmatmul.bf16.gmra.mxu0 %v1112
          %v1257 = vpop.f32.mrf.mxu0
          %v1258 = vadd.f32 %v1025, %v1257
          %v1259 = vpop.f32.mrf.mxu0
          %v1260 = vadd.f32 %v1027, %v1259
          %1261 = vmatmul.bf16.gmra.mxu0 %v1113
          %v1262 = vpop.f32.mrf.mxu0
          %v1263 = vadd.f32 %v1030, %v1262
          %v1264 = vpop.f32.mrf.mxu0
          %v1265 = vadd.f32 %v1032, %v1264
          %1266 = vdwg.mxu0
          %vm1283 = vcmask 1042432
          %vm1284 = vcmask 1046532
          %vm1285 = vmor %vm1283, %vm1284
          %v1286 = vrot.slane %v359, 5
          %v1287 = vrot.slane %v1286, 4
          %v1288 = vrot.slane %v360, 5
          %v1289 = vsel %vm1285, %v1287, %v1288
          %v1290 = vrot.slane %v1288, 4
          %v1291 = vrot.slane %v361, 5
          %v1292 = vsel %vm1285, %v1290, %v1291
          %v1293 = vrot.slane %v362, 5
          %v1294 = vrot.slane %v1293, 4
          %v1295 = vrot.slane %v363, 5
          %v1296 = vsel %vm1285, %v1294, %v1295
          %v1297 = vrot.slane %v1295, 4
          %v1298 = vrot.slane %v364, 5
          %v1299 = vsel %vm1285, %v1297, %v1298
          %v1300 = vrot.slane %v365, 5
          %v1301 = vrot.slane %v1300, 4
          %v1302 = vrot.slane %v366, 5
          %v1303 = vsel %vm1285, %v1301, %v1302
          %v1304 = vrot.slane %v1302, 4
          %v1305 = vrot.slane %v367, 5
          %v1306 = vsel %vm1285, %v1304, %v1305
          %v1307 = vrot.slane %v368, 5
          %v1308 = vrot.slane %v1307, 4
          %v1309 = vrot.slane %v369, 5
          %v1310 = vsel %vm1285, %v1308, %v1309
          %v1311 = vrot.slane %v1309, 4
          %v1312 = vrot.slane %v370, 5
          %v1313 = vsel %vm1285, %v1311, %v1312
          %v1314 = vrot.slane %v371, 5
          %v1315 = vrot.slane %v1314, 4
          %v1316 = vrot.slane %v372, 5
          %v1317 = vsel %vm1285, %v1315, %v1316
          %v1318 = vrot.slane %v1316, 4
          %v1319 = vrot.slane %v373, 5
          %v1320 = vsel %vm1285, %v1318, %v1319
          %v1321 = vrot.slane %v374, 5
          %v1322 = vrot.slane %v1321, 4
          %v1323 = vrot.slane %v375, 5
          %v1324 = vsel %vm1285, %v1322, %v1323
          %v1325 = vrot.slane %v1323, 4
          %v1326 = vrot.slane %v376, 5
          %v1327 = vsel %vm1285, %v1325, %v1326
          %v1328 = vrot.slane %v377, 5
          %v1329 = vrot.slane %v1328, 4
          %v1330 = vrot.slane %v378, 5
          %v1331 = vsel %vm1285, %v1329, %v1330
          %v1332 = vrot.slane %v1330, 4
          %v1333 = vrot.slane %v379, 5
          %v1334 = vsel %vm1285, %v1332, %v1333
          %v1335 = vrot.slane %v380, 5
          %v1336 = vrot.slane %v1335, 4
          %v1337 = vrot.slane %v381, 5
          %v1338 = vsel %vm1285, %v1336, %v1337
          %v1339 = vrot.slane %v1337, 4
          %v1340 = vrot.slane %v382, 5
          %v1341 = vsel %vm1285, %v1339, %v1340
          %v1342 = vrot.slane %v383, 5
          %v1343 = vrot.slane %v1342, 4
          %v1344 = vrot.slane %v384, 5
          %v1345 = vsel %vm1285, %v1343, %v1344
          %v1346 = vrot.slane %v1344, 4
          %v1347 = vrot.slane %v385, 5
          %v1348 = vsel %vm1285, %v1346, %v1347
          %v1349 = vrot.slane %v386, 5
          %v1350 = vrot.slane %v1349, 4
          %v1351 = vrot.slane %v387, 5
          %v1352 = vsel %vm1285, %v1350, %v1351
          %v1353 = vrot.slane %v1351, 4
          %v1354 = vrot.slane %v388, 5
          %v1355 = vsel %vm1285, %v1353, %v1354
          %v1356 = vrot.slane %v389, 5
          %v1357 = vrot.slane %v1356, 4
          %v1358 = vrot.slane %v390, 5
          %v1359 = vsel %vm1285, %v1357, %v1358
          %v1360 = vrot.slane %v1358, 4
          %v1361 = vrot.slane %v391, 5
          %v1362 = vsel %vm1285, %v1360, %v1361
          %v1363 = vrot.slane %v392, 5
          %v1364 = vrot.slane %v1363, 4
          %v1365 = vrot.slane %v393, 5
          %v1366 = vsel %vm1285, %v1364, %v1365
          %v1367 = vrot.slane %v1365, 4
          %v1368 = vrot.slane %v394, 5
          %v1369 = vsel %vm1285, %v1367, %v1368
          %v1370 = vrot.slane %v395, 5
          %v1371 = vrot.slane %v1370, 4
          %v1372 = vrot.slane %v396, 5
          %v1373 = vsel %vm1285, %v1371, %v1372
          %v1374 = vrot.slane %v1372, 4
          %v1375 = vrot.slane %v397, 5
          %v1376 = vsel %vm1285, %v1374, %v1375
          %v1377 = vrot.slane %v398, 5
          %v1378 = vrot.slane %v1377, 4
          %v1379 = vrot.slane %v399, 5
          %v1380 = vsel %vm1285, %v1378, %v1379
          %v1381 = vrot.slane %v1379, 4
          %v1382 = vrot.slane %v400, 5
          %v1383 = vsel %vm1285, %v1381, %v1382
          %v1384 = vrot.slane %v401, 5
          %v1385 = vrot.slane %v1384, 4
          %v1386 = vrot.slane %v402, 5
          %v1387 = vsel %vm1285, %v1385, %v1386
          %v1388 = vrot.slane %v1386, 4
          %v1389 = vrot.slane %v403, 5
          %v1390 = vsel %vm1285, %v1388, %v1389
          %v1391 = vrot.slane %v404, 5
          %v1392 = vrot.slane %v1391, 4
          %v1393 = vrot.slane %v405, 5
          %v1394 = vsel %vm1285, %v1392, %v1393
          %v1395 = vrot.slane %v1393, 4
          %v1396 = vrot.slane %v406, 5
          %v1397 = vsel %vm1285, %v1395, %v1396
          %s1398 = scalar_lea.vmem %s1, 128
          %v1399 = vld [vmem:[%s1398] sm:$0xf]
          %v1400 = vld [vmem:[%s1398 + $0x4] sm:$0xf]
          %v1401 = vld [vmem:[%s1398 + $0x8] sm:$0xf]
          %v1402 = vld [vmem:[%s1398 + $0xc] sm:$0xf]
          %v1403 = vld [vmem:[%s1398 + $0x10] sm:$0xf]
          %v1404 = vld [vmem:[%s1398 + $0x14] sm:$0xf]
          %v1405 = vld [vmem:[%s1398 + $0x18] sm:$0xf]
          %v1406 = vld [vmem:[%s1398 + $0x1c] sm:$0xf]
          %v1407 = vld [vmem:[%s1398 + $0x20] sm:$0xf]
          %v1408 = vld [vmem:[%s1398 + $0x24] sm:$0xf]
          %v1409 = vld [vmem:[%s1398 + $0x28] sm:$0xf]
          %v1410 = vld [vmem:[%s1398 + $0x2c] sm:$0xf]
          %v1411 = vld [vmem:[%s1398 + $0x30] sm:$0xf]
          %v1412 = vld [vmem:[%s1398 + $0x34] sm:$0xf]
          %v1413 = vld [vmem:[%s1398 + $0x38] sm:$0xf]
          %v1414 = vld [vmem:[%s1398 + $0x3c] sm:$0xf]
          %v1415 = vunpack.c.l.b16 %v1289
          %v1416 = vunpack.c.l.b16 %v1292
          %v1417 = vunpack.c.l.b16 %v1296
          %v1418 = vunpack.c.l.b16 %v1299
          %v1419 = vunpack.c.l.b16 %v1303
          %v1420 = vunpack.c.l.b16 %v1306
          %v1421 = vunpack.c.l.b16 %v1310
          %v1422 = vunpack.c.l.b16 %v1313
          %v1423 = vunpack.c.l.b16 %v1317
          %v1424 = vunpack.c.l.b16 %v1320
          %v1425 = vunpack.c.l.b16 %v1324
          %v1426 = vunpack.c.l.b16 %v1327
          %v1427 = vunpack.c.l.b16 %v1331
          %v1428 = vunpack.c.l.b16 %v1334
          %v1429 = vunpack.c.l.b16 %v1338
          %v1430 = vunpack.c.l.b16 %v1341
          %v1431 = vunpack.c.l.b16 %v1345
          %v1432 = vunpack.c.l.b16 %v1348
          %v1433 = vunpack.c.l.b16 %v1352
          %v1434 = vunpack.c.l.b16 %v1355
          %v1435 = vunpack.c.l.b16 %v1359
          %v1436 = vunpack.c.l.b16 %v1362
          %v1437 = vunpack.c.l.b16 %v1366
          %v1438 = vunpack.c.l.b16 %v1369
          %v1439 = vunpack.c.l.b16 %v1373
          %v1440 = vunpack.c.l.b16 %v1376
          %v1441 = vunpack.c.l.b16 %v1380
          %v1442 = vunpack.c.l.b16 %v1383
          %v1443 = vunpack.c.l.b16 %v1387
          %v1444 = vunpack.c.l.b16 %v1390
          %v1445 = vunpack.c.l.b16 %v1394
          %v1446 = vunpack.c.l.b16 %v1397
          %v1447 = vpack.c.b16 %v1416, %v1415
          %v1448 = vpack.c.b16 %v1418, %v1417
          %v1449 = vpack.c.b16 %v1420, %v1419
          %v1450 = vpack.c.b16 %v1422, %v1421
          %v1451 = vpack.c.b16 %v1424, %v1423
          %v1452 = vpack.c.b16 %v1426, %v1425
          %v1453 = vpack.c.b16 %v1428, %v1427
          %v1454 = vpack.c.b16 %v1430, %v1429
          %v1455 = vpack.c.b16 %v1432, %v1431
          %v1456 = vpack.c.b16 %v1434, %v1433
          %v1457 = vpack.c.b16 %v1436, %v1435
          %v1458 = vpack.c.b16 %v1438, %v1437
          %v1459 = vpack.c.b16 %v1440, %v1439
          %v1460 = vpack.c.b16 %v1442, %v1441
          %v1461 = vpack.c.b16 %v1444, %v1443
          %v1462 = vpack.c.b16 %v1446, %v1445
          %v1495 = vunpack.c.l.b16 %v1399
          %v1496 = vunpack.c.l.b16 %v1400
          %v1497 = vunpack.c.l.b16 %v1401
          %v1498 = vunpack.c.l.b16 %v1402
          %v1499 = vunpack.c.l.b16 %v1403
          %v1500 = vunpack.c.l.b16 %v1404
          %v1501 = vunpack.c.l.b16 %v1405
          %v1502 = vunpack.c.l.b16 %v1406
          %v1503 = vunpack.c.l.b16 %v1407
          %v1504 = vunpack.c.l.b16 %v1408
          %v1505 = vunpack.c.l.b16 %v1409
          %v1506 = vunpack.c.l.b16 %v1410
          %v1507 = vunpack.c.l.b16 %v1411
          %v1508 = vunpack.c.l.b16 %v1412
          %v1509 = vunpack.c.l.b16 %v1413
          %v1510 = vunpack.c.l.b16 %v1414
          %v1511 = vpack.c.b16 %v1496, %v1495
          %v1512 = vpack.c.b16 %v1498, %v1497
          %v1513 = vpack.c.b16 %v1500, %v1499
          %v1514 = vpack.c.b16 %v1502, %v1501
          %v1515 = vpack.c.b16 %v1504, %v1503
          %v1516 = vpack.c.b16 %v1506, %v1505
          %v1517 = vpack.c.b16 %v1508, %v1507
          %v1518 = vpack.c.b16 %v1510, %v1509
          %1527 = vmatpush.bf16.msra.mxu0 %v1518
          %1528 = vmatpush.bf16.msra.mxu0 %v1517
          %1529 = vmatpush.bf16.msra.mxu0 %v1516
          %1530 = vmatpush.bf16.msra.mxu0 %v1515
          %1531 = vmatpush.bf16.msra.mxu0 %v1514
          %1532 = vmatpush.bf16.msra.mxu0 %v1513
          %1533 = vmatpush.bf16.msra.mxu0 %v1512
          %1534 = vmatpush.bf16.msra.mxu0 %v1511
          %1535 = vmatmul.bf16.gmra.mxu0 %v1447
          %v1536 = vpop.f32.mrf.mxu0
          %v1537 = vadd.f32 0.0, %v1536
          %v1538 = vpop.f32.mrf.mxu0
          %v1539 = vadd.f32 0.0, %v1538
          %1540 = vmatmul.bf16.gmra.mxu0 %v1448
          %v1541 = vpop.f32.mrf.mxu0
          %v1542 = vadd.f32 0.0, %v1541
          %v1543 = vpop.f32.mrf.mxu0
          %v1544 = vadd.f32 0.0, %v1543
          %1545 = vmatmul.bf16.gmra.mxu0 %v1449
          %v1546 = vpop.f32.mrf.mxu0
          %v1547 = vadd.f32 0.0, %v1546
          %v1548 = vpop.f32.mrf.mxu0
          %v1549 = vadd.f32 0.0, %v1548
          %1550 = vmatmul.bf16.gmra.mxu0 %v1450
          %v1551 = vpop.f32.mrf.mxu0
          %v1552 = vadd.f32 0.0, %v1551
          %v1553 = vpop.f32.mrf.mxu0
          %v1554 = vadd.f32 0.0, %v1553
          %1555 = vmatmul.bf16.gmra.mxu0 %v1451
          %v1556 = vpop.f32.mrf.mxu0
          %v1557 = vadd.f32 0.0, %v1556
          %v1558 = vpop.f32.mrf.mxu0
          %v1559 = vadd.f32 0.0, %v1558
          %1560 = vmatmul.bf16.gmra.mxu0 %v1452
          %v1561 = vpop.f32.mrf.mxu0
          %v1562 = vadd.f32 0.0, %v1561
          %v1563 = vpop.f32.mrf.mxu0
          %v1564 = vadd.f32 0.0, %v1563
          %1565 = vmatmul.bf16.gmra.mxu0 %v1453
          %v1566 = vpop.f32.mrf.mxu0
          %v1567 = vadd.f32 0.0, %v1566
          %v1568 = vpop.f32.mrf.mxu0
          %v1569 = vadd.f32 0.0, %v1568
          %1570 = vmatmul.bf16.gmra.mxu0 %v1454
          %v1571 = vpop.f32.mrf.mxu0
          %v1572 = vadd.f32 0.0, %v1571
          %v1573 = vpop.f32.mrf.mxu0
          %v1574 = vadd.f32 0.0, %v1573
          %1575 = vmatmul.bf16.gmra.mxu0 %v1455
          %v1576 = vpop.f32.mrf.mxu0
          %v1577 = vadd.f32 0.0, %v1576
          %v1578 = vpop.f32.mrf.mxu0
          %v1579 = vadd.f32 0.0, %v1578
          %1580 = vmatmul.bf16.gmra.mxu0 %v1456
          %v1581 = vpop.f32.mrf.mxu0
          %v1582 = vadd.f32 0.0, %v1581
          %v1583 = vpop.f32.mrf.mxu0
          %v1584 = vadd.f32 0.0, %v1583
          %1585 = vmatmul.bf16.gmra.mxu0 %v1457
          %v1586 = vpop.f32.mrf.mxu0
          %v1587 = vadd.f32 0.0, %v1586
          %v1588 = vpop.f32.mrf.mxu0
          %v1589 = vadd.f32 0.0, %v1588
          %1590 = vmatmul.bf16.gmra.mxu0 %v1458
          %v1591 = vpop.f32.mrf.mxu0
          %v1592 = vadd.f32 0.0, %v1591
          %v1593 = vpop.f32.mrf.mxu0
          %v1594 = vadd.f32 0.0, %v1593
          %1595 = vmatmul.bf16.gmra.mxu0 %v1459
          %v1596 = vpop.f32.mrf.mxu0
          %v1597 = vadd.f32 0.0, %v1596
          %v1598 = vpop.f32.mrf.mxu0
          %v1599 = vadd.f32 0.0, %v1598
          %1600 = vmatmul.bf16.gmra.mxu0 %v1460
          %v1601 = vpop.f32.mrf.mxu0
          %v1602 = vadd.f32 0.0, %v1601
          %v1603 = vpop.f32.mrf.mxu0
          %v1604 = vadd.f32 0.0, %v1603
          %1605 = vmatmul.bf16.gmra.mxu0 %v1461
          %v1606 = vpop.f32.mrf.mxu0
          %v1607 = vadd.f32 0.0, %v1606
          %v1608 = vpop.f32.mrf.mxu0
          %v1609 = vadd.f32 0.0, %v1608
          %1610 = vmatmul.bf16.gmra.mxu0 %v1462
          %v1611 = vpop.f32.mrf.mxu0
          %v1612 = vadd.f32 0.0, %v1611
          %v1613 = vpop.f32.mrf.mxu0
          %v1614 = vadd.f32 0.0, %v1613
          %1615 = vdwg.mxu0
          %v1616 = vadd.f32 %v1188, %v1537
          %v1617 = vadd.f32 %v1190, %v1539
          %v1618 = vadd.f32 %v1193, %v1542
          %v1619 = vadd.f32 %v1195, %v1544
          %v1620 = vadd.f32 %v1198, %v1547
          %v1621 = vadd.f32 %v1200, %v1549
          %v1622 = vadd.f32 %v1203, %v1552
          %v1623 = vadd.f32 %v1205, %v1554
          %v1624 = vadd.f32 %v1208, %v1557
          %v1625 = vadd.f32 %v1210, %v1559
          %v1626 = vadd.f32 %v1213, %v1562
          %v1627 = vadd.f32 %v1215, %v1564
          %v1628 = vadd.f32 %v1218, %v1567
          %v1629 = vadd.f32 %v1220, %v1569
          %v1630 = vadd.f32 %v1223, %v1572
          %v1631 = vadd.f32 %v1225, %v1574
          %v1632 = vadd.f32 %v1228, %v1577
          %v1633 = vadd.f32 %v1230, %v1579
          %v1634 = vadd.f32 %v1233, %v1582
          %v1635 = vadd.f32 %v1235, %v1584
          %v1636 = vadd.f32 %v1238, %v1587
          %v1637 = vadd.f32 %v1240, %v1589
          %v1638 = vadd.f32 %v1243, %v1592
          %v1639 = vadd.f32 %v1245, %v1594
          %v1640 = vadd.f32 %v1248, %v1597
          %v1641 = vadd.f32 %v1250, %v1599
          %v1642 = vadd.f32 %v1253, %v1602
          %v1643 = vadd.f32 %v1255, %v1604
          %v1644 = vadd.f32 %v1258, %v1607
          %v1645 = vadd.f32 %v1260, %v1609
          %v1646 = vadd.f32 %v1263, %v1612
          %v1647 = vadd.f32 %v1265, %v1614
          %s1648 = scalar_lea.vmem %s1, 192
          %v1649 = vld [vmem:[%s1648] sm:$0xf]
          %v1650 = vld [vmem:[%s1648 + $0x4] sm:$0xf]
          %v1651 = vld [vmem:[%s1648 + $0x8] sm:$0xf]
          %v1652 = vld [vmem:[%s1648 + $0xc] sm:$0xf]
          %v1653 = vld [vmem:[%s1648 + $0x10] sm:$0xf]
          %v1654 = vld [vmem:[%s1648 + $0x14] sm:$0xf]
          %v1655 = vld [vmem:[%s1648 + $0x18] sm:$0xf]
          %v1656 = vld [vmem:[%s1648 + $0x1c] sm:$0xf]
          %v1657 = vld [vmem:[%s1648 + $0x20] sm:$0xf]
          %v1658 = vld [vmem:[%s1648 + $0x24] sm:$0xf]
          %v1659 = vld [vmem:[%s1648 + $0x28] sm:$0xf]
          %v1660 = vld [vmem:[%s1648 + $0x2c] sm:$0xf]
          %v1661 = vld [vmem:[%s1648 + $0x30] sm:$0xf]
          %v1662 = vld [vmem:[%s1648 + $0x34] sm:$0xf]
          %v1663 = vld [vmem:[%s1648 + $0x38] sm:$0xf]
          %v1664 = vld [vmem:[%s1648 + $0x3c] sm:$0xf]
          %v1667 = vunpack.c.l.b16 %v407
          %v1668 = vunpack.c.l.b16 %v408
          %v1669 = vpack.c.b16 %v1668, %v1667
          %v1687 = vunpack.c.l.b16 %v1649
          %v1688 = vunpack.c.l.b16 %v1650
          %v1689 = vunpack.c.l.b16 %v1651
          %v1690 = vunpack.c.l.b16 %v1652
          %v1691 = vunpack.c.l.b16 %v1653
          %v1692 = vunpack.c.l.b16 %v1654
          %v1693 = vunpack.c.l.b16 %v1655
          %v1694 = vunpack.c.l.b16 %v1656
          %v1695 = vunpack.c.l.b16 %v1657
          %v1696 = vunpack.c.l.b16 %v1658
          %v1697 = vunpack.c.l.b16 %v1659
          %v1698 = vunpack.c.l.b16 %v1660
          %v1699 = vunpack.c.l.b16 %v1661
          %v1700 = vunpack.c.l.b16 %v1662
          %v1701 = vunpack.c.l.b16 %v1663
          %v1702 = vunpack.c.l.b16 %v1664
          %v1703 = vpack.c.b16 %v1688, %v1687
          %v1704 = vpack.c.b16 %v1690, %v1689
          %v1705 = vpack.c.b16 %v1692, %v1691
          %v1706 = vpack.c.b16 %v1694, %v1693
          %v1707 = vpack.c.b16 %v1696, %v1695
          %v1708 = vpack.c.b16 %v1698, %v1697
          %v1709 = vpack.c.b16 %v1700, %v1699
          %v1710 = vpack.c.b16 %v1702, %v1701
          %1719 = vmatpush.bf16.msra.mxu0 %v1710
          %1720 = vmatpush.bf16.msra.mxu0 %v1709
          %1721 = vmatpush.bf16.msra.mxu0 %v1708
          %1722 = vmatpush.bf16.msra.mxu0 %v1707
          %1723 = vmatpush.bf16.msra.mxu0 %v1706
          %1724 = vmatpush.bf16.msra.mxu0 %v1705
          %1725 = vmatpush.bf16.msra.mxu0 %v1704
          %1726 = vmatpush.bf16.msra.mxu0 %v1703
          %1727 = vmatmul.bf16.gmra.mxu0 %v1099
          %v1728 = vpop.f32.mrf.mxu0
          %v1729 = vadd.f32 0.0, %v1728
          %v1730 = vpop.f32.mrf.mxu0
          %v1731 = vadd.f32 0.0, %v1730
          %1732 = vmatmul.bf16.gmra.mxu0 %v1100
          %v1733 = vpop.f32.mrf.mxu0
          %v1734 = vadd.f32 0.0, %v1733
          %v1735 = vpop.f32.mrf.mxu0
          %v1736 = vadd.f32 0.0, %v1735
          %1737 = vmatmul.bf16.gmra.mxu0 %v1101
          %v1738 = vpop.f32.mrf.mxu0
          %v1739 = vadd.f32 0.0, %v1738
          %v1740 = vpop.f32.mrf.mxu0
          %v1741 = vadd.f32 0.0, %v1740
          %1742 = vmatmul.bf16.gmra.mxu0 %v1102
          %v1743 = vpop.f32.mrf.mxu0
          %v1744 = vadd.f32 0.0, %v1743
          %v1745 = vpop.f32.mrf.mxu0
          %v1746 = vadd.f32 0.0, %v1745
          %1747 = vmatmul.bf16.gmra.mxu0 %v1103
          %v1748 = vpop.f32.mrf.mxu0
          %v1749 = vadd.f32 0.0, %v1748
          %v1750 = vpop.f32.mrf.mxu0
          %v1751 = vadd.f32 0.0, %v1750
          %1752 = vmatmul.bf16.gmra.mxu0 %v1104
          %v1753 = vpop.f32.mrf.mxu0
          %v1754 = vadd.f32 0.0, %v1753
          %v1755 = vpop.f32.mrf.mxu0
          %v1756 = vadd.f32 0.0, %v1755
          %1757 = vmatmul.bf16.gmra.mxu0 %v1105
          %v1758 = vpop.f32.mrf.mxu0
          %v1759 = vadd.f32 0.0, %v1758
          %v1760 = vpop.f32.mrf.mxu0
          %v1761 = vadd.f32 0.0, %v1760
          %1762 = vmatmul.bf16.gmra.mxu0 %v1106
          %v1763 = vpop.f32.mrf.mxu0
          %v1764 = vadd.f32 0.0, %v1763
          %v1765 = vpop.f32.mrf.mxu0
          %v1766 = vadd.f32 0.0, %v1765
          %1767 = vmatmul.bf16.gmra.mxu0 %v1107
          %v1768 = vpop.f32.mrf.mxu0
          %v1769 = vadd.f32 0.0, %v1768
          %v1770 = vpop.f32.mrf.mxu0
          %v1771 = vadd.f32 0.0, %v1770
          %1772 = vmatmul.bf16.gmra.mxu0 %v1108
          %v1773 = vpop.f32.mrf.mxu0
          %v1774 = vadd.f32 0.0, %v1773
          %v1775 = vpop.f32.mrf.mxu0
          %v1776 = vadd.f32 0.0, %v1775
          %1777 = vmatmul.bf16.gmra.mxu0 %v1109
          %v1778 = vpop.f32.mrf.mxu0
          %v1779 = vadd.f32 0.0, %v1778
          %v1780 = vpop.f32.mrf.mxu0
          %v1781 = vadd.f32 0.0, %v1780
          %1782 = vmatmul.bf16.gmra.mxu0 %v1110
          %v1783 = vpop.f32.mrf.mxu0
          %v1784 = vadd.f32 0.0, %v1783
          %v1785 = vpop.f32.mrf.mxu0
          %v1786 = vadd.f32 0.0, %v1785
          %1787 = vmatmul.bf16.gmra.mxu0 %v1111
          %v1788 = vpop.f32.mrf.mxu0
          %v1789 = vadd.f32 0.0, %v1788
          %v1790 = vpop.f32.mrf.mxu0
          %v1791 = vadd.f32 0.0, %v1790
          %1792 = vmatmul.bf16.gmra.mxu0 %v1112
          %v1793 = vpop.f32.mrf.mxu0
          %v1794 = vadd.f32 0.0, %v1793
          %v1795 = vpop.f32.mrf.mxu0
          %v1796 = vadd.f32 0.0, %v1795
          %1797 = vmatmul.bf16.gmra.mxu0 %v1113
          %v1798 = vpop.f32.mrf.mxu0
          %v1799 = vadd.f32 0.0, %v1798
          %v1800 = vpop.f32.mrf.mxu0
          %v1801 = vadd.f32 0.0, %v1800
          %1802 = vmatmul.bf16.gmra.mxu0 %v1669
          %v1803 = vpop.f32.mrf.mxu0
          %v1804 = vadd.f32 0.0, %v1803
          %v1805 = vpop.f32.mrf.mxu0
          %v1806 = vadd.f32 0.0, %v1805
          %1807 = vdwg.mxu0
          %v1808 = vadd.f32 %v1616, %v1729
          %v1809 = vadd.f32 %v1617, %v1731
          %v1810 = vadd.f32 %v1618, %v1734
          %v1811 = vadd.f32 %v1619, %v1736
          %v1812 = vadd.f32 %v1620, %v1739
          %v1813 = vadd.f32 %v1621, %v1741
          %v1814 = vadd.f32 %v1622, %v1744
          %v1815 = vadd.f32 %v1623, %v1746
          %v1816 = vadd.f32 %v1624, %v1749
          %v1817 = vadd.f32 %v1625, %v1751
          %v1818 = vadd.f32 %v1626, %v1754
          %v1819 = vadd.f32 %v1627, %v1756
          %v1820 = vadd.f32 %v1628, %v1759
          %v1821 = vadd.f32 %v1629, %v1761
          %v1822 = vadd.f32 %v1630, %v1764
          %v1823 = vadd.f32 %v1631, %v1766
          %v1824 = vadd.f32 %v1632, %v1769
          %v1825 = vadd.f32 %v1633, %v1771
          %v1826 = vadd.f32 %v1634, %v1774
          %v1827 = vadd.f32 %v1635, %v1776
          %v1828 = vadd.f32 %v1636, %v1779
          %v1829 = vadd.f32 %v1637, %v1781
          %v1830 = vadd.f32 %v1638, %v1784
          %v1831 = vadd.f32 %v1639, %v1786
          %v1832 = vadd.f32 %v1640, %v1789
          %v1833 = vadd.f32 %v1641, %v1791
          %v1834 = vadd.f32 %v1642, %v1794
          %v1835 = vadd.f32 %v1643, %v1796
          %v1836 = vadd.f32 %v1644, %v1799
          %v1837 = vadd.f32 %v1645, %v1801
          %v1838 = vadd.f32 %v1646, %v1804
          %v1839 = vadd.f32 %v1647, %v1806
          %v1841 = vshrl.u32 %v407, 16
          %v1843 = vrot.slane %v1841, 4
          %v1844 = vshll.u32 %v407, 16
          %v1846 = vrot.slane %v1844, 5
          %v1847 = vor.u32 %v1843, %v1846
          %v1848 = vrot.slane %v1847, 4
          %v1850 = vshll.u32 %v408, 16
          %v1852 = vrot.slane %v1850, 5
          %v1853 = vsel %vm431, %v1848, %v1852
          %v1854 = vshrl.u32 %v408, 16
          %v1856 = vrot.slane %v1854, 4
          %v1857 = vor.u32 %v1856, %v1852
          %v1858 = vrot.slane %v1857, 4
          %v1860 = vshll.u32 %v409, 16
          %v1862 = vrot.slane %v1860, 5
          %v1863 = vsel %vm431, %v1858, %v1862
          %s1864 = scalar_lea.vmem %s1, 256
          %v1865 = vld [vmem:[%s1864] sm:$0xf]
          %v1866 = vld [vmem:[%s1864 + $0x4] sm:$0xf]
          %v1867 = vld [vmem:[%s1864 + $0x8] sm:$0xf]
          %v1868 = vld [vmem:[%s1864 + $0xc] sm:$0xf]
          %v1869 = vld [vmem:[%s1864 + $0x10] sm:$0xf]
          %v1870 = vld [vmem:[%s1864 + $0x14] sm:$0xf]
          %v1871 = vld [vmem:[%s1864 + $0x18] sm:$0xf]
          %v1872 = vld [vmem:[%s1864 + $0x1c] sm:$0xf]
          %v1873 = vld [vmem:[%s1864 + $0x20] sm:$0xf]
          %v1874 = vld [vmem:[%s1864 + $0x24] sm:$0xf]
          %v1875 = vld [vmem:[%s1864 + $0x28] sm:$0xf]
          %v1876 = vld [vmem:[%s1864 + $0x2c] sm:$0xf]
          %v1877 = vld [vmem:[%s1864 + $0x30] sm:$0xf]
          %v1878 = vld [vmem:[%s1864 + $0x34] sm:$0xf]
          %v1879 = vld [vmem:[%s1864 + $0x38] sm:$0xf]
          %v1880 = vld [vmem:[%s1864 + $0x3c] sm:$0xf]
          %v1881 = vunpack.c.l.b16 %v1853
          %v1882 = vunpack.c.l.b16 %v1863
          %v1883 = vpack.c.b16 %v1882, %v1881
          %v1901 = vunpack.c.l.b16 %v1865
          %v1902 = vunpack.c.l.b16 %v1866
          %v1903 = vunpack.c.l.b16 %v1867
          %v1904 = vunpack.c.l.b16 %v1868
          %v1905 = vunpack.c.l.b16 %v1869
          %v1906 = vunpack.c.l.b16 %v1870
          %v1907 = vunpack.c.l.b16 %v1871
          %v1908 = vunpack.c.l.b16 %v1872
          %v1909 = vunpack.c.l.b16 %v1873
          %v1910 = vunpack.c.l.b16 %v1874
          %v1911 = vunpack.c.l.b16 %v1875
          %v1912 = vunpack.c.l.b16 %v1876
          %v1913 = vunpack.c.l.b16 %v1877
          %v1914 = vunpack.c.l.b16 %v1878
          %v1915 = vunpack.c.l.b16 %v1879
          %v1916 = vunpack.c.l.b16 %v1880
          %v1917 = vpack.c.b16 %v1902, %v1901
          %v1918 = vpack.c.b16 %v1904, %v1903
          %v1919 = vpack.c.b16 %v1906, %v1905
          %v1920 = vpack.c.b16 %v1908, %v1907
          %v1921 = vpack.c.b16 %v1910, %v1909
          %v1922 = vpack.c.b16 %v1912, %v1911
          %v1923 = vpack.c.b16 %v1914, %v1913
          %v1924 = vpack.c.b16 %v1916, %v1915
          %1933 = vmatpush.bf16.msra.mxu0 %v1924
          %1934 = vmatpush.bf16.msra.mxu0 %v1923
          %1935 = vmatpush.bf16.msra.mxu0 %v1922
          %1936 = vmatpush.bf16.msra.mxu0 %v1921
          %1937 = vmatpush.bf16.msra.mxu0 %v1920
          %1938 = vmatpush.bf16.msra.mxu0 %v1919
          %1939 = vmatpush.bf16.msra.mxu0 %v1918
          %1940 = vmatpush.bf16.msra.mxu0 %v1917
          %1941 = vmatmul.bf16.gmra.mxu0 %v866
          %v1942 = vpop.f32.mrf.mxu0
          %v1943 = vadd.f32 0.0, %v1942
          %v1944 = vpop.f32.mrf.mxu0
          %v1945 = vadd.f32 0.0, %v1944
          %1946 = vmatmul.bf16.gmra.mxu0 %v867
          %v1947 = vpop.f32.mrf.mxu0
          %v1948 = vadd.f32 0.0, %v1947
          %v1949 = vpop.f32.mrf.mxu0
          %v1950 = vadd.f32 0.0, %v1949
          %1951 = vmatmul.bf16.gmra.mxu0 %v868
          %v1952 = vpop.f32.mrf.mxu0
          %v1953 = vadd.f32 0.0, %v1952
          %v1954 = vpop.f32.mrf.mxu0
          %v1955 = vadd.f32 0.0, %v1954
          %1956 = vmatmul.bf16.gmra.mxu0 %v869
          %v1957 = vpop.f32.mrf.mxu0
          %v1958 = vadd.f32 0.0, %v1957
          %v1959 = vpop.f32.mrf.mxu0
          %v1960 = vadd.f32 0.0, %v1959
          %1961 = vmatmul.bf16.gmra.mxu0 %v870
          %v1962 = vpop.f32.mrf.mxu0
          %v1963 = vadd.f32 0.0, %v1962
          %v1964 = vpop.f32.mrf.mxu0
          %v1965 = vadd.f32 0.0, %v1964
          %1966 = vmatmul.bf16.gmra.mxu0 %v871
          %v1967 = vpop.f32.mrf.mxu0
          %v1968 = vadd.f32 0.0, %v1967
          %v1969 = vpop.f32.mrf.mxu0
          %v1970 = vadd.f32 0.0, %v1969
          %1971 = vmatmul.bf16.gmra.mxu0 %v872
          %v1972 = vpop.f32.mrf.mxu0
          %v1973 = vadd.f32 0.0, %v1972
          %v1974 = vpop.f32.mrf.mxu0
          %v1975 = vadd.f32 0.0, %v1974
          %1976 = vmatmul.bf16.gmra.mxu0 %v873
          %v1977 = vpop.f32.mrf.mxu0
          %v1978 = vadd.f32 0.0, %v1977
          %v1979 = vpop.f32.mrf.mxu0
          %v1980 = vadd.f32 0.0, %v1979
          %1981 = vmatmul.bf16.gmra.mxu0 %v874
          %v1982 = vpop.f32.mrf.mxu0
          %v1983 = vadd.f32 0.0, %v1982
          %v1984 = vpop.f32.mrf.mxu0
          %v1985 = vadd.f32 0.0, %v1984
          %1986 = vmatmul.bf16.gmra.mxu0 %v875
          %v1987 = vpop.f32.mrf.mxu0
          %v1988 = vadd.f32 0.0, %v1987
          %v1989 = vpop.f32.mrf.mxu0
          %v1990 = vadd.f32 0.0, %v1989
          %1991 = vmatmul.bf16.gmra.mxu0 %v876
          %v1992 = vpop.f32.mrf.mxu0
          %v1993 = vadd.f32 0.0, %v1992
          %v1994 = vpop.f32.mrf.mxu0
          %v1995 = vadd.f32 0.0, %v1994
          %1996 = vmatmul.bf16.gmra.mxu0 %v877
          %v1997 = vpop.f32.mrf.mxu0
          %v1998 = vadd.f32 0.0, %v1997
          %v1999 = vpop.f32.mrf.mxu0
          %v2000 = vadd.f32 0.0, %v1999
          %2001 = vmatmul.bf16.gmra.mxu0 %v878
          %v2002 = vpop.f32.mrf.mxu0
          %v2003 = vadd.f32 0.0, %v2002
          %v2004 = vpop.f32.mrf.mxu0
          %v2005 = vadd.f32 0.0, %v2004
          %2006 = vmatmul.bf16.gmra.mxu0 %v879
          %v2007 = vpop.f32.mrf.mxu0
          %v2008 = vadd.f32 0.0, %v2007
          %v2009 = vpop.f32.mrf.mxu0
          %v2010 = vadd.f32 0.0, %v2009
          %2011 = vmatmul.bf16.gmra.mxu0 %v880
          %v2012 = vpop.f32.mrf.mxu0
          %v2013 = vadd.f32 0.0, %v2012
          %v2014 = vpop.f32.mrf.mxu0
          %v2015 = vadd.f32 0.0, %v2014
          %2016 = vmatmul.bf16.gmra.mxu0 %v1883
          %v2017 = vpop.f32.mrf.mxu0
          %v2018 = vadd.f32 0.0, %v2017
          %v2019 = vpop.f32.mrf.mxu0
          %v2020 = vadd.f32 0.0, %v2019
          %2021 = vdwg.mxu0
          %v2022 = vadd.f32 %v1808, %v1943
          %v2023 = vadd.f32 %v1809, %v1945
          %v2024 = vadd.f32 %v1810, %v1948
          %v2025 = vadd.f32 %v1811, %v1950
          %v2026 = vadd.f32 %v1812, %v1953
          %v2027 = vadd.f32 %v1813, %v1955
          %v2028 = vadd.f32 %v1814, %v1958
          %v2029 = vadd.f32 %v1815, %v1960
          %v2030 = vadd.f32 %v1816, %v1963
          %v2031 = vadd.f32 %v1817, %v1965
          %v2032 = vadd.f32 %v1818, %v1968
          %v2033 = vadd.f32 %v1819, %v1970
          %v2034 = vadd.f32 %v1820, %v1973
          %v2035 = vadd.f32 %v1821, %v1975
          %v2036 = vadd.f32 %v1822, %v1978
          %v2037 = vadd.f32 %v1823, %v1980
          %v2038 = vadd.f32 %v1824, %v1983
          %v2039 = vadd.f32 %v1825, %v1985
          %v2040 = vadd.f32 %v1826, %v1988
          %v2041 = vadd.f32 %v1827, %v1990
          %v2042 = vadd.f32 %v1828, %v1993
          %v2043 = vadd.f32 %v1829, %v1995
          %v2044 = vadd.f32 %v1830, %v1998
          %v2045 = vadd.f32 %v1831, %v2000
          %v2046 = vadd.f32 %v1832, %v2003
          %v2047 = vadd.f32 %v1833, %v2005
          %v2048 = vadd.f32 %v1834, %v2008
          %v2049 = vadd.f32 %v1835, %v2010
          %v2050 = vadd.f32 %v1836, %v2013
          %v2051 = vadd.f32 %v1837, %v2015
          %v2052 = vadd.f32 %v1838, %v2018
          %v2053 = vadd.f32 %v1839, %v2020
          %v2055 = vrot.slane %v407, 5
          %v2056 = vrot.slane %v2055, 4
          %v2057 = vrot.slane %v408, 5
          %v2058 = vsel %vm1285, %v2056, %v2057
          %v2059 = vrot.slane %v2057, 4
          %v2060 = vrot.slane %v409, 5
          %v2061 = vsel %vm1285, %v2059, %v2060
          %s2062 = scalar_lea.vmem %s1, 320
          %v2063 = vld [vmem:[%s2062] sm:$0xf]
          %v2064 = vld [vmem:[%s2062 + $0x4] sm:$0xf]
          %v2065 = vld [vmem:[%s2062 + $0x8] sm:$0xf]
          %v2066 = vld [vmem:[%s2062 + $0xc] sm:$0xf]
          %v2067 = vld [vmem:[%s2062 + $0x10] sm:$0xf]
          %v2068 = vld [vmem:[%s2062 + $0x14] sm:$0xf]
          %v2069 = vld [vmem:[%s2062 + $0x18] sm:$0xf]
          %v2070 = vld [vmem:[%s2062 + $0x1c] sm:$0xf]
          %v2071 = vld [vmem:[%s2062 + $0x20] sm:$0xf]
          %v2072 = vld [vmem:[%s2062 + $0x24] sm:$0xf]
          %v2073 = vld [vmem:[%s2062 + $0x28] sm:$0xf]
          %v2074 = vld [vmem:[%s2062 + $0x2c] sm:$0xf]
          %v2075 = vld [vmem:[%s2062 + $0x30] sm:$0xf]
          %v2076 = vld [vmem:[%s2062 + $0x34] sm:$0xf]
          %v2077 = vld [vmem:[%s2062 + $0x38] sm:$0xf]
          %v2078 = vld [vmem:[%s2062 + $0x3c] sm:$0xf]
          %v2079 = vunpack.c.l.b16 %v2058
          %v2080 = vunpack.c.l.b16 %v2061
          %v2081 = vpack.c.b16 %v2080, %v2079
          %v2099 = vunpack.c.l.b16 %v2063
          %v2100 = vunpack.c.l.b16 %v2064
          %v2101 = vunpack.c.l.b16 %v2065
          %v2102 = vunpack.c.l.b16 %v2066
          %v2103 = vunpack.c.l.b16 %v2067
          %v2104 = vunpack.c.l.b16 %v2068
          %v2105 = vunpack.c.l.b16 %v2069
          %v2106 = vunpack.c.l.b16 %v2070
          %v2107 = vunpack.c.l.b16 %v2071
          %v2108 = vunpack.c.l.b16 %v2072
          %v2109 = vunpack.c.l.b16 %v2073
          %v2110 = vunpack.c.l.b16 %v2074
          %v2111 = vunpack.c.l.b16 %v2075
          %v2112 = vunpack.c.l.b16 %v2076
          %v2113 = vunpack.c.l.b16 %v2077
          %v2114 = vunpack.c.l.b16 %v2078
          %v2115 = vpack.c.b16 %v2100, %v2099
          %v2116 = vpack.c.b16 %v2102, %v2101
          %v2117 = vpack.c.b16 %v2104, %v2103
          %v2118 = vpack.c.b16 %v2106, %v2105
          %v2119 = vpack.c.b16 %v2108, %v2107
          %v2120 = vpack.c.b16 %v2110, %v2109
          %v2121 = vpack.c.b16 %v2112, %v2111
          %v2122 = vpack.c.b16 %v2114, %v2113
          %2131 = vmatpush.bf16.msra.mxu0 %v2122
          %2132 = vmatpush.bf16.msra.mxu0 %v2121
          %2133 = vmatpush.bf16.msra.mxu0 %v2120
          %2134 = vmatpush.bf16.msra.mxu0 %v2119
          %2135 = vmatpush.bf16.msra.mxu0 %v2118
          %2136 = vmatpush.bf16.msra.mxu0 %v2117
          %2137 = vmatpush.bf16.msra.mxu0 %v2116
          %2138 = vmatpush.bf16.msra.mxu0 %v2115
          %2139 = vmatmul.bf16.gmra.mxu0 %v1448
          %v2140 = vpop.f32.mrf.mxu0
          %v2141 = vadd.f32 0.0, %v2140
          %v2142 = vpop.f32.mrf.mxu0
          %v2143 = vadd.f32 0.0, %v2142
          %2144 = vmatmul.bf16.gmra.mxu0 %v1449
          %v2145 = vpop.f32.mrf.mxu0
          %v2146 = vadd.f32 0.0, %v2145
          %v2147 = vpop.f32.mrf.mxu0
          %v2148 = vadd.f32 0.0, %v2147
          %2149 = vmatmul.bf16.gmra.mxu0 %v1450
          %v2150 = vpop.f32.mrf.mxu0
          %v2151 = vadd.f32 0.0, %v2150
          %v2152 = vpop.f32.mrf.mxu0
          %v2153 = vadd.f32 0.0, %v2152
          %2154 = vmatmul.bf16.gmra.mxu0 %v1451
          %v2155 = vpop.f32.mrf.mxu0
          %v2156 = vadd.f32 0.0, %v2155
          %v2157 = vpop.f32.mrf.mxu0
          %v2158 = vadd.f32 0.0, %v2157
          %2159 = vmatmul.bf16.gmra.mxu0 %v1452
          %v2160 = vpop.f32.mrf.mxu0
          %v2161 = vadd.f32 0.0, %v2160
          %v2162 = vpop.f32.mrf.mxu0
          %v2163 = vadd.f32 0.0, %v2162
          %2164 = vmatmul.bf16.gmra.mxu0 %v1453
          %v2165 = vpop.f32.mrf.mxu0
          %v2166 = vadd.f32 0.0, %v2165
          %v2167 = vpop.f32.mrf.mxu0
          %v2168 = vadd.f32 0.0, %v2167
          %2169 = vmatmul.bf16.gmra.mxu0 %v1454
          %v2170 = vpop.f32.mrf.mxu0
          %v2171 = vadd.f32 0.0, %v2170
          %v2172 = vpop.f32.mrf.mxu0
          %v2173 = vadd.f32 0.0, %v2172
          %2174 = vmatmul.bf16.gmra.mxu0 %v1455
          %v2175 = vpop.f32.mrf.mxu0
          %v2176 = vadd.f32 0.0, %v2175
          %v2177 = vpop.f32.mrf.mxu0
          %v2178 = vadd.f32 0.0, %v2177
          %2179 = vmatmul.bf16.gmra.mxu0 %v1456
          %v2180 = vpop.f32.mrf.mxu0
          %v2181 = vadd.f32 0.0, %v2180
          %v2182 = vpop.f32.mrf.mxu0
          %v2183 = vadd.f32 0.0, %v2182
          %2184 = vmatmul.bf16.gmra.mxu0 %v1457
          %v2185 = vpop.f32.mrf.mxu0
          %v2186 = vadd.f32 0.0, %v2185
          %v2187 = vpop.f32.mrf.mxu0
          %v2188 = vadd.f32 0.0, %v2187
          %2189 = vmatmul.bf16.gmra.mxu0 %v1458
          %v2190 = vpop.f32.mrf.mxu0
          %v2191 = vadd.f32 0.0, %v2190
          %v2192 = vpop.f32.mrf.mxu0
          %v2193 = vadd.f32 0.0, %v2192
          %2194 = vmatmul.bf16.gmra.mxu0 %v1459
          %v2195 = vpop.f32.mrf.mxu0
          %v2196 = vadd.f32 0.0, %v2195
          %v2197 = vpop.f32.mrf.mxu0
          %v2198 = vadd.f32 0.0, %v2197
          %2199 = vmatmul.bf16.gmra.mxu0 %v1460
          %v2200 = vpop.f32.mrf.mxu0
          %v2201 = vadd.f32 0.0, %v2200
          %v2202 = vpop.f32.mrf.mxu0
          %v2203 = vadd.f32 0.0, %v2202
          %2204 = vmatmul.bf16.gmra.mxu0 %v1461
          %v2205 = vpop.f32.mrf.mxu0
          %v2206 = vadd.f32 0.0, %v2205
          %v2207 = vpop.f32.mrf.mxu0
          %v2208 = vadd.f32 0.0, %v2207
          %2209 = vmatmul.bf16.gmra.mxu0 %v1462
          %v2210 = vpop.f32.mrf.mxu0
          %v2211 = vadd.f32 0.0, %v2210
          %v2212 = vpop.f32.mrf.mxu0
          %v2213 = vadd.f32 0.0, %v2212
          %2214 = vmatmul.bf16.gmra.mxu0 %v2081
          %v2215 = vpop.f32.mrf.mxu0
          %v2216 = vadd.f32 0.0, %v2215
          %v2217 = vpop.f32.mrf.mxu0
          %v2218 = vadd.f32 0.0, %v2217
          %2219 = vdwg.mxu0
          %v2220 = vadd.f32 %v2022, %v2141
          %v2221 = vadd.f32 %v2023, %v2143
          %v2222 = vadd.f32 %v2024, %v2146
          %v2223 = vadd.f32 %v2025, %v2148
          %v2224 = vadd.f32 %v2026, %v2151
          %v2225 = vadd.f32 %v2027, %v2153
          %v2226 = vadd.f32 %v2028, %v2156
          %v2227 = vadd.f32 %v2029, %v2158
          %v2228 = vadd.f32 %v2030, %v2161
          %v2229 = vadd.f32 %v2031, %v2163
          %v2230 = vadd.f32 %v2032, %v2166
          %v2231 = vadd.f32 %v2033, %v2168
          %v2232 = vadd.f32 %v2034, %v2171
          %v2233 = vadd.f32 %v2035, %v2173
          %v2234 = vadd.f32 %v2036, %v2176
          %v2235 = vadd.f32 %v2037, %v2178
          %v2236 = vadd.f32 %v2038, %v2181
          %v2237 = vadd.f32 %v2039, %v2183
          %v2238 = vadd.f32 %v2040, %v2186
          %v2239 = vadd.f32 %v2041, %v2188
          %v2240 = vadd.f32 %v2042, %v2191
          %v2241 = vadd.f32 %v2043, %v2193
          %v2242 = vadd.f32 %v2044, %v2196
          %v2243 = vadd.f32 %v2045, %v2198
          %v2244 = vadd.f32 %v2046, %v2201
          %v2245 = vadd.f32 %v2047, %v2203
          %v2246 = vadd.f32 %v2048, %v2206
          %v2247 = vadd.f32 %v2049, %v2208
          %v2248 = vadd.f32 %v2050, %v2211
          %v2249 = vadd.f32 %v2051, %v2213
          %v2250 = vadd.f32 %v2052, %v2216
          %v2251 = vadd.f32 %v2053, %v2218
          %s2252 = scalar_lea.vmem %s1, 384
          %v2253 = vld [vmem:[%s2252] sm:$0xf]
          %v2254 = vld [vmem:[%s2252 + $0x4] sm:$0xf]
          %v2255 = vld [vmem:[%s2252 + $0x8] sm:$0xf]
          %v2256 = vld [vmem:[%s2252 + $0xc] sm:$0xf]
          %v2257 = vld [vmem:[%s2252 + $0x10] sm:$0xf]
          %v2258 = vld [vmem:[%s2252 + $0x14] sm:$0xf]
          %v2259 = vld [vmem:[%s2252 + $0x18] sm:$0xf]
          %v2260 = vld [vmem:[%s2252 + $0x1c] sm:$0xf]
          %v2261 = vld [vmem:[%s2252 + $0x20] sm:$0xf]
          %v2262 = vld [vmem:[%s2252 + $0x24] sm:$0xf]
          %v2263 = vld [vmem:[%s2252 + $0x28] sm:$0xf]
          %v2264 = vld [vmem:[%s2252 + $0x2c] sm:$0xf]
          %v2265 = vld [vmem:[%s2252 + $0x30] sm:$0xf]
          %v2266 = vld [vmem:[%s2252 + $0x34] sm:$0xf]
          %v2267 = vld [vmem:[%s2252 + $0x38] sm:$0xf]
          %v2268 = vld [vmem:[%s2252 + $0x3c] sm:$0xf]
          %v2271 = vunpack.c.l.b16 %v410
          %v2272 = vunpack.c.l.b16 %v411
          %v2273 = vpack.c.b16 %v2272, %v2271
          %v2291 = vunpack.c.l.b16 %v2253
          %v2292 = vunpack.c.l.b16 %v2254
          %v2293 = vunpack.c.l.b16 %v2255
          %v2294 = vunpack.c.l.b16 %v2256
          %v2295 = vunpack.c.l.b16 %v2257
          %v2296 = vunpack.c.l.b16 %v2258
          %v2297 = vunpack.c.l.b16 %v2259
          %v2298 = vunpack.c.l.b16 %v2260
          %v2299 = vunpack.c.l.b16 %v2261
          %v2300 = vunpack.c.l.b16 %v2262
          %v2301 = vunpack.c.l.b16 %v2263
          %v2302 = vunpack.c.l.b16 %v2264
          %v2303 = vunpack.c.l.b16 %v2265
          %v2304 = vunpack.c.l.b16 %v2266
          %v2305 = vunpack.c.l.b16 %v2267
          %v2306 = vunpack.c.l.b16 %v2268
          %v2307 = vpack.c.b16 %v2292, %v2291
          %v2308 = vpack.c.b16 %v2294, %v2293
          %v2309 = vpack.c.b16 %v2296, %v2295
          %v2310 = vpack.c.b16 %v2298, %v2297
          %v2311 = vpack.c.b16 %v2300, %v2299
          %v2312 = vpack.c.b16 %v2302, %v2301
          %v2313 = vpack.c.b16 %v2304, %v2303
          %v2314 = vpack.c.b16 %v2306, %v2305
          %2323 = vmatpush.bf16.msra.mxu0 %v2314
          %2324 = vmatpush.bf16.msra.mxu0 %v2313
          %2325 = vmatpush.bf16.msra.mxu0 %v2312
          %2326 = vmatpush.bf16.msra.mxu0 %v2311
          %2327 = vmatpush.bf16.msra.mxu0 %v2310
          %2328 = vmatpush.bf16.msra.mxu0 %v2309
          %2329 = vmatpush.bf16.msra.mxu0 %v2308
          %2330 = vmatpush.bf16.msra.mxu0 %v2307
          %2331 = vmatmul.bf16.gmra.mxu0 %v1100
          %v2332 = vpop.f32.mrf.mxu0
          %v2333 = vadd.f32 0.0, %v2332
          %v2334 = vpop.f32.mrf.mxu0
          %v2335 = vadd.f32 0.0, %v2334
          %2336 = vmatmul.bf16.gmra.mxu0 %v1101
          %v2337 = vpop.f32.mrf.mxu0
          %v2338 = vadd.f32 0.0, %v2337
          %v2339 = vpop.f32.mrf.mxu0
          %v2340 = vadd.f32 0.0, %v2339
          %2341 = vmatmul.bf16.gmra.mxu0 %v1102
          %v2342 = vpop.f32.mrf.mxu0
          %v2343 = vadd.f32 0.0, %v2342
          %v2344 = vpop.f32.mrf.mxu0
          %v2345 = vadd.f32 0.0, %v2344
          %2346 = vmatmul.bf16.gmra.mxu0 %v1103
          %v2347 = vpop.f32.mrf.mxu0
          %v2348 = vadd.f32 0.0, %v2347
          %v2349 = vpop.f32.mrf.mxu0
          %v2350 = vadd.f32 0.0, %v2349
          %2351 = vmatmul.bf16.gmra.mxu0 %v1104
          %v2352 = vpop.f32.mrf.mxu0
          %v2353 = vadd.f32 0.0, %v2352
          %v2354 = vpop.f32.mrf.mxu0
          %v2355 = vadd.f32 0.0, %v2354
          %2356 = vmatmul.bf16.gmra.mxu0 %v1105
          %v2357 = vpop.f32.mrf.mxu0
          %v2358 = vadd.f32 0.0, %v2357
          %v2359 = vpop.f32.mrf.mxu0
          %v2360 = vadd.f32 0.0, %v2359
          %2361 = vmatmul.bf16.gmra.mxu0 %v1106
          %v2362 = vpop.f32.mrf.mxu0
          %v2363 = vadd.f32 0.0, %v2362
          %v2364 = vpop.f32.mrf.mxu0
          %v2365 = vadd.f32 0.0, %v2364
          %2366 = vmatmul.bf16.gmra.mxu0 %v1107
          %v2367 = vpop.f32.mrf.mxu0
          %v2368 = vadd.f32 0.0, %v2367
          %v2369 = vpop.f32.mrf.mxu0
          %v2370 = vadd.f32 0.0, %v2369
          %2371 = vmatmul.bf16.gmra.mxu0 %v1108
          %v2372 = vpop.f32.mrf.mxu0
          %v2373 = vadd.f32 0.0, %v2372
          %v2374 = vpop.f32.mrf.mxu0
          %v2375 = vadd.f32 0.0, %v2374
          %2376 = vmatmul.bf16.gmra.mxu0 %v1109
          %v2377 = vpop.f32.mrf.mxu0
          %v2378 = vadd.f32 0.0, %v2377
          %v2379 = vpop.f32.mrf.mxu0
          %v2380 = vadd.f32 0.0, %v2379
          %2381 = vmatmul.bf16.gmra.mxu0 %v1110
          %v2382 = vpop.f32.mrf.mxu0
          %v2383 = vadd.f32 0.0, %v2382
          %v2384 = vpop.f32.mrf.mxu0
          %v2385 = vadd.f32 0.0, %v2384
          %2386 = vmatmul.bf16.gmra.mxu0 %v1111
          %v2387 = vpop.f32.mrf.mxu0
          %v2388 = vadd.f32 0.0, %v2387
          %v2389 = vpop.f32.mrf.mxu0
          %v2390 = vadd.f32 0.0, %v2389
          %2391 = vmatmul.bf16.gmra.mxu0 %v1112
          %v2392 = vpop.f32.mrf.mxu0
          %v2393 = vadd.f32 0.0, %v2392
          %v2394 = vpop.f32.mrf.mxu0
          %v2395 = vadd.f32 0.0, %v2394
          %2396 = vmatmul.bf16.gmra.mxu0 %v1113
          %v2397 = vpop.f32.mrf.mxu0
          %v2398 = vadd.f32 0.0, %v2397
          %v2399 = vpop.f32.mrf.mxu0
          %v2400 = vadd.f32 0.0, %v2399
          %2401 = vmatmul.bf16.gmra.mxu0 %v1669
          %v2402 = vpop.f32.mrf.mxu0
          %v2403 = vadd.f32 0.0, %v2402
          %v2404 = vpop.f32.mrf.mxu0
          %v2405 = vadd.f32 0.0, %v2404
          %2406 = vmatmul.bf16.gmra.mxu0 %v2273
          %v2407 = vpop.f32.mrf.mxu0
          %v2408 = vadd.f32 0.0, %v2407
          %v2409 = vpop.f32.mrf.mxu0
          %v2410 = vadd.f32 0.0, %v2409
          %2411 = vdwg.mxu0
          %v2412 = vadd.f32 %v2220, %v2333
          %v2413 = vadd.f32 %v2221, %v2335
          %v2414 = vadd.f32 %v2222, %v2338
          %v2415 = vadd.f32 %v2223, %v2340
          %v2416 = vadd.f32 %v2224, %v2343
          %v2417 = vadd.f32 %v2225, %v2345
          %v2418 = vadd.f32 %v2226, %v2348
          %v2419 = vadd.f32 %v2227, %v2350
          %v2420 = vadd.f32 %v2228, %v2353
          %v2421 = vadd.f32 %v2229, %v2355
          %v2422 = vadd.f32 %v2230, %v2358
          %v2423 = vadd.f32 %v2231, %v2360
          %v2424 = vadd.f32 %v2232, %v2363
          %v2425 = vadd.f32 %v2233, %v2365
          %v2426 = vadd.f32 %v2234, %v2368
          %v2427 = vadd.f32 %v2235, %v2370
          %v2428 = vadd.f32 %v2236, %v2373
          %v2429 = vadd.f32 %v2237, %v2375
          %v2430 = vadd.f32 %v2238, %v2378
          %v2431 = vadd.f32 %v2239, %v2380
          %v2432 = vadd.f32 %v2240, %v2383
          %v2433 = vadd.f32 %v2241, %v2385
          %v2434 = vadd.f32 %v2242, %v2388
          %v2435 = vadd.f32 %v2243, %v2390
          %v2436 = vadd.f32 %v2244, %v2393
          %v2437 = vadd.f32 %v2245, %v2395
          %v2438 = vadd.f32 %v2246, %v2398
          %v2439 = vadd.f32 %v2247, %v2400
          %v2440 = vadd.f32 %v2248, %v2403
          %v2441 = vadd.f32 %v2249, %v2405
          %v2442 = vadd.f32 %v2250, %v2408
          %v2443 = vadd.f32 %v2251, %v2410
          %v2445 = vshrl.u32 %v410, 16
          %v2447 = vrot.slane %v2445, 4
          %v2448 = vshll.u32 %v410, 16
          %v2450 = vrot.slane %v2448, 5
          %v2451 = vor.u32 %v2447, %v2450
          %v2452 = vrot.slane %v2451, 4
          %v2454 = vshll.u32 %v411, 16
          %v2456 = vrot.slane %v2454, 5
          %v2457 = vsel %vm431, %v2452, %v2456
          %v2458 = vshrl.u32 %v411, 16
          %v2460 = vrot.slane %v2458, 4
          %v2461 = vor.u32 %v2460, %v2456
          %v2462 = vrot.slane %v2461, 4
          %v2464 = vshll.u32 %v412, 16
          %v2466 = vrot.slane %v2464, 5
          %v2467 = vsel %vm431, %v2462, %v2466
          %s2468 = scalar_lea.vmem %s1, 448
          %v2469 = vld [vmem:[%s2468] sm:$0xf]
          %v2470 = vld [vmem:[%s2468 + $0x4] sm:$0xf]
          %v2471 = vld [vmem:[%s2468 + $0x8] sm:$0xf]
          %v2472 = vld [vmem:[%s2468 + $0xc] sm:$0xf]
          %v2473 = vld [vmem:[%s2468 + $0x10] sm:$0xf]
          %v2474 = vld [vmem:[%s2468 + $0x14] sm:$0xf]
          %v2475 = vld [vmem:[%s2468 + $0x18] sm:$0xf]
          %v2476 = vld [vmem:[%s2468 + $0x1c] sm:$0xf]
          %v2477 = vld [vmem:[%s2468 + $0x20] sm:$0xf]
          %v2478 = vld [vmem:[%s2468 + $0x24] sm:$0xf]
          %v2479 = vld [vmem:[%s2468 + $0x28] sm:$0xf]
          %v2480 = vld [vmem:[%s2468 + $0x2c] sm:$0xf]
          %v2481 = vld [vmem:[%s2468 + $0x30] sm:$0xf]
          %v2482 = vld [vmem:[%s2468 + $0x34] sm:$0xf]
          %v2483 = vld [vmem:[%s2468 + $0x38] sm:$0xf]
          %v2484 = vld [vmem:[%s2468 + $0x3c] sm:$0xf]
          %v2485 = vunpack.c.l.b16 %v2457
          %v2486 = vunpack.c.l.b16 %v2467
          %v2487 = vpack.c.b16 %v2486, %v2485
          %v2505 = vunpack.c.l.b16 %v2469
          %v2506 = vunpack.c.l.b16 %v2470
          %v2507 = vunpack.c.l.b16 %v2471
          %v2508 = vunpack.c.l.b16 %v2472
          %v2509 = vunpack.c.l.b16 %v2473
          %v2510 = vunpack.c.l.b16 %v2474
          %v2511 = vunpack.c.l.b16 %v2475
          %v2512 = vunpack.c.l.b16 %v2476
          %v2513 = vunpack.c.l.b16 %v2477
          %v2514 = vunpack.c.l.b16 %v2478
          %v2515 = vunpack.c.l.b16 %v2479
          %v2516 = vunpack.c.l.b16 %v2480
          %v2517 = vunpack.c.l.b16 %v2481
          %v2518 = vunpack.c.l.b16 %v2482
          %v2519 = vunpack.c.l.b16 %v2483
          %v2520 = vunpack.c.l.b16 %v2484
          %v2521 = vpack.c.b16 %v2506, %v2505
          %v2522 = vpack.c.b16 %v2508, %v2507
          %v2523 = vpack.c.b16 %v2510, %v2509
          %v2524 = vpack.c.b16 %v2512, %v2511
          %v2525 = vpack.c.b16 %v2514, %v2513
          %v2526 = vpack.c.b16 %v2516, %v2515
          %v2527 = vpack.c.b16 %v2518, %v2517
          %v2528 = vpack.c.b16 %v2520, %v2519
          %2537 = vmatpush.bf16.msra.mxu0 %v2528
          %2538 = vmatpush.bf16.msra.mxu0 %v2527
          %2539 = vmatpush.bf16.msra.mxu0 %v2526
          %2540 = vmatpush.bf16.msra.mxu0 %v2525
          %2541 = vmatpush.bf16.msra.mxu0 %v2524
          %2542 = vmatpush.bf16.msra.mxu0 %v2523
          %2543 = vmatpush.bf16.msra.mxu0 %v2522
          %2544 = vmatpush.bf16.msra.mxu0 %v2521
          %2545 = vmatmul.bf16.gmra.mxu0 %v867
          %v2546 = vpop.f32.mrf.mxu0
          %v2547 = vadd.f32 0.0, %v2546
          %v2548 = vpop.f32.mrf.mxu0
          %v2549 = vadd.f32 0.0, %v2548
          %2550 = vmatmul.bf16.gmra.mxu0 %v868
          %v2551 = vpop.f32.mrf.mxu0
          %v2552 = vadd.f32 0.0, %v2551
          %v2553 = vpop.f32.mrf.mxu0
          %v2554 = vadd.f32 0.0, %v2553
          %2555 = vmatmul.bf16.gmra.mxu0 %v869
          %v2556 = vpop.f32.mrf.mxu0
          %v2557 = vadd.f32 0.0, %v2556
          %v2558 = vpop.f32.mrf.mxu0
          %v2559 = vadd.f32 0.0, %v2558
          %2560 = vmatmul.bf16.gmra.mxu0 %v870
          %v2561 = vpop.f32.mrf.mxu0
          %v2562 = vadd.f32 0.0, %v2561
          %v2563 = vpop.f32.mrf.mxu0
          %v2564 = vadd.f32 0.0, %v2563
          %2565 = vmatmul.bf16.gmra.mxu0 %v871
          %v2566 = vpop.f32.mrf.mxu0
          %v2567 = vadd.f32 0.0, %v2566
          %v2568 = vpop.f32.mrf.mxu0
          %v2569 = vadd.f32 0.0, %v2568
          %2570 = vmatmul.bf16.gmra.mxu0 %v872
          %v2571 = vpop.f32.mrf.mxu0
          %v2572 = vadd.f32 0.0, %v2571
          %v2573 = vpop.f32.mrf.mxu0
          %v2574 = vadd.f32 0.0, %v2573
          %2575 = vmatmul.bf16.gmra.mxu0 %v873
          %v2576 = vpop.f32.mrf.mxu0
          %v2577 = vadd.f32 0.0, %v2576
          %v2578 = vpop.f32.mrf.mxu0
          %v2579 = vadd.f32 0.0, %v2578
          %2580 = vmatmul.bf16.gmra.mxu0 %v874
          %v2581 = vpop.f32.mrf.mxu0
          %v2582 = vadd.f32 0.0, %v2581
          %v2583 = vpop.f32.mrf.mxu0
          %v2584 = vadd.f32 0.0, %v2583
          %2585 = vmatmul.bf16.gmra.mxu0 %v875
          %v2586 = vpop.f32.mrf.mxu0
          %v2587 = vadd.f32 0.0, %v2586
          %v2588 = vpop.f32.mrf.mxu0
          %v2589 = vadd.f32 0.0, %v2588
          %2590 = vmatmul.bf16.gmra.mxu0 %v876
          %v2591 = vpop.f32.mrf.mxu0
          %v2592 = vadd.f32 0.0, %v2591
          %v2593 = vpop.f32.mrf.mxu0
          %v2594 = vadd.f32 0.0, %v2593
          %2595 = vmatmul.bf16.gmra.mxu0 %v877
          %v2596 = vpop.f32.mrf.mxu0
          %v2597 = vadd.f32 0.0, %v2596
          %v2598 = vpop.f32.mrf.mxu0
          %v2599 = vadd.f32 0.0, %v2598
          %2600 = vmatmul.bf16.gmra.mxu0 %v878
          %v2601 = vpop.f32.mrf.mxu0
          %v2602 = vadd.f32 0.0, %v2601
          %v2603 = vpop.f32.mrf.mxu0
          %v2604 = vadd.f32 0.0, %v2603
          %2605 = vmatmul.bf16.gmra.mxu0 %v879
          %v2606 = vpop.f32.mrf.mxu0
          %v2607 = vadd.f32 0.0, %v2606
          %v2608 = vpop.f32.mrf.mxu0
          %v2609 = vadd.f32 0.0, %v2608
          %2610 = vmatmul.bf16.gmra.mxu0 %v880
          %v2611 = vpop.f32.mrf.mxu0
          %v2612 = vadd.f32 0.0, %v2611
          %v2613 = vpop.f32.mrf.mxu0
          %v2614 = vadd.f32 0.0, %v2613
          %2615 = vmatmul.bf16.gmra.mxu0 %v1883
          %v2616 = vpop.f32.mrf.mxu0
          %v2617 = vadd.f32 0.0, %v2616
          %v2618 = vpop.f32.mrf.mxu0
          %v2619 = vadd.f32 0.0, %v2618
          %2620 = vmatmul.bf16.gmra.mxu0 %v2487
          %v2621 = vpop.f32.mrf.mxu0
          %v2622 = vadd.f32 0.0, %v2621
          %v2623 = vpop.f32.mrf.mxu0
          %v2624 = vadd.f32 0.0, %v2623
          %2625 = vdwg.mxu0
          %v2626 = vadd.f32 %v2412, %v2547
          %v2627 = vadd.f32 %v2413, %v2549
          %v2628 = vadd.f32 %v2414, %v2552
          %v2629 = vadd.f32 %v2415, %v2554
          %v2630 = vadd.f32 %v2416, %v2557
          %v2631 = vadd.f32 %v2417, %v2559
          %v2632 = vadd.f32 %v2418, %v2562
          %v2633 = vadd.f32 %v2419, %v2564
          %v2634 = vadd.f32 %v2420, %v2567
          %v2635 = vadd.f32 %v2421, %v2569
          %v2636 = vadd.f32 %v2422, %v2572
          %v2637 = vadd.f32 %v2423, %v2574
          %v2638 = vadd.f32 %v2424, %v2577
          %v2639 = vadd.f32 %v2425, %v2579
          %v2640 = vadd.f32 %v2426, %v2582
          %v2641 = vadd.f32 %v2427, %v2584
          %v2642 = vadd.f32 %v2428, %v2587
          %v2643 = vadd.f32 %v2429, %v2589
          %v2644 = vadd.f32 %v2430, %v2592
          %v2645 = vadd.f32 %v2431, %v2594
          %v2646 = vadd.f32 %v2432, %v2597
          %v2647 = vadd.f32 %v2433, %v2599
          %v2648 = vadd.f32 %v2434, %v2602
          %v2649 = vadd.f32 %v2435, %v2604
          %v2650 = vadd.f32 %v2436, %v2607
          %v2651 = vadd.f32 %v2437, %v2609
          %v2652 = vadd.f32 %v2438, %v2612
          %v2653 = vadd.f32 %v2439, %v2614
          %v2654 = vadd.f32 %v2440, %v2617
          %v2655 = vadd.f32 %v2441, %v2619
          %v2656 = vadd.f32 %v2442, %v2622
          %v2657 = vadd.f32 %v2443, %v2624
          %v2659 = vrot.slane %v410, 5
          %v2660 = vrot.slane %v2659, 4
          %v2661 = vrot.slane %v411, 5
          %v2662 = vsel %vm1285, %v2660, %v2661
          %v2663 = vrot.slane %v2661, 4
          %v2664 = vrot.slane %v412, 5
          %v2665 = vsel %vm1285, %v2663, %v2664
          %s2666 = scalar_lea.vmem %s1, 512
          %v2667 = vld [vmem:[%s2666] sm:$0xf]
          %v2668 = vld [vmem:[%s2666 + $0x4] sm:$0xf]
          %v2669 = vld [vmem:[%s2666 + $0x8] sm:$0xf]
          %v2670 = vld [vmem:[%s2666 + $0xc] sm:$0xf]
          %v2671 = vld [vmem:[%s2666 + $0x10] sm:$0xf]
          %v2672 = vld [vmem:[%s2666 + $0x14] sm:$0xf]
          %v2673 = vld [vmem:[%s2666 + $0x18] sm:$0xf]
          %v2674 = vld [vmem:[%s2666 + $0x1c] sm:$0xf]
          %v2675 = vld [vmem:[%s2666 + $0x20] sm:$0xf]
          %v2676 = vld [vmem:[%s2666 + $0x24] sm:$0xf]
          %v2677 = vld [vmem:[%s2666 + $0x28] sm:$0xf]
          %v2678 = vld [vmem:[%s2666 + $0x2c] sm:$0xf]
          %v2679 = vld [vmem:[%s2666 + $0x30] sm:$0xf]
          %v2680 = vld [vmem:[%s2666 + $0x34] sm:$0xf]
          %v2681 = vld [vmem:[%s2666 + $0x38] sm:$0xf]
          %v2682 = vld [vmem:[%s2666 + $0x3c] sm:$0xf]
          %v2683 = vunpack.c.l.b16 %v2662
          %v2684 = vunpack.c.l.b16 %v2665
          %v2685 = vpack.c.b16 %v2684, %v2683
          %v2703 = vunpack.c.l.b16 %v2667
          %v2704 = vunpack.c.l.b16 %v2668
          %v2705 = vunpack.c.l.b16 %v2669
          %v2706 = vunpack.c.l.b16 %v2670
          %v2707 = vunpack.c.l.b16 %v2671
          %v2708 = vunpack.c.l.b16 %v2672
          %v2709 = vunpack.c.l.b16 %v2673
          %v2710 = vunpack.c.l.b16 %v2674
          %v2711 = vunpack.c.l.b16 %v2675
          %v2712 = vunpack.c.l.b16 %v2676
          %v2713 = vunpack.c.l.b16 %v2677
          %v2714 = vunpack.c.l.b16 %v2678
          %v2715 = vunpack.c.l.b16 %v2679
          %v2716 = vunpack.c.l.b16 %v2680
          %v2717 = vunpack.c.l.b16 %v2681
          %v2718 = vunpack.c.l.b16 %v2682
          %v2719 = vpack.c.b16 %v2704, %v2703
          %v2720 = vpack.c.b16 %v2706, %v2705
          %v2721 = vpack.c.b16 %v2708, %v2707
          %v2722 = vpack.c.b16 %v2710, %v2709
          %v2723 = vpack.c.b16 %v2712, %v2711
          %v2724 = vpack.c.b16 %v2714, %v2713
          %v2725 = vpack.c.b16 %v2716, %v2715
          %v2726 = vpack.c.b16 %v2718, %v2717
          %2735 = vmatpush.bf16.msra.mxu0 %v2726
          %2736 = vmatpush.bf16.msra.mxu0 %v2725
          %2737 = vmatpush.bf16.msra.mxu0 %v2724
          %2738 = vmatpush.bf16.msra.mxu0 %v2723
          %2739 = vmatpush.bf16.msra.mxu0 %v2722
          %2740 = vmatpush.bf16.msra.mxu0 %v2721
          %2741 = vmatpush.bf16.msra.mxu0 %v2720
          %2742 = vmatpush.bf16.msra.mxu0 %v2719
          %2743 = vmatmul.bf16.gmra.mxu0 %v1449
          %v2744 = vpop.f32.mrf.mxu0
          %v2745 = vadd.f32 0.0, %v2744
          %v2746 = vpop.f32.mrf.mxu0
          %v2747 = vadd.f32 0.0, %v2746
          %2748 = vmatmul.bf16.gmra.mxu0 %v1450
          %v2749 = vpop.f32.mrf.mxu0
          %v2750 = vadd.f32 0.0, %v2749
          %v2751 = vpop.f32.mrf.mxu0
          %v2752 = vadd.f32 0.0, %v2751
          %2753 = vmatmul.bf16.gmra.mxu0 %v1451
          %v2754 = vpop.f32.mrf.mxu0
          %v2755 = vadd.f32 0.0, %v2754
          %v2756 = vpop.f32.mrf.mxu0
          %v2757 = vadd.f32 0.0, %v2756
          %2758 = vmatmul.bf16.gmra.mxu0 %v1452
          %v2759 = vpop.f32.mrf.mxu0
          %v2760 = vadd.f32 0.0, %v2759
          %v2761 = vpop.f32.mrf.mxu0
          %v2762 = vadd.f32 0.0, %v2761
          %2763 = vmatmul.bf16.gmra.mxu0 %v1453
          %v2764 = vpop.f32.mrf.mxu0
          %v2765 = vadd.f32 0.0, %v2764
          %v2766 = vpop.f32.mrf.mxu0
          %v2767 = vadd.f32 0.0, %v2766
          %2768 = vmatmul.bf16.gmra.mxu0 %v1454
          %v2769 = vpop.f32.mrf.mxu0
          %v2770 = vadd.f32 0.0, %v2769
          %v2771 = vpop.f32.mrf.mxu0
          %v2772 = vadd.f32 0.0, %v2771
          %2773 = vmatmul.bf16.gmra.mxu0 %v1455
          %v2774 = vpop.f32.mrf.mxu0
          %v2775 = vadd.f32 0.0, %v2774
          %v2776 = vpop.f32.mrf.mxu0
          %v2777 = vadd.f32 0.0, %v2776
          %2778 = vmatmul.bf16.gmra.mxu0 %v1456
          %v2779 = vpop.f32.mrf.mxu0
          %v2780 = vadd.f32 0.0, %v2779
          %v2781 = vpop.f32.mrf.mxu0
          %v2782 = vadd.f32 0.0, %v2781
          %2783 = vmatmul.bf16.gmra.mxu0 %v1457
          %v2784 = vpop.f32.mrf.mxu0
          %v2785 = vadd.f32 0.0, %v2784
          %v2786 = vpop.f32.mrf.mxu0
          %v2787 = vadd.f32 0.0, %v2786
          %2788 = vmatmul.bf16.gmra.mxu0 %v1458
          %v2789 = vpop.f32.mrf.mxu0
          %v2790 = vadd.f32 0.0, %v2789
          %v2791 = vpop.f32.mrf.mxu0
          %v2792 = vadd.f32 0.0, %v2791
          %2793 = vmatmul.bf16.gmra.mxu0 %v1459
          %v2794 = vpop.f32.mrf.mxu0
          %v2795 = vadd.f32 0.0, %v2794
          %v2796 = vpop.f32.mrf.mxu0
          %v2797 = vadd.f32 0.0, %v2796
          %2798 = vmatmul.bf16.gmra.mxu0 %v1460
          %v2799 = vpop.f32.mrf.mxu0
          %v2800 = vadd.f32 0.0, %v2799
          %v2801 = vpop.f32.mrf.mxu0
          %v2802 = vadd.f32 0.0, %v2801
          %2803 = vmatmul.bf16.gmra.mxu0 %v1461
          %v2804 = vpop.f32.mrf.mxu0
          %v2805 = vadd.f32 0.0, %v2804
          %v2806 = vpop.f32.mrf.mxu0
          %v2807 = vadd.f32 0.0, %v2806
          %2808 = vmatmul.bf16.gmra.mxu0 %v1462
          %v2809 = vpop.f32.mrf.mxu0
          %v2810 = vadd.f32 0.0, %v2809
          %v2811 = vpop.f32.mrf.mxu0
          %v2812 = vadd.f32 0.0, %v2811
          %2813 = vmatmul.bf16.gmra.mxu0 %v2081
          %v2814 = vpop.f32.mrf.mxu0
          %v2815 = vadd.f32 0.0, %v2814
          %v2816 = vpop.f32.mrf.mxu0
          %v2817 = vadd.f32 0.0, %v2816
          %2818 = vmatmul.bf16.gmra.mxu0 %v2685
          %v2819 = vpop.f32.mrf.mxu0
          %v2820 = vadd.f32 0.0, %v2819
          %v2821 = vpop.f32.mrf.mxu0
          %v2822 = vadd.f32 0.0, %v2821
          %2823 = vdwg.mxu0
          %v2824 = vadd.f32 %v2626, %v2745
          %v2825 = vadd.f32 %v2627, %v2747
          %v2826 = vadd.f32 %v2628, %v2750
          %v2827 = vadd.f32 %v2629, %v2752
          %v2828 = vadd.f32 %v2630, %v2755
          %v2829 = vadd.f32 %v2631, %v2757
          %v2830 = vadd.f32 %v2632, %v2760
          %v2831 = vadd.f32 %v2633, %v2762
          %v2832 = vadd.f32 %v2634, %v2765
          %v2833 = vadd.f32 %v2635, %v2767
          %v2834 = vadd.f32 %v2636, %v2770
          %v2835 = vadd.f32 %v2637, %v2772
          %v2836 = vadd.f32 %v2638, %v2775
          %v2837 = vadd.f32 %v2639, %v2777
          %v2838 = vadd.f32 %v2640, %v2780
          %v2839 = vadd.f32 %v2641, %v2782
          %v2840 = vadd.f32 %v2642, %v2785
          %v2841 = vadd.f32 %v2643, %v2787
          %v2842 = vadd.f32 %v2644, %v2790
          %v2843 = vadd.f32 %v2645, %v2792
          %v2844 = vadd.f32 %v2646, %v2795
          %v2845 = vadd.f32 %v2647, %v2797
          %v2846 = vadd.f32 %v2648, %v2800
          %v2847 = vadd.f32 %v2649, %v2802
          %v2848 = vadd.f32 %v2650, %v2805
          %v2849 = vadd.f32 %v2651, %v2807
          %v2850 = vadd.f32 %v2652, %v2810
          %v2851 = vadd.f32 %v2653, %v2812
          %v2852 = vadd.f32 %v2654, %v2815
          %v2853 = vadd.f32 %v2655, %v2817
          %v2854 = vadd.f32 %v2656, %v2820
          %v2855 = vadd.f32 %v2657, %v2822
          %s2856 = smul.u32 %s26, 256
          %s2857 = scalar_lea.vmem [#allocation2], %s2856
          %vm2858 = vcmask 523264
          %2859 = vst.msk [vmem:[%s2857] sm:$0xff] %vm2858, %v2824
          %2860 = vst.msk [vmem:[%s2857 + $0x8] sm:$0xff] %vm2858, %v2825
          %2861 = vst.msk [vmem:[%s2857 + $0x10] sm:$0xff] %vm2858, %v2826
          %2862 = vst.msk [vmem:[%s2857 + $0x18] sm:$0xff] %vm2858, %v2827
          %2863 = vst.msk [vmem:[%s2857 + $0x20] sm:$0xff] %vm2858, %v2828
          %2864 = vst.msk [vmem:[%s2857 + $0x28] sm:$0xff] %vm2858, %v2829
          %2865 = vst.msk [vmem:[%s2857 + $0x30] sm:$0xff] %vm2858, %v2830
          %2866 = vst.msk [vmem:[%s2857 + $0x38] sm:$0xff] %vm2858, %v2831
          %2867 = vst.msk [vmem:[%s2857 + $0x40] sm:$0xff] %vm2858, %v2832
          %2868 = vst.msk [vmem:[%s2857 + $0x48] sm:$0xff] %vm2858, %v2833
          %2869 = vst.msk [vmem:[%s2857 + $0x50] sm:$0xff] %vm2858, %v2834
          %2870 = vst.msk [vmem:[%s2857 + $0x58] sm:$0xff] %vm2858, %v2835
          %2871 = vst.msk [vmem:[%s2857 + $0x60] sm:$0xff] %vm2858, %v2836
          %2872 = vst.msk [vmem:[%s2857 + $0x68] sm:$0xff] %vm2858, %v2837
          %2873 = vst.msk [vmem:[%s2857 + $0x70] sm:$0xff] %vm2858, %v2838
          %2874 = vst.msk [vmem:[%s2857 + $0x78] sm:$0xff] %vm2858, %v2839
          %2875 = vst.msk [vmem:[%s2857 + $0x80] sm:$0xff] %vm2858, %v2840
          %2876 = vst.msk [vmem:[%s2857 + $0x88] sm:$0xff] %vm2858, %v2841
          %2877 = vst.msk [vmem:[%s2857 + $0x90] sm:$0xff] %vm2858, %v2842
          %2878 = vst.msk [vmem:[%s2857 + $0x98] sm:$0xff] %vm2858, %v2843
          %2879 = vst.msk [vmem:[%s2857 + $0xa0] sm:$0xff] %vm2858, %v2844
          %2880 = vst.msk [vmem:[%s2857 + $0xa8] sm:$0xff] %vm2858, %v2845
          %2881 = vst.msk [vmem:[%s2857 + $0xb0] sm:$0xff] %vm2858, %v2846
          %2882 = vst.msk [vmem:[%s2857 + $0xb8] sm:$0xff] %vm2858, %v2847
          %2883 = vst.msk [vmem:[%s2857 + $0xc0] sm:$0xff] %vm2858, %v2848
          %2884 = vst.msk [vmem:[%s2857 + $0xc8] sm:$0xff] %vm2858, %v2849
          %2885 = vst.msk [vmem:[%s2857 + $0xd0] sm:$0xff] %vm2858, %v2850
          %2886 = vst.msk [vmem:[%s2857 + $0xd8] sm:$0xff] %vm2858, %v2851
          %2887 = vst.msk [vmem:[%s2857 + $0xe0] sm:$0xff] %vm2858, %v2852
          %2888 = vst.msk [vmem:[%s2857 + $0xe8] sm:$0xff] %vm2858, %v2853
          %2889 = vst.msk [vmem:[%s2857 + $0xf0] sm:$0xff] %vm2858, %v2854
          %2890 = vst.msk [vmem:[%s2857 + $0xf8] sm:$0xff] %vm2858, %v2855
          %v2891 = vld [vmem:[#allocation3] sm:$0x1]
          %v2892 = vsel %vm2858, %v2824, 0.0
          %v2893 = vsel %vm2858, %v2825, 0.0
          %v2894 = vadd.f32 %v2892, %v2893
          %v2895 = vsel %vm2858, %v2826, 0.0
          %v2896 = vadd.f32 %v2894, %v2895
          %v2897 = vsel %vm2858, %v2827, 0.0
          %v2898 = vadd.f32 %v2896, %v2897
          %v2899 = vsel %vm2858, %v2828, 0.0
          %v2900 = vadd.f32 %v2898, %v2899
          %v2901 = vsel %vm2858, %v2829, 0.0
          %v2902 = vadd.f32 %v2900, %v2901
          %v2903 = vsel %vm2858, %v2830, 0.0
          %v2904 = vadd.f32 %v2902, %v2903
          %v2905 = vsel %vm2858, %v2831, 0.0
          %v2906 = vadd.f32 %v2904, %v2905
          %v2907 = vsel %vm2858, %v2832, 0.0
          %v2908 = vadd.f32 %v2906, %v2907
          %v2909 = vsel %vm2858, %v2833, 0.0
          %v2910 = vadd.f32 %v2908, %v2909
          %v2911 = vsel %vm2858, %v2834, 0.0
          %v2912 = vadd.f32 %v2910, %v2911
          %v2913 = vsel %vm2858, %v2835, 0.0
          %v2914 = vadd.f32 %v2912, %v2913
          %v2915 = vsel %vm2858, %v2836, 0.0
          %v2916 = vadd.f32 %v2914, %v2915
          %v2917 = vsel %vm2858, %v2837, 0.0
          %v2918 = vadd.f32 %v2916, %v2917
          %v2919 = vsel %vm2858, %v2838, 0.0
          %v2920 = vadd.f32 %v2918, %v2919
          %v2921 = vsel %vm2858, %v2839, 0.0
          %v2922 = vadd.f32 %v2920, %v2921
          %v2923 = vsel %vm2858, %v2840, 0.0
          %v2924 = vadd.f32 %v2922, %v2923
          %v2925 = vsel %vm2858, %v2841, 0.0
          %v2926 = vadd.f32 %v2924, %v2925
          %v2927 = vsel %vm2858, %v2842, 0.0
          %v2928 = vadd.f32 %v2926, %v2927
          %v2929 = vsel %vm2858, %v2843, 0.0
          %v2930 = vadd.f32 %v2928, %v2929
          %v2931 = vsel %vm2858, %v2844, 0.0
          %v2932 = vadd.f32 %v2930, %v2931
          %v2933 = vsel %vm2858, %v2845, 0.0
          %v2934 = vadd.f32 %v2932, %v2933
          %v2935 = vsel %vm2858, %v2846, 0.0
          %v2936 = vadd.f32 %v2934, %v2935
          %v2937 = vsel %vm2858, %v2847, 0.0
          %v2938 = vadd.f32 %v2936, %v2937
          %v2939 = vsel %vm2858, %v2848, 0.0
          %v2940 = vadd.f32 %v2938, %v2939
          %v2941 = vsel %vm2858, %v2849, 0.0
          %v2942 = vadd.f32 %v2940, %v2941
          %v2943 = vsel %vm2858, %v2850, 0.0
          %v2944 = vadd.f32 %v2942, %v2943
          %v2945 = vsel %vm2858, %v2851, 0.0
          %v2946 = vadd.f32 %v2944, %v2945
          %v2947 = vsel %vm2858, %v2852, 0.0
          %v2948 = vadd.f32 %v2946, %v2947
          %v2949 = vsel %vm2858, %v2853, 0.0
          %v2950 = vadd.f32 %v2948, %v2949
          %v2951 = vsel %vm2858, %v2854, 0.0
          %v2952 = vadd.f32 %v2950, %v2951
          %v2953 = vsel %vm2858, %v2855, 0.0
          %v2954 = vadd.f32 %v2952, %v2953
          %v2955 = vrot.slane %v2954, 4
          %v2956 = vadd.f32 %v2954, %v2955
          %v2957 = vrot.slane %v2956, 2
          %v2958 = vadd.f32 %v2956, %v2957
          %v2959 = vrot.slane %v2958, 1
          %v2960 = vadd.f32 %v2958, %v2959
          %v2961 = vadd.f32 %v2891, %v2960
          %vm2962 = vcmask 516096
          %2963 = vst.msk [vmem:[#allocation3] sm:$0x1] %vm2962, %v2961
          %v2964 = vld [vmem:[#allocation3 + $0x1] sm:$0x1]
          %v2965 = vmul.f32 %v2824, %v2824
          %v2966 = vmul.f32 %v2825, %v2825
          %v2967 = vmul.f32 %v2826, %v2826
          %v2968 = vmul.f32 %v2827, %v2827
          %v2969 = vmul.f32 %v2828, %v2828
          %v2970 = vmul.f32 %v2829, %v2829
          %v2971 = vmul.f32 %v2830, %v2830
          %v2972 = vmul.f32 %v2831, %v2831
          %v2973 = vmul.f32 %v2832, %v2832
          %v2974 = vmul.f32 %v2833, %v2833
          %v2975 = vmul.f32 %v2834, %v2834
          %v2976 = vmul.f32 %v2835, %v2835
          %v2977 = vmul.f32 %v2836, %v2836
          %v2978 = vmul.f32 %v2837, %v2837
          %v2979 = vmul.f32 %v2838, %v2838
          %v2980 = vmul.f32 %v2839, %v2839
          %v2981 = vmul.f32 %v2840, %v2840
          %v2982 = vmul.f32 %v2841, %v2841
          %v2983 = vmul.f32 %v2842, %v2842
          %v2984 = vmul.f32 %v2843, %v2843
          %v2985 = vmul.f32 %v2844, %v2844
          %v2986 = vmul.f32 %v2845, %v2845
          %v2987 = vmul.f32 %v2846, %v2846
          %v2988 = vmul.f32 %v2847, %v2847
          %v2989 = vmul.f32 %v2848, %v2848
          %v2990 = vmul.f32 %v2849, %v2849
          %v2991 = vmul.f32 %v2850, %v2850
          %v2992 = vmul.f32 %v2851, %v2851
          %v2993 = vmul.f32 %v2852, %v2852
          %v2994 = vmul.f32 %v2853, %v2853
          %v2995 = vmul.f32 %v2854, %v2854
          %v2996 = vmul.f32 %v2855, %v2855
          %v2997 = vsel %vm2858, %v2965, 0.0
          %v2998 = vsel %vm2858, %v2966, 0.0
          %v2999 = vadd.f32 %v2997, %v2998
          %v3000 = vsel %vm2858, %v2967, 0.0
          %v3001 = vadd.f32 %v2999, %v3000
          %v3002 = vsel %vm2858, %v2968, 0.0
          %v3003 = vadd.f32 %v3001, %v3002
          %v3004 = vsel %vm2858, %v2969, 0.0
          %v3005 = vadd.f32 %v3003, %v3004
          %v3006 = vsel %vm2858, %v2970, 0.0
          %v3007 = vadd.f32 %v3005, %v3006
          %v3008 = vsel %vm2858, %v2971, 0.0
          %v3009 = vadd.f32 %v3007, %v3008
          %v3010 = vsel %vm2858, %v2972, 0.0
          %v3011 = vadd.f32 %v3009, %v3010
          %v3012 = vsel %vm2858, %v2973, 0.0
          %v3013 = vadd.f32 %v3011, %v3012
          %v3014 = vsel %vm2858, %v2974, 0.0
          %v3015 = vadd.f32 %v3013, %v3014
          %v3016 = vsel %vm2858, %v2975, 0.0
          %v3017 = vadd.f32 %v3015, %v3016
          %v3018 = vsel %vm2858, %v2976, 0.0
          %v3019 = vadd.f32 %v3017, %v3018
          %v3020 = vsel %vm2858, %v2977, 0.0
          %v3021 = vadd.f32 %v3019, %v3020
          %v3022 = vsel %vm2858, %v2978, 0.0
          %v3023 = vadd.f32 %v3021, %v3022
          %v3024 = vsel %vm2858, %v2979, 0.0
          %v3025 = vadd.f32 %v3023, %v3024
          %v3026 = vsel %vm2858, %v2980, 0.0
          %v3027 = vadd.f32 %v3025, %v3026
          %v3028 = vsel %vm2858, %v2981, 0.0
          %v3029 = vadd.f32 %v3027, %v3028
          %v3030 = vsel %vm2858, %v2982, 0.0
          %v3031 = vadd.f32 %v3029, %v3030
          %v3032 = vsel %vm2858, %v2983, 0.0
          %v3033 = vadd.f32 %v3031, %v3032
          %v3034 = vsel %vm2858, %v2984, 0.0
          %v3035 = vadd.f32 %v3033, %v3034
          %v3036 = vsel %vm2858, %v2985, 0.0
          %v3037 = vadd.f32 %v3035, %v3036
          %v3038 = vsel %vm2858, %v2986, 0.0
          %v3039 = vadd.f32 %v3037, %v3038
          %v3040 = vsel %vm2858, %v2987, 0.0
          %v3041 = vadd.f32 %v3039, %v3040
          %v3042 = vsel %vm2858, %v2988, 0.0
          %v3043 = vadd.f32 %v3041, %v3042
          %v3044 = vsel %vm2858, %v2989, 0.0
          %v3045 = vadd.f32 %v3043, %v3044
          %v3046 = vsel %vm2858, %v2990, 0.0
          %v3047 = vadd.f32 %v3045, %v3046
          %v3048 = vsel %vm2858, %v2991, 0.0
          %v3049 = vadd.f32 %v3047, %v3048
          %v3050 = vsel %vm2858, %v2992, 0.0
          %v3051 = vadd.f32 %v3049, %v3050
          %v3052 = vsel %vm2858, %v2993, 0.0
          %v3053 = vadd.f32 %v3051, %v3052
          %v3054 = vsel %vm2858, %v2994, 0.0
          %v3055 = vadd.f32 %v3053, %v3054
          %v3056 = vsel %vm2858, %v2995, 0.0
          %v3057 = vadd.f32 %v3055, %v3056
          %v3058 = vsel %vm2858, %v2996, 0.0
          %v3059 = vadd.f32 %v3057, %v3058
          %v3060 = vrot.slane %v3059, 4
          %v3061 = vadd.f32 %v3059, %v3060
          %v3062 = vrot.slane %v3061, 2
          %v3063 = vadd.f32 %v3061, %v3062
          %v3064 = vrot.slane %v3063, 1
          %v3065 = vadd.f32 %v3063, %v3064
          %v3066 = vadd.f32 %v2964, %v3065
          %3067 = vst.msk [vmem:[#allocation3 + $0x1] sm:$0x1] %vm2962, %v3066
        $region64: #{classifier_forward.1} parent=55 // pred_fallthru
          _
        %p3068 = scmp.eq.s32.totalorder %s25, 1
        // Predicated region
        $region65: #{classifier_forward.1} parent=55 // pred_check
          %p3069 = pneg %p3068
        $region66: #{classifier_forward.1} parent=55 // pred_check_branch
          %3071 = sbr.rel (%p3069) target = $region68
        $region67: #{classifier_forward.1} parent=55 // pred_region
          %v3072 = vld [vmem:[#allocation3] sm:$0x1]
          %v3073 = vmul.f32 %v3072, 0.001953125
          %v3074 = vld [vmem:[#allocation3 + $0x1] sm:$0x1]
          %v3075 = vmul.f32 %v3074, 0.001953125
          %v3076 = vmul.f32 %v3073, %v3073
          %v3077 = vsub.f32 %v3075, %v3076
          %v3078 = vadd.f32 %v3077, 1e-05
          %v3079 = vrsqrt.pop %v3078
          %v3080 = vmul.f32 %v3079, %v3078
          %v3081 = vmul.f32 %v3080, %v3079
          %v3082 = vmul.f32 0.5, %v3081
          %v3083 = vsub.f32 1.5, %v3082
          %v3084 = vmul.f32 %v3079, %v3083
          %vm3085 = vweird.f32 %v3078
          %vm3086 = vweird.f32 %v3079
          %vm3087 = vmor %vm3085, %vm3086
          %v3088 = vsel %vm3087, %v3079, %v3084
          %v3089 = vld [vmem:[%s3] sm:$0x1]
          %v3090 = vmul.f32 %v3088, %v3089
          %s3091 = smul.u32 %s26, 256
          %s3092 = scalar_lea.vmem [#allocation2], %s3091
          %v3093 = vld [vmem:[%s3092] sm:$0xff]
          %v3094 = vld [vmem:[%s3092 + $0x8] sm:$0xff]
          %v3095 = vld [vmem:[%s3092 + $0x10] sm:$0xff]
          %v3096 = vld [vmem:[%s3092 + $0x18] sm:$0xff]
          %v3097 = vld [vmem:[%s3092 + $0x20] sm:$0xff]
          %v3098 = vld [vmem:[%s3092 + $0x28] sm:$0xff]
          %v3099 = vld [vmem:[%s3092 + $0x30] sm:$0xff]
          %v3100 = vld [vmem:[%s3092 + $0x38] sm:$0xff]
          %v3101 = vld [vmem:[%s3092 + $0x40] sm:$0xff]
          %v3102 = vld [vmem:[%s3092 + $0x48] sm:$0xff]
          %v3103 = vld [vmem:[%s3092 + $0x50] sm:$0xff]
          %v3104 = vld [vmem:[%s3092 + $0x58] sm:$0xff]
          %v3105 = vld [vmem:[%s3092 + $0x60] sm:$0xff]
          %v3106 = vld [vmem:[%s3092 + $0x68] sm:$0xff]
          %v3107 = vld [vmem:[%s3092 + $0x70] sm:$0xff]
          %v3108 = vld [vmem:[%s3092 + $0x78] sm:$0xff]
          %v3109 = vld [vmem:[%s3092 + $0x80] sm:$0xff]
          %v3110 = vld [vmem:[%s3092 + $0x88] sm:$0xff]
          %v3111 = vld [vmem:[%s3092 + $0x90] sm:$0xff]
          %v3112 = vld [vmem:[%s3092 + $0x98] sm:$0xff]
          %v3113 = vld [vmem:[%s3092 + $0xa0] sm:$0xff]
          %v3114 = vld [vmem:[%s3092 + $0xa8] sm:$0xff]
          %v3115 = vld [vmem:[%s3092 + $0xb0] sm:$0xff]
          %v3116 = vld [vmem:[%s3092 + $0xb8] sm:$0xff]
          %v3117 = vld [vmem:[%s3092 + $0xc0] sm:$0xff]
          %v3118 = vld [vmem:[%s3092 + $0xc8] sm:$0xff]
          %v3119 = vld [vmem:[%s3092 + $0xd0] sm:$0xff]
          %v3120 = vld [vmem:[%s3092 + $0xd8] sm:$0xff]
          %v3121 = vld [vmem:[%s3092 + $0xe0] sm:$0xff]
          %v3122 = vld [vmem:[%s3092 + $0xe8] sm:$0xff]
          %v3123 = vld [vmem:[%s3092 + $0xf0] sm:$0xff]
          %v3124 = vld [vmem:[%s3092 + $0xf8] sm:$0xff]
          %v3125 = vperm.slane %v3073, 0
          %v3126 = vsub.f32 %v3093, %v3125
          %v3127 = vsub.f32 %v3094, %v3125
          %v3128 = vsub.f32 %v3095, %v3125
          %v3129 = vsub.f32 %v3096, %v3125
          %v3130 = vsub.f32 %v3097, %v3125
          %v3131 = vsub.f32 %v3098, %v3125
          %v3132 = vsub.f32 %v3099, %v3125
          %v3133 = vsub.f32 %v3100, %v3125
          %v3134 = vsub.f32 %v3101, %v3125
          %v3135 = vsub.f32 %v3102, %v3125
          %v3136 = vsub.f32 %v3103, %v3125
          %v3137 = vsub.f32 %v3104, %v3125
          %v3138 = vsub.f32 %v3105, %v3125
          %v3139 = vsub.f32 %v3106, %v3125
          %v3140 = vsub.f32 %v3107, %v3125
          %v3141 = vsub.f32 %v3108, %v3125
          %v3142 = vsub.f32 %v3109, %v3125
          %v3143 = vsub.f32 %v3110, %v3125
          %v3144 = vsub.f32 %v3111, %v3125
          %v3145 = vsub.f32 %v3112, %v3125
          %v3146 = vsub.f32 %v3113, %v3125
          %v3147 = vsub.f32 %v3114, %v3125
          %v3148 = vsub.f32 %v3115, %v3125
          %v3149 = vsub.f32 %v3116, %v3125
          %v3150 = vsub.f32 %v3117, %v3125
          %v3151 = vsub.f32 %v3118, %v3125
          %v3152 = vsub.f32 %v3119, %v3125
          %v3153 = vsub.f32 %v3120, %v3125
          %v3154 = vsub.f32 %v3121, %v3125
          %v3155 = vsub.f32 %v3122, %v3125
          %v3156 = vsub.f32 %v3123, %v3125
          %v3157 = vsub.f32 %v3124, %v3125
          %v3158 = vperm.slane %v3090, 0
          %v3159 = vmul.f32 %v3126, %v3158
          %v3160 = vmul.f32 %v3127, %v3158
          %v3161 = vmul.f32 %v3128, %v3158
          %v3162 = vmul.f32 %v3129, %v3158
          %v3163 = vmul.f32 %v3130, %v3158
          %v3164 = vmul.f32 %v3131, %v3158
          %v3165 = vmul.f32 %v3132, %v3158
          %v3166 = vmul.f32 %v3133, %v3158
          %v3167 = vmul.f32 %v3134, %v3158
          %v3168 = vmul.f32 %v3135, %v3158
          %v3169 = vmul.f32 %v3136, %v3158
          %v3170 = vmul.f32 %v3137, %v3158
          %v3171 = vmul.f32 %v3138, %v3158
          %v3172 = vmul.f32 %v3139, %v3158
          %v3173 = vmul.f32 %v3140, %v3158
          %v3174 = vmul.f32 %v3141, %v3158
          %v3175 = vmul.f32 %v3142, %v3158
          %v3176 = vmul.f32 %v3143, %v3158
          %v3177 = vmul.f32 %v3144, %v3158
          %v3178 = vmul.f32 %v3145, %v3158
          %v3179 = vmul.f32 %v3146, %v3158
          %v3180 = vmul.f32 %v3147, %v3158
          %v3181 = vmul.f32 %v3148, %v3158
          %v3182 = vmul.f32 %v3149, %v3158
          %v3183 = vmul.f32 %v3150, %v3158
          %v3184 = vmul.f32 %v3151, %v3158
          %v3185 = vmul.f32 %v3152, %v3158
          %v3186 = vmul.f32 %v3153, %v3158
          %v3187 = vmul.f32 %v3154, %v3158
          %v3188 = vmul.f32 %v3155, %v3158
          %v3189 = vmul.f32 %v3156, %v3158
          %v3190 = vmul.f32 %v3157, %v3158
          %v3191 = vld [vmem:[%s4] sm:$0x1]
          %v3193 = vperm.slane %v3191, 0
          %v3195 = vadd.f32 %v3159, %v3193
          %v3196 = vadd.f32 %v3160, %v3193
          %v3197 = vadd.f32 %v3161, %v3193
          %v3198 = vadd.f32 %v3162, %v3193
          %v3199 = vadd.f32 %v3163, %v3193
          %v3200 = vadd.f32 %v3164, %v3193
          %v3201 = vadd.f32 %v3165, %v3193
          %v3202 = vadd.f32 %v3166, %v3193
          %v3203 = vadd.f32 %v3167, %v3193
          %v3204 = vadd.f32 %v3168, %v3193
          %v3205 = vadd.f32 %v3169, %v3193
          %v3206 = vadd.f32 %v3170, %v3193
          %v3207 = vadd.f32 %v3171, %v3193
          %v3208 = vadd.f32 %v3172, %v3193
          %v3209 = vadd.f32 %v3173, %v3193
          %v3210 = vadd.f32 %v3174, %v3193
          %v3211 = vadd.f32 %v3175, %v3193
          %v3212 = vadd.f32 %v3176, %v3193
          %v3213 = vadd.f32 %v3177, %v3193
          %v3214 = vadd.f32 %v3178, %v3193
          %v3215 = vadd.f32 %v3179, %v3193
          %v3216 = vadd.f32 %v3180, %v3193
          %v3217 = vadd.f32 %v3181, %v3193
          %v3218 = vadd.f32 %v3182, %v3193
          %v3219 = vadd.f32 %v3183, %v3193
          %v3220 = vadd.f32 %v3184, %v3193
          %v3221 = vadd.f32 %v3185, %v3193
          %v3222 = vadd.f32 %v3186, %v3193
          %v3223 = vadd.f32 %v3187, %v3193
          %v3224 = vadd.f32 %v3188, %v3193
          %v3225 = vadd.f32 %v3189, %v3193
          %v3226 = vadd.f32 %v3190, %v3193
          %vm3227 = vcmp.ge.f32.partialorder %v3195, 0.0
          %vm3228 = vcmp.ge.f32.partialorder %v3196, 0.0
          %vm3229 = vcmp.ge.f32.partialorder %v3197, 0.0
          %vm3230 = vcmp.ge.f32.partialorder %v3198, 0.0
          %vm3231 = vcmp.ge.f32.partialorder %v3199, 0.0
          %vm3232 = vcmp.ge.f32.partialorder %v3200, 0.0
          %vm3233 = vcmp.ge.f32.partialorder %v3201, 0.0
          %vm3234 = vcmp.ge.f32.partialorder %v3202, 0.0
          %vm3235 = vcmp.ge.f32.partialorder %v3203, 0.0
          %vm3236 = vcmp.ge.f32.partialorder %v3204, 0.0
          %vm3237 = vcmp.ge.f32.partialorder %v3205, 0.0
          %vm3238 = vcmp.ge.f32.partialorder %v3206, 0.0
          %vm3239 = vcmp.ge.f32.partialorder %v3207, 0.0
          %vm3240 = vcmp.ge.f32.partialorder %v3208, 0.0
          %vm3241 = vcmp.ge.f32.partialorder %v3209, 0.0
          %vm3242 = vcmp.ge.f32.partialorder %v3210, 0.0
          %vm3243 = vcmp.ge.f32.partialorder %v3211, 0.0
          %vm3244 = vcmp.ge.f32.partialorder %v3212, 0.0
          %vm3245 = vcmp.ge.f32.partialorder %v3213, 0.0
          %vm3246 = vcmp.ge.f32.partialorder %v3214, 0.0
          %vm3247 = vcmp.ge.f32.partialorder %v3215, 0.0
          %vm3248 = vcmp.ge.f32.partialorder %v3216, 0.0
          %vm3249 = vcmp.ge.f32.partialorder %v3217, 0.0
          %vm3250 = vcmp.ge.f32.partialorder %v3218, 0.0
          %vm3251 = vcmp.ge.f32.partialorder %v3219, 0.0
          %vm3252 = vcmp.ge.f32.partialorder %v3220, 0.0
          %vm3253 = vcmp.ge.f32.partialorder %v3221, 0.0
          %vm3254 = vcmp.ge.f32.partialorder %v3222, 0.0
          %vm3255 = vcmp.ge.f32.partialorder %v3223, 0.0
          %vm3256 = vcmp.ge.f32.partialorder %v3224, 0.0
          %vm3257 = vcmp.ge.f32.partialorder %v3225, 0.0
          %vm3258 = vcmp.ge.f32.partialorder %v3226, 0.0
          %v3259 = vmul.f32 %v3195, 0.2
          %v3260 = vmul.f32 %v3196, 0.2
          %v3261 = vmul.f32 %v3197, 0.2
          %v3262 = vmul.f32 %v3198, 0.2
          %v3263 = vmul.f32 %v3199, 0.2
          %v3264 = vmul.f32 %v3200, 0.2
          %v3265 = vmul.f32 %v3201, 0.2
          %v3266 = vmul.f32 %v3202, 0.2
          %v3267 = vmul.f32 %v3203, 0.2
          %v3268 = vmul.f32 %v3204, 0.2
          %v3269 = vmul.f32 %v3205, 0.2
          %v3270 = vmul.f32 %v3206, 0.2
          %v3271 = vmul.f32 %v3207, 0.2
          %v3272 = vmul.f32 %v3208, 0.2
          %v3273 = vmul.f32 %v3209, 0.2
          %v3274 = vmul.f32 %v3210, 0.2
          %v3275 = vmul.f32 %v3211, 0.2
          %v3276 = vmul.f32 %v3212, 0.2
          %v3277 = vmul.f32 %v3213, 0.2
          %v3278 = vmul.f32 %v3214, 0.2
          %v3279 = vmul.f32 %v3215, 0.2
          %v3280 = vmul.f32 %v3216, 0.2
          %v3281 = vmul.f32 %v3217, 0.2
          %v3282 = vmul.f32 %v3218, 0.2
          %v3283 = vmul.f32 %v3219, 0.2
          %v3284 = vmul.f32 %v3220, 0.2
          %v3285 = vmul.f32 %v3221, 0.2
          %v3286 = vmul.f32 %v3222, 0.2
          %v3287 = vmul.f32 %v3223, 0.2
          %v3288 = vmul.f32 %v3224, 0.2
          %v3289 = vmul.f32 %v3225, 0.2
          %v3290 = vmul.f32 %v3226, 0.2
          %v3291 = vsel %vm3227, %v3195, %v3259
          %v3292 = vsel %vm3228, %v3196, %v3260
          %v3293 = vsel %vm3229, %v3197, %v3261
          %v3294 = vsel %vm3230, %v3198, %v3262
          %v3295 = vsel %vm3231, %v3199, %v3263
          %v3296 = vsel %vm3232, %v3200, %v3264
          %v3297 = vsel %vm3233, %v3201, %v3265
          %v3298 = vsel %vm3234, %v3202, %v3266
          %v3299 = vsel %vm3235, %v3203, %v3267
          %v3300 = vsel %vm3236, %v3204, %v3268
          %v3301 = vsel %vm3237, %v3205, %v3269
          %v3302 = vsel %vm3238, %v3206, %v3270
          %v3303 = vsel %vm3239, %v3207, %v3271
          %v3304 = vsel %vm3240, %v3208, %v3272
          %v3305 = vsel %vm3241, %v3209, %v3273
          %v3306 = vsel %vm3242, %v3210, %v3274
          %v3307 = vsel %vm3243, %v3211, %v3275
          %v3308 = vsel %vm3244, %v3212, %v3276
          %v3309 = vsel %vm3245, %v3213, %v3277
          %v3310 = vsel %vm3246, %v3214, %v3278
          %v3311 = vsel %vm3247, %v3215, %v3279
          %v3312 = vsel %vm3248, %v3216, %v3280
          %v3313 = vsel %vm3249, %v3217, %v3281
          %v3314 = vsel %vm3250, %v3218, %v3282
          %v3315 = vsel %vm3251, %v3219, %v3283
          %v3316 = vsel %vm3252, %v3220, %v3284
          %v3317 = vsel %vm3253, %v3221, %v3285
          %v3318 = vsel %vm3254, %v3222, %v3286
          %v3319 = vsel %vm3255, %v3223, %v3287
          %v3320 = vsel %vm3256, %v3224, %v3288
          %v3321 = vsel %vm3257, %v3225, %v3289
          %v3322 = vsel %vm3258, %v3226, %v3290
          %v3323 = vld [vmem:[%s7] sm:$0xff]
          %v3324 = vld [vmem:[%s7 + $0x8] sm:$0xff]
          %v3325 = vld [vmem:[%s7 + $0x10] sm:$0xff]
          %v3326 = vld [vmem:[%s7 + $0x18] sm:$0xff]
          %v3327 = vld [vmem:[%s7 + $0x20] sm:$0xff]
          %v3328 = vld [vmem:[%s7 + $0x28] sm:$0xff]
          %v3329 = vld [vmem:[%s7 + $0x30] sm:$0xff]
          %v3330 = vld [vmem:[%s7 + $0x38] sm:$0xff]
          %v3331 = vld [vmem:[%s7 + $0x40] sm:$0xff]
          %v3332 = vld [vmem:[%s7 + $0x48] sm:$0xff]
          %v3333 = vld [vmem:[%s7 + $0x50] sm:$0xff]
          %v3334 = vld [vmem:[%s7 + $0x58] sm:$0xff]
          %v3335 = vld [vmem:[%s7 + $0x60] sm:$0xff]
          %v3336 = vld [vmem:[%s7 + $0x68] sm:$0xff]
          %v3337 = vld [vmem:[%s7 + $0x70] sm:$0xff]
          %v3338 = vld [vmem:[%s7 + $0x78] sm:$0xff]
          %v3339 = vld [vmem:[%s7 + $0x80] sm:$0xff]
          %v3340 = vld [vmem:[%s7 + $0x88] sm:$0xff]
          %v3341 = vld [vmem:[%s7 + $0x90] sm:$0xff]
          %v3342 = vld [vmem:[%s7 + $0x98] sm:$0xff]
          %v3343 = vld [vmem:[%s7 + $0xa0] sm:$0xff]
          %v3344 = vld [vmem:[%s7 + $0xa8] sm:$0xff]
          %v3345 = vld [vmem:[%s7 + $0xb0] sm:$0xff]
          %v3346 = vld [vmem:[%s7 + $0xb8] sm:$0xff]
          %v3347 = vld [vmem:[%s7 + $0xc0] sm:$0xff]
          %v3348 = vld [vmem:[%s7 + $0xc8] sm:$0xff]
          %v3349 = vld [vmem:[%s7 + $0xd0] sm:$0xff]
          %v3350 = vld [vmem:[%s7 + $0xd8] sm:$0xff]
          %v3351 = vld [vmem:[%s7 + $0xe0] sm:$0xff]
          %v3352 = vld [vmem:[%s7 + $0xe8] sm:$0xff]
          %v3353 = vld [vmem:[%s7 + $0xf0] sm:$0xff]
          %v3354 = vld [vmem:[%s7 + $0xf8] sm:$0xff]
          %v3355 = vpack.c.bf16 %v3292, %v3291
          %v3356 = vpack.c.bf16 %v3294, %v3293
          %v3357 = vpack.c.bf16 %v3296, %v3295
          %v3358 = vpack.c.bf16 %v3298, %v3297
          %v3359 = vpack.c.bf16 %v3300, %v3299
          %v3360 = vpack.c.bf16 %v3302, %v3301
          %v3361 = vpack.c.bf16 %v3304, %v3303
          %v3362 = vpack.c.bf16 %v3306, %v3305
          %v3363 = vpack.c.bf16 %v3308, %v3307
          %v3364 = vpack.c.bf16 %v3310, %v3309
          %v3365 = vpack.c.bf16 %v3312, %v3311
          %v3366 = vpack.c.bf16 %v3314, %v3313
          %v3367 = vpack.c.bf16 %v3316, %v3315
          %v3368 = vpack.c.bf16 %v3318, %v3317
          %v3369 = vpack.c.bf16 %v3320, %v3319
          %v3370 = vpack.c.bf16 %v3322, %v3321
          %v3403 = vunpack.c.l.b16 %v3323
          %v3404 = vunpack.c.h.b16 %v3323
          %v3405 = vunpack.c.l.b16 %v3324
          %v3406 = vunpack.c.h.b16 %v3324
          %v3407 = vunpack.c.l.b16 %v3325
          %v3408 = vunpack.c.h.b16 %v3325
          %v3409 = vunpack.c.l.b16 %v3326
          %v3410 = vunpack.c.h.b16 %v3326
          %v3411 = vunpack.c.l.b16 %v3327
          %v3412 = vunpack.c.h.b16 %v3327
          %v3413 = vunpack.c.l.b16 %v3328
          %v3414 = vunpack.c.h.b16 %v3328
          %v3415 = vunpack.c.l.b16 %v3329
          %v3416 = vunpack.c.h.b16 %v3329
          %v3417 = vunpack.c.l.b16 %v3330
          %v3418 = vunpack.c.h.b16 %v3330
          %v3419 = vunpack.c.l.b16 %v3331
          %v3420 = vunpack.c.h.b16 %v3331
          %v3421 = vunpack.c.l.b16 %v3332
          %v3422 = vunpack.c.h.b16 %v3332
          %v3423 = vunpack.c.l.b16 %v3333
          %v3424 = vunpack.c.h.b16 %v3333
          %v3425 = vunpack.c.l.b16 %v3334
          %v3426 = vunpack.c.h.b16 %v3334
          %v3427 = vunpack.c.l.b16 %v3335
          %v3428 = vunpack.c.h.b16 %v3335
          %v3429 = vunpack.c.l.b16 %v3336
          %v3430 = vunpack.c.h.b16 %v3336
          %v3431 = vunpack.c.l.b16 %v3337
          %v3432 = vunpack.c.h.b16 %v3337
          %v3433 = vunpack.c.l.b16 %v3338
          %v3434 = vunpack.c.h.b16 %v3338
          %v3435 = vunpack.c.l.b16 %v3339
          %v3436 = vunpack.c.h.b16 %v3339
          %v3437 = vunpack.c.l.b16 %v3340
          %v3438 = vunpack.c.h.b16 %v3340
          %v3439 = vunpack.c.l.b16 %v3341
          %v3440 = vunpack.c.h.b16 %v3341
          %v3441 = vunpack.c.l.b16 %v3342
          %v3442 = vunpack.c.h.b16 %v3342
          %v3443 = vunpack.c.l.b16 %v3343
          %v3444 = vunpack.c.h.b16 %v3343
          %v3445 = vunpack.c.l.b16 %v3344
          %v3446 = vunpack.c.h.b16 %v3344
          %v3447 = vunpack.c.l.b16 %v3345
          %v3448 = vunpack.c.h.b16 %v3345
          %v3449 = vunpack.c.l.b16 %v3346
          %v3450 = vunpack.c.h.b16 %v3346
          %v3451 = vunpack.c.l.b16 %v3347
          %v3452 = vunpack.c.h.b16 %v3347
          %v3453 = vunpack.c.l.b16 %v3348
          %v3454 = vunpack.c.h.b16 %v3348
          %v3455 = vunpack.c.l.b16 %v3349
          %v3456 = vunpack.c.h.b16 %v3349
          %v3457 = vunpack.c.l.b16 %v3350
          %v3458 = vunpack.c.h.b16 %v3350
          %v3459 = vunpack.c.l.b16 %v3351
          %v3460 = vunpack.c.h.b16 %v3351
          %v3461 = vunpack.c.l.b16 %v3352
          %v3462 = vunpack.c.h.b16 %v3352
          %v3463 = vunpack.c.l.b16 %v3353
          %v3464 = vunpack.c.h.b16 %v3353
          %v3465 = vunpack.c.l.b16 %v3354
          %v3466 = vunpack.c.h.b16 %v3354
          %v3467 = vpack.c.b16 %v3405, %v3403
          %v3468 = vpack.c.b16 %v3406, %v3404
          %v3469 = vpack.c.b16 %v3409, %v3407
          %v3470 = vpack.c.b16 %v3410, %v3408
          %v3471 = vpack.c.b16 %v3413, %v3411
          %v3472 = vpack.c.b16 %v3414, %v3412
          %v3473 = vpack.c.b16 %v3417, %v3415
          %v3474 = vpack.c.b16 %v3418, %v3416
          %v3475 = vpack.c.b16 %v3421, %v3419
          %v3476 = vpack.c.b16 %v3422, %v3420
          %v3477 = vpack.c.b16 %v3425, %v3423
          %v3478 = vpack.c.b16 %v3426, %v3424
          %v3479 = vpack.c.b16 %v3429, %v3427
          %v3480 = vpack.c.b16 %v3430, %v3428
          %v3481 = vpack.c.b16 %v3433, %v3431
          %v3482 = vpack.c.b16 %v3434, %v3432
          %v3483 = vpack.c.b16 %v3437, %v3435
          %v3484 = vpack.c.b16 %v3438, %v3436
          %v3485 = vpack.c.b16 %v3441, %v3439
          %v3486 = vpack.c.b16 %v3442, %v3440
          %v3487 = vpack.c.b16 %v3445, %v3443
          %v3488 = vpack.c.b16 %v3446, %v3444
          %v3489 = vpack.c.b16 %v3449, %v3447
          %v3490 = vpack.c.b16 %v3450, %v3448
          %v3491 = vpack.c.b16 %v3453, %v3451
          %v3492 = vpack.c.b16 %v3454, %v3452
          %v3493 = vpack.c.b16 %v3457, %v3455
          %v3494 = vpack.c.b16 %v3458, %v3456
          %v3495 = vpack.c.b16 %v3461, %v3459
          %v3496 = vpack.c.b16 %v3462, %v3460
          %v3497 = vpack.c.b16 %v3465, %v3463
          %v3498 = vpack.c.b16 %v3466, %v3464
          %3531 = vmatpush.bf16.msra.mxu0 %v3362
          %3532 = vmatpush.bf16.msra.mxu0 %v3361
          %3533 = vmatpush.bf16.msra.mxu0 %v3360
          %3534 = vmatpush.bf16.msra.mxu0 %v3359
          %3535 = vmatpush.bf16.msra.mxu0 %v3358
          %3536 = vmatpush.bf16.msra.mxu0 %v3357
          %3537 = vmatpush.bf16.msra.mxu0 %v3356
          %3538 = vmatpush.bf16.msra.mxu0 %v3355
          %3539 = vmatmul.bf16.gmra.mxu0 %v3467
          %v3540 = vpop.f32.mrf.mxu0
          %v3541 = vadd.f32 0.0, %v3540
          %v3542 = vpop.f32.mrf.mxu0
          %v3543 = vadd.f32 0.0, %v3542
          %3544 = vmatmul.bf16.gmra.mxu0 %v3469
          %v3545 = vpop.f32.mrf.mxu0
          %v3546 = vadd.f32 0.0, %v3545
          %v3547 = vpop.f32.mrf.mxu0
          %v3548 = vadd.f32 0.0, %v3547
          %3549 = vmatmul.bf16.gmra.mxu0 %v3471
          %v3550 = vpop.f32.mrf.mxu0
          %v3551 = vadd.f32 0.0, %v3550
          %v3552 = vpop.f32.mrf.mxu0
          %v3553 = vadd.f32 0.0, %v3552
          %3554 = vmatmul.bf16.gmra.mxu0 %v3473
          %v3555 = vpop.f32.mrf.mxu0
          %v3556 = vadd.f32 0.0, %v3555
          %v3557 = vpop.f32.mrf.mxu0
          %v3558 = vadd.f32 0.0, %v3557
          %3559 = vmatmul.bf16.gmra.mxu0 %v3475
          %v3560 = vpop.f32.mrf.mxu0
          %v3561 = vadd.f32 0.0, %v3560
          %v3562 = vpop.f32.mrf.mxu0
          %v3563 = vadd.f32 0.0, %v3562
          %3564 = vmatmul.bf16.gmra.mxu0 %v3477
          %v3565 = vpop.f32.mrf.mxu0
          %v3566 = vadd.f32 0.0, %v3565
          %v3567 = vpop.f32.mrf.mxu0
          %v3568 = vadd.f32 0.0, %v3567
          %3569 = vmatmul.bf16.gmra.mxu0 %v3479
          %v3570 = vpop.f32.mrf.mxu0
          %v3571 = vadd.f32 0.0, %v3570
          %v3572 = vpop.f32.mrf.mxu0
          %v3573 = vadd.f32 0.0, %v3572
          %3574 = vmatmul.bf16.gmra.mxu0 %v3481
          %v3575 = vpop.f32.mrf.mxu0
          %v3576 = vadd.f32 0.0, %v3575
          %v3577 = vpop.f32.mrf.mxu0
          %v3578 = vadd.f32 0.0, %v3577
          %3579 = vmatmul.bf16.gmra.mxu0 %v3483
          %v3580 = vpop.f32.mrf.mxu0
          %v3581 = vadd.f32 0.0, %v3580
          %v3582 = vpop.f32.mrf.mxu0
          %v3583 = vadd.f32 0.0, %v3582
          %3584 = vmatmul.bf16.gmra.mxu0 %v3485
          %v3585 = vpop.f32.mrf.mxu0
          %v3586 = vadd.f32 0.0, %v3585
          %v3587 = vpop.f32.mrf.mxu0
          %v3588 = vadd.f32 0.0, %v3587
          %3589 = vmatmul.bf16.gmra.mxu0 %v3487
          %v3590 = vpop.f32.mrf.mxu0
          %v3591 = vadd.f32 0.0, %v3590
          %v3592 = vpop.f32.mrf.mxu0
          %v3593 = vadd.f32 0.0, %v3592
          %3594 = vmatmul.bf16.gmra.mxu0 %v3489
          %v3595 = vpop.f32.mrf.mxu0
          %v3596 = vadd.f32 0.0, %v3595
          %v3597 = vpop.f32.mrf.mxu0
          %v3598 = vadd.f32 0.0, %v3597
          %3599 = vmatmul.bf16.gmra.mxu0 %v3491
          %v3600 = vpop.f32.mrf.mxu0
          %v3601 = vadd.f32 0.0, %v3600
          %v3602 = vpop.f32.mrf.mxu0
          %v3603 = vadd.f32 0.0, %v3602
          %3604 = vmatmul.bf16.gmra.mxu0 %v3493
          %v3605 = vpop.f32.mrf.mxu0
          %v3606 = vadd.f32 0.0, %v3605
          %v3607 = vpop.f32.mrf.mxu0
          %v3608 = vadd.f32 0.0, %v3607
          %3609 = vmatmul.bf16.gmra.mxu0 %v3495
          %v3610 = vpop.f32.mrf.mxu0
          %v3611 = vadd.f32 0.0, %v3610
          %v3612 = vpop.f32.mrf.mxu0
          %v3613 = vadd.f32 0.0, %v3612
          %3614 = vmatmul.bf16.gmra.mxu0 %v3497
          %v3615 = vpop.f32.mrf.mxu0
          %v3616 = vadd.f32 0.0, %v3615
          %v3617 = vpop.f32.mrf.mxu0
          %v3618 = vadd.f32 0.0, %v3617
          %3619 = vdwg.mxu0
          %3620 = vmatpush.bf16.msra.mxu0 %v3370
          %3621 = vmatpush.bf16.msra.mxu0 %v3369
          %3622 = vmatpush.bf16.msra.mxu0 %v3368
          %3623 = vmatpush.bf16.msra.mxu0 %v3367
          %3624 = vmatpush.bf16.msra.mxu0 %v3366
          %3625 = vmatpush.bf16.msra.mxu0 %v3365
          %3626 = vmatpush.bf16.msra.mxu0 %v3364
          %3627 = vmatpush.bf16.msra.mxu0 %v3363
          %3628 = vmatmul.bf16.gmra.mxu0 %v3468
          %v3629 = vpop.f32.mrf.mxu0
          %v3630 = vadd.f32 %v3541, %v3629
          %v3631 = vpop.f32.mrf.mxu0
          %v3632 = vadd.f32 %v3543, %v3631
          %3633 = vmatmul.bf16.gmra.mxu0 %v3470
          %v3634 = vpop.f32.mrf.mxu0
          %v3635 = vadd.f32 %v3546, %v3634
          %v3636 = vpop.f32.mrf.mxu0
          %v3637 = vadd.f32 %v3548, %v3636
          %3638 = vmatmul.bf16.gmra.mxu0 %v3472
          %v3639 = vpop.f32.mrf.mxu0
          %v3640 = vadd.f32 %v3551, %v3639
          %v3641 = vpop.f32.mrf.mxu0
          %v3642 = vadd.f32 %v3553, %v3641
          %3643 = vmatmul.bf16.gmra.mxu0 %v3474
          %v3644 = vpop.f32.mrf.mxu0
          %v3645 = vadd.f32 %v3556, %v3644
          %v3646 = vpop.f32.mrf.mxu0
          %v3647 = vadd.f32 %v3558, %v3646
          %3648 = vmatmul.bf16.gmra.mxu0 %v3476
          %v3649 = vpop.f32.mrf.mxu0
          %v3650 = vadd.f32 %v3561, %v3649
          %v3651 = vpop.f32.mrf.mxu0
          %v3652 = vadd.f32 %v3563, %v3651
          %3653 = vmatmul.bf16.gmra.mxu0 %v3478
          %v3654 = vpop.f32.mrf.mxu0
          %v3655 = vadd.f32 %v3566, %v3654
          %v3656 = vpop.f32.mrf.mxu0
          %v3657 = vadd.f32 %v3568, %v3656
          %3658 = vmatmul.bf16.gmra.mxu0 %v3480
          %v3659 = vpop.f32.mrf.mxu0
          %v3660 = vadd.f32 %v3571, %v3659
          %v3661 = vpop.f32.mrf.mxu0
          %v3662 = vadd.f32 %v3573, %v3661
          %3663 = vmatmul.bf16.gmra.mxu0 %v3482
          %v3664 = vpop.f32.mrf.mxu0
          %v3665 = vadd.f32 %v3576, %v3664
          %v3666 = vpop.f32.mrf.mxu0
          %v3667 = vadd.f32 %v3578, %v3666
          %3668 = vmatmul.bf16.gmra.mxu0 %v3484
          %v3669 = vpop.f32.mrf.mxu0
          %v3670 = vadd.f32 %v3581, %v3669
          %v3671 = vpop.f32.mrf.mxu0
          %v3672 = vadd.f32 %v3583, %v3671
          %3673 = vmatmul.bf16.gmra.mxu0 %v3486
          %v3674 = vpop.f32.mrf.mxu0
          %v3675 = vadd.f32 %v3586, %v3674
          %v3676 = vpop.f32.mrf.mxu0
          %v3677 = vadd.f32 %v3588, %v3676
          %3678 = vmatmul.bf16.gmra.mxu0 %v3488
          %v3679 = vpop.f32.mrf.mxu0
          %v3680 = vadd.f32 %v3591, %v3679
          %v3681 = vpop.f32.mrf.mxu0
          %v3682 = vadd.f32 %v3593, %v3681
          %3683 = vmatmul.bf16.gmra.mxu0 %v3490
          %v3684 = vpop.f32.mrf.mxu0
          %v3685 = vadd.f32 %v3596, %v3684
          %v3686 = vpop.f32.mrf.mxu0
          %v3687 = vadd.f32 %v3598, %v3686
          %3688 = vmatmul.bf16.gmra.mxu0 %v3492
          %v3689 = vpop.f32.mrf.mxu0
          %v3690 = vadd.f32 %v3601, %v3689
          %v3691 = vpop.f32.mrf.mxu0
          %v3692 = vadd.f32 %v3603, %v3691
          %3693 = vmatmul.bf16.gmra.mxu0 %v3494
          %v3694 = vpop.f32.mrf.mxu0
          %v3695 = vadd.f32 %v3606, %v3694
          %v3696 = vpop.f32.mrf.mxu0
          %v3697 = vadd.f32 %v3608, %v3696
          %3698 = vmatmul.bf16.gmra.mxu0 %v3496
          %v3699 = vpop.f32.mrf.mxu0
          %v3700 = vadd.f32 %v3611, %v3699
          %v3701 = vpop.f32.mrf.mxu0
          %v3702 = vadd.f32 %v3613, %v3701
          %3703 = vmatmul.bf16.gmra.mxu0 %v3498
          %v3704 = vpop.f32.mrf.mxu0
          %v3705 = vadd.f32 %v3616, %v3704
          %v3706 = vpop.f32.mrf.mxu0
          %v3707 = vadd.f32 %v3618, %v3706
          %3708 = vdwg.mxu0
          %v3709 = vmax.f32 %v3630, %v3650
          %v3710 = vmax.f32 %v3632, %v3652
          %v3711 = vmax.f32 %v3635, %v3655
          %v3712 = vmax.f32 %v3637, %v3657
          %v3713 = vmax.f32 %v3640, %v3660
          %v3714 = vmax.f32 %v3642, %v3662
          %v3715 = vmax.f32 %v3645, %v3665
          %v3716 = vmax.f32 %v3647, %v3667
          %v3717 = vmax.f32 %v3670, %v3690
          %v3718 = vmax.f32 %v3672, %v3692
          %v3719 = vmax.f32 %v3675, %v3695
          %v3720 = vmax.f32 %v3677, %v3697
          %v3721 = vmax.f32 %v3680, %v3700
          %v3722 = vmax.f32 %v3682, %v3702
          %v3723 = vmax.f32 %v3685, %v3705
          %v3724 = vmax.f32 %v3687, %v3707
          %v3725 = vmax.f32 %v3709, %v3717
          %v3726 = vmax.f32 %v3710, %v3718
          %v3727 = vmax.f32 %v3711, %v3719
          %v3728 = vmax.f32 %v3712, %v3720
          %v3729 = vmax.f32 %v3713, %v3721
          %v3730 = vmax.f32 %v3714, %v3722
          %v3731 = vmax.f32 %v3715, %v3723
          %v3732 = vmax.f32 %v3716, %v3724
          %v3733 = vld [vmem:[%s8] sm:$0xf]
          %v3734 = vld [vmem:[%s8 + $0x4] sm:$0xf]
          %v3735 = vld [vmem:[%s8 + $0x8] sm:$0xf]
          %v3736 = vld [vmem:[%s8 + $0xc] sm:$0xf]
          %v3737 = vld [vmem:[%s8 + $0x10] sm:$0xf]
          %v3738 = vld [vmem:[%s8 + $0x14] sm:$0xf]
          %v3739 = vld [vmem:[%s8 + $0x18] sm:$0xf]
          %v3740 = vld [vmem:[%s8 + $0x1c] sm:$0xf]
          %v3741 = vld [vmem:[%s8 + $0x20] sm:$0xf]
          %v3742 = vld [vmem:[%s8 + $0x24] sm:$0xf]
          %v3743 = vld [vmem:[%s8 + $0x28] sm:$0xf]
          %v3744 = vld [vmem:[%s8 + $0x2c] sm:$0xf]
          %v3745 = vld [vmem:[%s8 + $0x30] sm:$0xf]
          %v3746 = vld [vmem:[%s8 + $0x34] sm:$0xf]
          %v3747 = vld [vmem:[%s8 + $0x38] sm:$0xf]
          %v3748 = vld [vmem:[%s8 + $0x3c] sm:$0xf]
          %v3749 = vld [vmem:[%s8 + $0x40] sm:$0xf]
          %v3750 = vld [vmem:[%s8 + $0x44] sm:$0xf]
          %v3751 = vld [vmem:[%s8 + $0x48] sm:$0xf]
          %v3752 = vld [vmem:[%s8 + $0x4c] sm:$0xf]
          %v3753 = vld [vmem:[%s8 + $0x50] sm:$0xf]
          %v3754 = vld [vmem:[%s8 + $0x54] sm:$0xf]
          %v3755 = vld [vmem:[%s8 + $0x58] sm:$0xf]
          %v3756 = vld [vmem:[%s8 + $0x5c] sm:$0xf]
          %v3757 = vld [vmem:[%s8 + $0x60] sm:$0xf]
          %v3758 = vld [vmem:[%s8 + $0x64] sm:$0xf]
          %v3759 = vld [vmem:[%s8 + $0x68] sm:$0xf]
          %v3760 = vld [vmem:[%s8 + $0x6c] sm:$0xf]
          %v3761 = vld [vmem:[%s8 + $0x70] sm:$0xf]
          %v3762 = vld [vmem:[%s8 + $0x74] sm:$0xf]
          %v3763 = vld [vmem:[%s8 + $0x78] sm:$0xf]
          %v3764 = vld [vmem:[%s8 + $0x7c] sm:$0xf]
          %v3765 = vld [vmem:[%s8 + $0x80] sm:$0xf]
          %v3766 = vld [vmem:[%s8 + $0x84] sm:$0xf]
          %v3767 = vld [vmem:[%s8 + $0x88] sm:$0xf]
          %v3768 = vld [vmem:[%s8 + $0x8c] sm:$0xf]
          %v3769 = vld [vmem:[%s8 + $0x90] sm:$0xf]
          %v3770 = vld [vmem:[%s8 + $0x94] sm:$0xf]
          %v3771 = vld [vmem:[%s8 + $0x98] sm:$0xf]
          %v3772 = vld [vmem:[%s8 + $0x9c] sm:$0xf]
          %v3773 = vld [vmem:[%s8 + $0xa0] sm:$0xf]
          %v3774 = vld [vmem:[%s8 + $0xa4] sm:$0xf]
          %v3775 = vld [vmem:[%s8 + $0xa8] sm:$0xf]
          %v3776 = vld [vmem:[%s8 + $0xac] sm:$0xf]
          %v3777 = vld [vmem:[%s8 + $0xb0] sm:$0xf]
          %v3778 = vld [vmem:[%s8 + $0xb4] sm:$0xf]
          %v3779 = vld [vmem:[%s8 + $0xb8] sm:$0xf]
          %v3780 = vld [vmem:[%s8 + $0xbc] sm:$0xf]
          %v3781 = vld [vmem:[%s8 + $0xc0] sm:$0xf]
          %v3782 = vld [vmem:[%s8 + $0xc4] sm:$0xf]
          %v3783 = vld [vmem:[%s8 + $0xc8] sm:$0xf]
          %v3784 = vld [vmem:[%s8 + $0xcc] sm:$0xf]
          %v3785 = vld [vmem:[%s8 + $0xd0] sm:$0xf]
          %v3786 = vld [vmem:[%s8 + $0xd4] sm:$0xf]
          %v3787 = vld [vmem:[%s8 + $0xd8] sm:$0xf]
          %v3788 = vld [vmem:[%s8 + $0xdc] sm:$0xf]
          %v3789 = vld [vmem:[%s8 + $0xe0] sm:$0xf]
          %v3790 = vld [vmem:[%s8 + $0xe4] sm:$0xf]
          %v3791 = vld [vmem:[%s8 + $0xe8] sm:$0xf]
          %v3792 = vld [vmem:[%s8 + $0xec] sm:$0xf]
          %v3793 = vld [vmem:[%s8 + $0xf0] sm:$0xf]
          %v3794 = vld [vmem:[%s8 + $0xf4] sm:$0xf]
          %v3795 = vld [vmem:[%s8 + $0xf8] sm:$0xf]
          %v3796 = vld [vmem:[%s8 + $0xfc] sm:$0xf]
          %v3797 = vld [vmem:[%s8 + $0x100] sm:$0xf]
          %v3798 = vld [vmem:[%s8 + $0x104] sm:$0xf]
          %v3799 = vld [vmem:[%s8 + $0x108] sm:$0xf]
          %v3800 = vld [vmem:[%s8 + $0x10c] sm:$0xf]
          %v3801 = vld [vmem:[%s8 + $0x110] sm:$0xf]
          %v3802 = vld [vmem:[%s8 + $0x114] sm:$0xf]
          %v3803 = vld [vmem:[%s8 + $0x118] sm:$0xf]
          %v3804 = vld [vmem:[%s8 + $0x11c] sm:$0xf]
          %v3805 = vpack.c.bf16 %v3726, %v3725
          %v3806 = vpack.c.bf16 %v3728, %v3727
          %v3807 = vpack.c.bf16 %v3730, %v3729
          %v3808 = vpack.c.bf16 %v3732, %v3731
          %v3881 = vunpack.c.l.b16 %v3733
          %v3882 = vunpack.c.l.b16 %v3734
          %v3883 = vunpack.c.l.b16 %v3735
          %v3884 = vunpack.c.l.b16 %v3736
          %v3885 = vunpack.c.l.b16 %v3737
          %v3886 = vunpack.c.l.b16 %v3738
          %v3887 = vunpack.c.l.b16 %v3739
          %v3888 = vunpack.c.l.b16 %v3740
          %v3889 = vunpack.c.l.b16 %v3741
          %v3890 = vunpack.c.l.b16 %v3742
          %v3891 = vunpack.c.l.b16 %v3743
          %v3892 = vunpack.c.l.b16 %v3744
          %v3893 = vunpack.c.l.b16 %v3745
          %v3894 = vunpack.c.l.b16 %v3746
          %v3895 = vunpack.c.l.b16 %v3747
          %v3896 = vunpack.c.l.b16 %v3748
          %v3897 = vunpack.c.l.b16 %v3749
          %v3898 = vunpack.c.l.b16 %v3750
          %v3899 = vunpack.c.l.b16 %v3751
          %v3900 = vunpack.c.l.b16 %v3752
          %v3901 = vunpack.c.l.b16 %v3753
          %v3902 = vunpack.c.l.b16 %v3754
          %v3903 = vunpack.c.l.b16 %v3755
          %v3904 = vunpack.c.l.b16 %v3756
          %v3905 = vunpack.c.l.b16 %v3757
          %v3906 = vunpack.c.l.b16 %v3758
          %v3907 = vunpack.c.l.b16 %v3759
          %v3908 = vunpack.c.l.b16 %v3760
          %v3909 = vunpack.c.l.b16 %v3761
          %v3910 = vunpack.c.l.b16 %v3762
          %v3911 = vunpack.c.l.b16 %v3763
          %v3912 = vunpack.c.l.b16 %v3764
          %v3913 = vunpack.c.l.b16 %v3765
          %v3914 = vunpack.c.l.b16 %v3766
          %v3915 = vunpack.c.l.b16 %v3767
          %v3916 = vunpack.c.l.b16 %v3768
          %v3917 = vunpack.c.l.b16 %v3769
          %v3918 = vunpack.c.l.b16 %v3770
          %v3919 = vunpack.c.l.b16 %v3771
          %v3920 = vunpack.c.l.b16 %v3772
          %v3921 = vunpack.c.l.b16 %v3773
          %v3922 = vunpack.c.l.b16 %v3774
          %v3923 = vunpack.c.l.b16 %v3775
          %v3924 = vunpack.c.l.b16 %v3776
          %v3925 = vunpack.c.l.b16 %v3777
          %v3926 = vunpack.c.l.b16 %v3778
          %v3927 = vunpack.c.l.b16 %v3779
          %v3928 = vunpack.c.l.b16 %v3780
          %v3929 = vunpack.c.l.b16 %v3781
          %v3930 = vunpack.c.l.b16 %v3782
          %v3931 = vunpack.c.l.b16 %v3783
          %v3932 = vunpack.c.l.b16 %v3784
          %v3933 = vunpack.c.l.b16 %v3785
          %v3934 = vunpack.c.l.b16 %v3786
          %v3935 = vunpack.c.l.b16 %v3787
          %v3936 = vunpack.c.l.b16 %v3788
          %v3937 = vunpack.c.l.b16 %v3789
          %v3938 = vunpack.c.l.b16 %v3790
          %v3939 = vunpack.c.l.b16 %v3791
          %v3940 = vunpack.c.l.b16 %v3792
          %v3941 = vunpack.c.l.b16 %v3793
          %v3942 = vunpack.c.l.b16 %v3794
          %v3943 = vunpack.c.l.b16 %v3795
          %v3944 = vunpack.c.l.b16 %v3796
          %v3945 = vunpack.c.l.b16 %v3797
          %v3946 = vunpack.c.l.b16 %v3798
          %v3947 = vunpack.c.l.b16 %v3799
          %v3948 = vunpack.c.l.b16 %v3800
          %v3949 = vunpack.c.l.b16 %v3801
          %v3950 = vunpack.c.l.b16 %v3802
          %v3951 = vunpack.c.l.b16 %v3803
          %v3952 = vunpack.c.l.b16 %v3804
          %v3953 = vpack.c.b16 %v3882, %v3881
          %v3954 = vpack.c.b16 %v3884, %v3883
          %v3955 = vpack.c.b16 %v3886, %v3885
          %v3956 = vpack.c.b16 %v3888, %v3887
          %v3957 = vpack.c.b16 %v3890, %v3889
          %v3958 = vpack.c.b16 %v3892, %v3891
          %v3959 = vpack.c.b16 %v3894, %v3893
          %v3960 = vpack.c.b16 %v3896, %v3895
          %v3961 = vpack.c.b16 %v3898, %v3897
          %v3962 = vpack.c.b16 %v3900, %v3899
          %v3963 = vpack.c.b16 %v3902, %v3901
          %v3964 = vpack.c.b16 %v3904, %v3903
          %v3965 = vpack.c.b16 %v3906, %v3905
          %v3966 = vpack.c.b16 %v3908, %v3907
          %v3967 = vpack.c.b16 %v3910, %v3909
          %v3968 = vpack.c.b16 %v3912, %v3911
          %v3969 = vpack.c.b16 %v3914, %v3913
          %v3970 = vpack.c.b16 %v3916, %v3915
          %v3971 = vpack.c.b16 %v3918, %v3917
          %v3972 = vpack.c.b16 %v3920, %v3919
          %v3973 = vpack.c.b16 %v3922, %v3921
          %v3974 = vpack.c.b16 %v3924, %v3923
          %v3975 = vpack.c.b16 %v3926, %v3925
          %v3976 = vpack.c.b16 %v3928, %v3927
          %v3977 = vpack.c.b16 %v3930, %v3929
          %v3978 = vpack.c.b16 %v3932, %v3931
          %v3979 = vpack.c.b16 %v3934, %v3933
          %v3980 = vpack.c.b16 %v3936, %v3935
          %v3981 = vpack.c.b16 %v3938, %v3937
          %v3982 = vpack.c.b16 %v3940, %v3939
          %v3983 = vpack.c.b16 %v3942, %v3941
          %v3984 = vpack.c.b16 %v3944, %v3943
          %v3985 = vpack.c.b16 %v3946, %v3945
          %v3986 = vpack.c.b16 %v3948, %v3947
          %v3987 = vpack.c.b16 %v3950, %v3949
          %v3988 = vpack.c.b16 %v3952, %v3951
          %vm3989 = vcmask 523264
          %v3991 = vsel %vm3989, %v3953, 0
          %v3994 = vsel %vm3989, %v3954, 0
          %v3997 = vsel %vm3989, %v3955, 0
          %v4000 = vsel %vm3989, %v3956, 0
          %v4003 = vsel %vm3989, %v3957, 0
          %v4006 = vsel %vm3989, %v3958, 0
          %v4009 = vsel %vm3989, %v3959, 0
          %v4012 = vsel %vm3989, %v3960, 0
          %v4015 = vsel %vm3989, %v3961, 0
          %v4018 = vsel %vm3989, %v3962, 0
          %v4021 = vsel %vm3989, %v3963, 0
          %v4024 = vsel %vm3989, %v3964, 0
          %v4027 = vsel %vm3989, %v3965, 0
          %v4030 = vsel %vm3989, %v3966, 0
          %v4033 = vsel %vm3989, %v3967, 0
          %v4036 = vsel %vm3989, %v3968, 0
          %v4039 = vsel %vm3989, %v3969, 0
          %v4042 = vsel %vm3989, %v3970, 0
          %v4045 = vsel %vm3989, %v3971, 0
          %v4048 = vsel %vm3989, %v3972, 0
          %v4051 = vsel %vm3989, %v3973, 0
          %v4054 = vsel %vm3989, %v3974, 0
          %v4057 = vsel %vm3989, %v3975, 0
          %v4060 = vsel %vm3989, %v3976, 0
          %v4063 = vsel %vm3989, %v3977, 0
          %v4066 = vsel %vm3989, %v3978, 0
          %v4069 = vsel %vm3989, %v3979, 0
          %v4072 = vsel %vm3989, %v3980, 0
          %v4075 = vsel %vm3989, %v3981, 0
          %v4078 = vsel %vm3989, %v3982, 0
          %v4081 = vsel %vm3989, %v3983, 0
          %v4084 = vsel %vm3989, %v3984, 0
          %v4087 = vsel %vm3989, %v3985, 0
          %v4090 = vsel %vm3989, %v3986, 0
          %v4093 = vsel %vm3989, %v3987, 0
          %v4096 = vsel %vm3989, %v3988, 0
          %4098 = vmatpush.bf16.msra.mxu0 0
          %4099 = vmatpush.bf16.msra.mxu0 0
          %4100 = vmatpush.bf16.msra.mxu0 0
          %4101 = vmatpush.bf16.msra.mxu0 0
          %4102 = vmatpush.bf16.msra.mxu0 %v3808
          %4103 = vmatpush.bf16.msra.mxu0 %v3807
          %4104 = vmatpush.bf16.msra.mxu0 %v3806
          %4105 = vmatpush.bf16.msra.mxu0 %v3805
          %4106 = vmatmul.bf16.gmra.mxu0 %v3991
          %v4107 = vpop.f32.mrf.mxu0
          %v4108 = vadd.f32 0.0, %v4107
          %v4109 = vpop.f32.mrf.mxu0
          %v4110 = vadd.f32 0.0, %v4109
          %4111 = vmatmul.bf16.gmra.mxu0 %v3994
          %v4112 = vpop.f32.mrf.mxu0
          %v4113 = vadd.f32 0.0, %v4112
          %v4114 = vpop.f32.mrf.mxu0
          %v4115 = vadd.f32 0.0, %v4114
          %4116 = vmatmul.bf16.gmra.mxu0 %v3997
          %v4117 = vpop.f32.mrf.mxu0
          %v4118 = vadd.f32 0.0, %v4117
          %v4119 = vpop.f32.mrf.mxu0
          %v4120 = vadd.f32 0.0, %v4119
          %4121 = vmatmul.bf16.gmra.mxu0 %v4000
          %v4122 = vpop.f32.mrf.mxu0
          %v4123 = vadd.f32 0.0, %v4122
          %v4124 = vpop.f32.mrf.mxu0
          %v4125 = vadd.f32 0.0, %v4124
          %4126 = vmatmul.bf16.gmra.mxu0 %v4003
          %v4127 = vpop.f32.mrf.mxu0
          %v4128 = vadd.f32 0.0, %v4127
          %v4129 = vpop.f32.mrf.mxu0
          %v4130 = vadd.f32 0.0, %v4129
          %4131 = vmatmul.bf16.gmra.mxu0 %v4006
          %v4132 = vpop.f32.mrf.mxu0
          %v4133 = vadd.f32 0.0, %v4132
          %v4134 = vpop.f32.mrf.mxu0
          %v4135 = vadd.f32 0.0, %v4134
          %4136 = vmatmul.bf16.gmra.mxu0 %v4009
          %v4137 = vpop.f32.mrf.mxu0
          %v4138 = vadd.f32 0.0, %v4137
          %v4139 = vpop.f32.mrf.mxu0
          %v4140 = vadd.f32 0.0, %v4139
          %4141 = vmatmul.bf16.gmra.mxu0 %v4012
          %v4142 = vpop.f32.mrf.mxu0
          %v4143 = vadd.f32 0.0, %v4142
          %v4144 = vpop.f32.mrf.mxu0
          %v4145 = vadd.f32 0.0, %v4144
          %4146 = vmatmul.bf16.gmra.mxu0 %v4015
          %v4147 = vpop.f32.mrf.mxu0
          %v4148 = vadd.f32 0.0, %v4147
          %v4149 = vpop.f32.mrf.mxu0
          %v4150 = vadd.f32 0.0, %v4149
          %4151 = vmatmul.bf16.gmra.mxu0 %v4018
          %v4152 = vpop.f32.mrf.mxu0
          %v4153 = vadd.f32 0.0, %v4152
          %v4154 = vpop.f32.mrf.mxu0
          %v4155 = vadd.f32 0.0, %v4154
          %4156 = vmatmul.bf16.gmra.mxu0 %v4021
          %v4157 = vpop.f32.mrf.mxu0
          %v4158 = vadd.f32 0.0, %v4157
          %v4159 = vpop.f32.mrf.mxu0
          %v4160 = vadd.f32 0.0, %v4159
          %4161 = vmatmul.bf16.gmra.mxu0 %v4024
          %v4162 = vpop.f32.mrf.mxu0
          %v4163 = vadd.f32 0.0, %v4162
          %v4164 = vpop.f32.mrf.mxu0
          %v4165 = vadd.f32 0.0, %v4164
          %4166 = vmatmul.bf16.gmra.mxu0 %v4027
          %v4167 = vpop.f32.mrf.mxu0
          %v4168 = vadd.f32 0.0, %v4167
          %v4169 = vpop.f32.mrf.mxu0
          %v4170 = vadd.f32 0.0, %v4169
          %4171 = vmatmul.bf16.gmra.mxu0 %v4030
          %v4172 = vpop.f32.mrf.mxu0
          %v4173 = vadd.f32 0.0, %v4172
          %v4174 = vpop.f32.mrf.mxu0
          %v4175 = vadd.f32 0.0, %v4174
          %4176 = vmatmul.bf16.gmra.mxu0 %v4033
          %v4177 = vpop.f32.mrf.mxu0
          %v4178 = vadd.f32 0.0, %v4177
          %v4179 = vpop.f32.mrf.mxu0
          %v4180 = vadd.f32 0.0, %v4179
          %4181 = vmatmul.bf16.gmra.mxu0 %v4036
          %v4182 = vpop.f32.mrf.mxu0
          %v4183 = vadd.f32 0.0, %v4182
          %v4184 = vpop.f32.mrf.mxu0
          %v4185 = vadd.f32 0.0, %v4184
          %4186 = vmatmul.bf16.gmra.mxu0 %v4039
          %v4187 = vpop.f32.mrf.mxu0
          %v4188 = vadd.f32 0.0, %v4187
          %v4189 = vpop.f32.mrf.mxu0
          %v4190 = vadd.f32 0.0, %v4189
          %4191 = vmatmul.bf16.gmra.mxu0 %v4042
          %v4192 = vpop.f32.mrf.mxu0
          %v4193 = vadd.f32 0.0, %v4192
          %v4194 = vpop.f32.mrf.mxu0
          %v4195 = vadd.f32 0.0, %v4194
          %4196 = vmatmul.bf16.gmra.mxu0 %v4045
          %v4197 = vpop.f32.mrf.mxu0
          %v4198 = vadd.f32 0.0, %v4197
          %v4199 = vpop.f32.mrf.mxu0
          %v4200 = vadd.f32 0.0, %v4199
          %4201 = vmatmul.bf16.gmra.mxu0 %v4048
          %v4202 = vpop.f32.mrf.mxu0
          %v4203 = vadd.f32 0.0, %v4202
          %v4204 = vpop.f32.mrf.mxu0
          %v4205 = vadd.f32 0.0, %v4204
          %4206 = vmatmul.bf16.gmra.mxu0 %v4051
          %v4207 = vpop.f32.mrf.mxu0
          %v4208 = vadd.f32 0.0, %v4207
          %v4209 = vpop.f32.mrf.mxu0
          %v4210 = vadd.f32 0.0, %v4209
          %4211 = vmatmul.bf16.gmra.mxu0 %v4054
          %v4212 = vpop.f32.mrf.mxu0
          %v4213 = vadd.f32 0.0, %v4212
          %v4214 = vpop.f32.mrf.mxu0
          %v4215 = vadd.f32 0.0, %v4214
          %4216 = vmatmul.bf16.gmra.mxu0 %v4057
          %v4217 = vpop.f32.mrf.mxu0
          %v4218 = vadd.f32 0.0, %v4217
          %v4219 = vpop.f32.mrf.mxu0
          %v4220 = vadd.f32 0.0, %v4219
          %4221 = vmatmul.bf16.gmra.mxu0 %v4060
          %v4222 = vpop.f32.mrf.mxu0
          %v4223 = vadd.f32 0.0, %v4222
          %v4224 = vpop.f32.mrf.mxu0
          %v4225 = vadd.f32 0.0, %v4224
          %4226 = vmatmul.bf16.gmra.mxu0 %v4063
          %v4227 = vpop.f32.mrf.mxu0
          %v4228 = vadd.f32 0.0, %v4227
          %v4229 = vpop.f32.mrf.mxu0
          %v4230 = vadd.f32 0.0, %v4229
          %4231 = vmatmul.bf16.gmra.mxu0 %v4066
          %v4232 = vpop.f32.mrf.mxu0
          %v4233 = vadd.f32 0.0, %v4232
          %v4234 = vpop.f32.mrf.mxu0
          %v4235 = vadd.f32 0.0, %v4234
          %4236 = vmatmul.bf16.gmra.mxu0 %v4069
          %v4237 = vpop.f32.mrf.mxu0
          %v4238 = vadd.f32 0.0, %v4237
          %v4239 = vpop.f32.mrf.mxu0
          %v4240 = vadd.f32 0.0, %v4239
          %4241 = vmatmul.bf16.gmra.mxu0 %v4072
          %v4242 = vpop.f32.mrf.mxu0
          %v4243 = vadd.f32 0.0, %v4242
          %v4244 = vpop.f32.mrf.mxu0
          %v4245 = vadd.f32 0.0, %v4244
          %4246 = vmatmul.bf16.gmra.mxu0 %v4075
          %v4247 = vpop.f32.mrf.mxu0
          %v4248 = vadd.f32 0.0, %v4247
          %v4249 = vpop.f32.mrf.mxu0
          %v4250 = vadd.f32 0.0, %v4249
          %4251 = vmatmul.bf16.gmra.mxu0 %v4078
          %v4252 = vpop.f32.mrf.mxu0
          %v4253 = vadd.f32 0.0, %v4252
          %v4254 = vpop.f32.mrf.mxu0
          %v4255 = vadd.f32 0.0, %v4254
          %4256 = vmatmul.bf16.gmra.mxu0 %v4081
          %v4257 = vpop.f32.mrf.mxu0
          %v4258 = vadd.f32 0.0, %v4257
          %v4259 = vpop.f32.mrf.mxu0
          %v4260 = vadd.f32 0.0, %v4259
          %4261 = vmatmul.bf16.gmra.mxu0 %v4084
          %v4262 = vpop.f32.mrf.mxu0
          %v4263 = vadd.f32 0.0, %v4262
          %v4264 = vpop.f32.mrf.mxu0
          %v4265 = vadd.f32 0.0, %v4264
          %4266 = vmatmul.bf16.gmra.mxu0 %v4087
          %v4267 = vpop.f32.mrf.mxu0
          %v4268 = vadd.f32 0.0, %v4267
          %v4269 = vpop.f32.mrf.mxu0
          %v4270 = vadd.f32 0.0, %v4269
          %4271 = vmatmul.bf16.gmra.mxu0 %v4090
          %v4272 = vpop.f32.mrf.mxu0
          %v4273 = vadd.f32 0.0, %v4272
          %v4274 = vpop.f32.mrf.mxu0
          %v4275 = vadd.f32 0.0, %v4274
          %4276 = vmatmul.bf16.gmra.mxu0 %v4093
          %v4277 = vpop.f32.mrf.mxu0
          %v4278 = vadd.f32 0.0, %v4277
          %v4279 = vpop.f32.mrf.mxu0
          %v4280 = vadd.f32 0.0, %v4279
          %4281 = vmatmul.bf16.gmra.mxu0 %v4096
          %v4282 = vpop.f32.mrf.mxu0
          %v4283 = vadd.f32 0.0, %v4282
          %v4284 = vpop.f32.mrf.mxu0
          %v4285 = vadd.f32 0.0, %v4284
          %4286 = vdwg.mxu0
          %v4287 = vpack.c.bf16 %v4108, %v4108
          %v4288 = vpack.c.bf16 %v4110, %v4110
          %v4289 = vpack.c.bf16 %v4113, %v4113
          %v4290 = vpack.c.bf16 %v4115, %v4115
          %v4291 = vpack.c.bf16 %v4118, %v4118
          %v4292 = vpack.c.bf16 %v4120, %v4120
          %v4293 = vpack.c.bf16 %v4123, %v4123
          %v4294 = vpack.c.bf16 %v4125, %v4125
          %v4295 = vpack.c.bf16 %v4128, %v4128
          %v4296 = vpack.c.bf16 %v4130, %v4130
          %v4297 = vpack.c.bf16 %v4133, %v4133
          %v4298 = vpack.c.bf16 %v4135, %v4135
          %v4299 = vpack.c.bf16 %v4138, %v4138
          %v4300 = vpack.c.bf16 %v4140, %v4140
          %v4301 = vpack.c.bf16 %v4143, %v4143
          %v4302 = vpack.c.bf16 %v4145, %v4145
          %v4303 = vpack.c.bf16 %v4148, %v4148
          %v4304 = vpack.c.bf16 %v4150, %v4150
          %v4305 = vpack.c.bf16 %v4153, %v4153
          %v4306 = vpack.c.bf16 %v4155, %v4155
          %v4307 = vpack.c.bf16 %v4158, %v4158
          %v4308 = vpack.c.bf16 %v4160, %v4160
          %v4309 = vpack.c.bf16 %v4163, %v4163
          %v4310 = vpack.c.bf16 %v4165, %v4165
          %v4311 = vpack.c.bf16 %v4168, %v4168
          %v4312 = vpack.c.bf16 %v4170, %v4170
          %v4313 = vpack.c.bf16 %v4173, %v4173
          %v4314 = vpack.c.bf16 %v4175, %v4175
          %v4315 = vpack.c.bf16 %v4178, %v4178
          %v4316 = vpack.c.bf16 %v4180, %v4180
          %v4317 = vpack.c.bf16 %v4183, %v4183
          %v4318 = vpack.c.bf16 %v4185, %v4185
          %v4319 = vpack.c.bf16 %v4188, %v4188
          %v4320 = vpack.c.bf16 %v4190, %v4190
          %v4321 = vpack.c.bf16 %v4193, %v4193
          %v4322 = vpack.c.bf16 %v4195, %v4195
          %v4323 = vpack.c.bf16 %v4198, %v4198
          %v4324 = vpack.c.bf16 %v4200, %v4200
          %v4325 = vpack.c.bf16 %v4203, %v4203
          %v4326 = vpack.c.bf16 %v4205, %v4205
          %v4327 = vpack.c.bf16 %v4208, %v4208
          %v4328 = vpack.c.bf16 %v4210, %v4210
          %v4329 = vpack.c.bf16 %v4213, %v4213
          %v4330 = vpack.c.bf16 %v4215, %v4215
          %v4331 = vpack.c.bf16 %v4218, %v4218
          %v4332 = vpack.c.bf16 %v4220, %v4220
          %v4333 = vpack.c.bf16 %v4223, %v4223
          %v4334 = vpack.c.bf16 %v4225, %v4225
          %v4335 = vpack.c.bf16 %v4228, %v4228
          %v4336 = vpack.c.bf16 %v4230, %v4230
          %v4337 = vpack.c.bf16 %v4233, %v4233
          %v4338 = vpack.c.bf16 %v4235, %v4235
          %v4339 = vpack.c.bf16 %v4238, %v4238
          %v4340 = vpack.c.bf16 %v4240, %v4240
          %v4341 = vpack.c.bf16 %v4243, %v4243
          %v4342 = vpack.c.bf16 %v4245, %v4245
          %v4343 = vpack.c.bf16 %v4248, %v4248
          %v4344 = vpack.c.bf16 %v4250, %v4250
          %v4345 = vpack.c.bf16 %v4253, %v4253
          %v4346 = vpack.c.bf16 %v4255, %v4255
          %v4347 = vpack.c.bf16 %v4258, %v4258
          %v4348 = vpack.c.bf16 %v4260, %v4260
          %v4349 = vpack.c.bf16 %v4263, %v4263
          %v4350 = vpack.c.bf16 %v4265, %v4265
          %v4351 = vpack.c.bf16 %v4268, %v4268
          %v4352 = vpack.c.bf16 %v4270, %v4270
          %v4353 = vpack.c.bf16 %v4273, %v4273
          %v4354 = vpack.c.bf16 %v4275, %v4275
          %v4355 = vpack.c.bf16 %v4278, %v4278
          %v4356 = vpack.c.bf16 %v4280, %v4280
          %v4357 = vpack.c.bf16 %v4283, %v4283
          %v4358 = vpack.c.bf16 %v4285, %v4285
          %v4359 = vld [vmem:[%s2] sm:$0xf]
          %v4360 = vld [vmem:[%s2 + $0x4] sm:$0xf]
          %v4361 = vld [vmem:[%s2 + $0x8] sm:$0xf]
          %v4362 = vld [vmem:[%s2 + $0xc] sm:$0xf]
          %v4363 = vld [vmem:[%s2 + $0x10] sm:$0xf]
          %v4364 = vld [vmem:[%s2 + $0x14] sm:$0xf]
          %v4365 = vld [vmem:[%s2 + $0x18] sm:$0xf]
          %v4366 = vld [vmem:[%s2 + $0x1c] sm:$0xf]
          %s4367 = scalar_lea.vmem %s2, 32
          %v4368 = vld [vmem:[%s4367] sm:$0xf]
          %v4369 = vld [vmem:[%s4367 + $0x4] sm:$0xf]
          %v4370 = vld [vmem:[%s4367 + $0x8] sm:$0xf]
          %v4371 = vld [vmem:[%s4367 + $0xc] sm:$0xf]
          %v4372 = vld [vmem:[%s4367 + $0x10] sm:$0xf]
          %v4373 = vld [vmem:[%s4367 + $0x14] sm:$0xf]
          %v4374 = vld [vmem:[%s4367 + $0x18] sm:$0xf]
          %v4375 = vld [vmem:[%s4367 + $0x1c] sm:$0xf]
          %v4384 = vunpack.c.l.b16 %v4295
          %v4385 = vunpack.c.l.b16 %v4296
          %v4386 = vunpack.c.l.b16 %v4297
          %v4387 = vunpack.c.l.b16 %v4298
          %v4388 = vunpack.c.l.b16 %v4299
          %v4389 = vunpack.c.l.b16 %v4300
          %v4390 = vunpack.c.l.b16 %v4301
          %v4391 = vunpack.c.l.b16 %v4302
          %v4392 = vpack.c.b16 %v4385, %v4384
          %v4393 = vpack.c.b16 %v4387, %v4386
          %v4394 = vpack.c.b16 %v4389, %v4388
          %v4395 = vpack.c.b16 %v4391, %v4390
          %v4404 = vunpack.c.l.b16 %v4368
          %v4405 = vunpack.c.l.b16 %v4369
          %v4406 = vunpack.c.l.b16 %v4370
          %v4407 = vunpack.c.l.b16 %v4371
          %v4408 = vunpack.c.l.b16 %v4372
          %v4409 = vunpack.c.l.b16 %v4373
          %v4410 = vunpack.c.l.b16 %v4374
          %v4411 = vunpack.c.l.b16 %v4375
          %v4412 = vpack.c.b16 %v4405, %v4404
          %v4413 = vpack.c.b16 %v4407, %v4406
          %v4414 = vpack.c.b16 %v4409, %v4408
          %v4415 = vpack.c.b16 %v4411, %v4410
          %v4421 = vsel %vm3989, %v4392, 0
          %v4424 = vsel %vm3989, %v4393, 0
          %v4427 = vsel %vm3989, %v4394, 0
          %v4430 = vsel %vm3989, %v4395, 0
          %4432 = vmatpush.bf16.msra.mxu0 0
          %4433 = vmatpush.bf16.msra.mxu0 0
          %4434 = vmatpush.bf16.msra.mxu0 0
          %4435 = vmatpush.bf16.msra.mxu0 0
          %4436 = vmatpush.bf16.msra.mxu0 %v4415
          %4437 = vmatpush.bf16.msra.mxu0 %v4414
          %4438 = vmatpush.bf16.msra.mxu0 %v4413
          %4439 = vmatpush.bf16.msra.mxu0 %v4412
          %4440 = vmatmul.bf16.gmra.mxu0 %v4421
          %v4441 = vpop.f32.mrf.mxu0
          %v4442 = vadd.f32 0.0, %v4441
          %v4443 = vpop.f32.mrf.mxu0
          %v4444 = vadd.f32 0.0, %v4443
          %4445 = vmatmul.bf16.gmra.mxu0 %v4424
          %v4446 = vpop.f32.mrf.mxu0
          %v4447 = vadd.f32 0.0, %v4446
          %v4448 = vpop.f32.mrf.mxu0
          %v4449 = vadd.f32 0.0, %v4448
          %4450 = vmatmul.bf16.gmra.mxu0 %v4427
          %v4451 = vpop.f32.mrf.mxu0
          %v4452 = vadd.f32 0.0, %v4451
          %v4453 = vpop.f32.mrf.mxu0
          %v4454 = vadd.f32 0.0, %v4453
          %4455 = vmatmul.bf16.gmra.mxu0 %v4430
          %v4456 = vpop.f32.mrf.mxu0
          %v4457 = vadd.f32 0.0, %v4456
          %v4458 = vpop.f32.mrf.mxu0
          %v4459 = vadd.f32 0.0, %v4458
          %4460 = vdwg.mxu0
          %v4469 = vunpack.c.l.b16 %v4287
          %v4470 = vunpack.c.l.b16 %v4288
          %v4471 = vunpack.c.l.b16 %v4289
          %v4472 = vunpack.c.l.b16 %v4290
          %v4473 = vunpack.c.l.b16 %v4291
          %v4474 = vunpack.c.l.b16 %v4292
          %v4475 = vunpack.c.l.b16 %v4293
          %v4476 = vunpack.c.l.b16 %v4294
          %v4477 = vpack.c.b16 %v4470, %v4469
          %v4478 = vpack.c.b16 %v4472, %v4471
          %v4479 = vpack.c.b16 %v4474, %v4473
          %v4480 = vpack.c.b16 %v4476, %v4475
          %v4489 = vunpack.c.l.b16 %v4359
          %v4490 = vunpack.c.l.b16 %v4360
          %v4491 = vunpack.c.l.b16 %v4361
          %v4492 = vunpack.c.l.b16 %v4362
          %v4493 = vunpack.c.l.b16 %v4363
          %v4494 = vunpack.c.l.b16 %v4364
          %v4495 = vunpack.c.l.b16 %v4365
          %v4496 = vunpack.c.l.b16 %v4366
          %v4497 = vpack.c.b16 %v4490, %v4489
          %v4498 = vpack.c.b16 %v4492, %v4491
          %v4499 = vpack.c.b16 %v4494, %v4493
          %v4500 = vpack.c.b16 %v4496, %v4495
          %v4506 = vsel %vm3989, %v4477, 0
          %v4509 = vsel %vm3989, %v4478, 0
          %v4512 = vsel %vm3989, %v4479, 0
          %v4515 = vsel %vm3989, %v4480, 0
          %4517 = vmatpush.bf16.msra.mxu0 0
          %4518 = vmatpush.bf16.msra.mxu0 0
          %4519 = vmatpush.bf16.msra.mxu0 0
          %4520 = vmatpush.bf16.msra.mxu0 0
          %4521 = vmatpush.bf16.msra.mxu0 %v4500
          %4522 = vmatpush.bf16.msra.mxu0 %v4499
          %4523 = vmatpush.bf16.msra.mxu0 %v4498
          %4524 = vmatpush.bf16.msra.mxu0 %v4497
          %4525 = vmatmul.bf16.gmra.mxu0 %v4506
          %v4526 = vpop.f32.mrf.mxu0
          %v4527 = vadd.f32 %v4442, %v4526
          %v4528 = vpop.f32.mrf.mxu0
          %v4529 = vadd.f32 %v4444, %v4528
          %4530 = vmatmul.bf16.gmra.mxu0 %v4509
          %v4531 = vpop.f32.mrf.mxu0
          %v4532 = vadd.f32 %v4447, %v4531
          %v4533 = vpop.f32.mrf.mxu0
          %v4534 = vadd.f32 %v4449, %v4533
          %4535 = vmatmul.bf16.gmra.mxu0 %v4512
          %v4536 = vpop.f32.mrf.mxu0
          %v4537 = vadd.f32 %v4452, %v4536
          %v4538 = vpop.f32.mrf.mxu0
          %v4539 = vadd.f32 %v4454, %v4538
          %4540 = vmatmul.bf16.gmra.mxu0 %v4515
          %v4541 = vpop.f32.mrf.mxu0
          %v4542 = vadd.f32 %v4457, %v4541
          %v4543 = vpop.f32.mrf.mxu0
          %v4544 = vadd.f32 %v4459, %v4543
          %4545 = vdwg.mxu0
          %s4546 = scalar_lea.vmem %s2, 64
          %v4547 = vld [vmem:[%s4546] sm:$0xf]
          %v4548 = vld [vmem:[%s4546 + $0x4] sm:$0xf]
          %v4549 = vld [vmem:[%s4546 + $0x8] sm:$0xf]
          %v4550 = vld [vmem:[%s4546 + $0xc] sm:$0xf]
          %v4551 = vld [vmem:[%s4546 + $0x10] sm:$0xf]
          %v4552 = vld [vmem:[%s4546 + $0x14] sm:$0xf]
          %v4553 = vld [vmem:[%s4546 + $0x18] sm:$0xf]
          %v4554 = vld [vmem:[%s4546 + $0x1c] sm:$0xf]
          %v4563 = vunpack.c.l.b16 %v4303
          %v4564 = vunpack.c.l.b16 %v4304
          %v4565 = vunpack.c.l.b16 %v4305
          %v4566 = vunpack.c.l.b16 %v4306
          %v4567 = vunpack.c.l.b16 %v4307
          %v4568 = vunpack.c.l.b16 %v4308
          %v4569 = vunpack.c.l.b16 %v4309
          %v4570 = vunpack.c.l.b16 %v4310
          %v4571 = vpack.c.b16 %v4564, %v4563
          %v4572 = vpack.c.b16 %v4566, %v4565
          %v4573 = vpack.c.b16 %v4568, %v4567
          %v4574 = vpack.c.b16 %v4570, %v4569
          %v4583 = vunpack.c.l.b16 %v4547
          %v4584 = vunpack.c.l.b16 %v4548
          %v4585 = vunpack.c.l.b16 %v4549
          %v4586 = vunpack.c.l.b16 %v4550
          %v4587 = vunpack.c.l.b16 %v4551
          %v4588 = vunpack.c.l.b16 %v4552
          %v4589 = vunpack.c.l.b16 %v4553
          %v4590 = vunpack.c.l.b16 %v4554
          %v4591 = vpack.c.b16 %v4584, %v4583
          %v4592 = vpack.c.b16 %v4586, %v4585
          %v4593 = vpack.c.b16 %v4588, %v4587
          %v4594 = vpack.c.b16 %v4590, %v4589
          %v4600 = vsel %vm3989, %v4571, 0
          %v4603 = vsel %vm3989, %v4572, 0
          %v4606 = vsel %vm3989, %v4573, 0
          %v4609 = vsel %vm3989, %v4574, 0
          %4611 = vmatpush.bf16.msra.mxu0 0
          %4612 = vmatpush.bf16.msra.mxu0 0
          %4613 = vmatpush.bf16.msra.mxu0 0
          %4614 = vmatpush.bf16.msra.mxu0 0
          %4615 = vmatpush.bf16.msra.mxu0 %v4594
          %4616 = vmatpush.bf16.msra.mxu0 %v4593
          %4617 = vmatpush.bf16.msra.mxu0 %v4592
          %4618 = vmatpush.bf16.msra.mxu0 %v4591
          %4619 = vmatmul.bf16.gmra.mxu0 %v4600
          %v4620 = vpop.f32.mrf.mxu0
          %v4621 = vadd.f32 0.0, %v4620
          %v4622 = vpop.f32.mrf.mxu0
          %v4623 = vadd.f32 0.0, %v4622
          %4624 = vmatmul.bf16.gmra.mxu0 %v4603
          %v4625 = vpop.f32.mrf.mxu0
          %v4626 = vadd.f32 0.0, %v4625
          %v4627 = vpop.f32.mrf.mxu0
          %v4628 = vadd.f32 0.0, %v4627
          %4629 = vmatmul.bf16.gmra.mxu0 %v4606
          %v4630 = vpop.f32.mrf.mxu0
          %v4631 = vadd.f32 0.0, %v4630
          %v4632 = vpop.f32.mrf.mxu0
          %v4633 = vadd.f32 0.0, %v4632
          %4634 = vmatmul.bf16.gmra.mxu0 %v4609
          %v4635 = vpop.f32.mrf.mxu0
          %v4636 = vadd.f32 0.0, %v4635
          %v4637 = vpop.f32.mrf.mxu0
          %v4638 = vadd.f32 0.0, %v4637
          %4639 = vdwg.mxu0
          %v4640 = vadd.f32 %v4527, %v4621
          %v4641 = vadd.f32 %v4529, %v4623
          %v4642 = vadd.f32 %v4532, %v4626
          %v4643 = vadd.f32 %v4534, %v4628
          %v4644 = vadd.f32 %v4537, %v4631
          %v4645 = vadd.f32 %v4539, %v4633
          %v4646 = vadd.f32 %v4542, %v4636
          %v4647 = vadd.f32 %v4544, %v4638
          %s4648 = scalar_lea.vmem %s2, 96
          %v4649 = vld [vmem:[%s4648] sm:$0xf]
          %v4650 = vld [vmem:[%s4648 + $0x4] sm:$0xf]
          %v4651 = vld [vmem:[%s4648 + $0x8] sm:$0xf]
          %v4652 = vld [vmem:[%s4648 + $0xc] sm:$0xf]
          %v4653 = vld [vmem:[%s4648 + $0x10] sm:$0xf]
          %v4654 = vld [vmem:[%s4648 + $0x14] sm:$0xf]
          %v4655 = vld [vmem:[%s4648 + $0x18] sm:$0xf]
          %v4656 = vld [vmem:[%s4648 + $0x1c] sm:$0xf]
          %v4665 = vunpack.c.l.b16 %v4311
          %v4666 = vunpack.c.l.b16 %v4312
          %v4667 = vunpack.c.l.b16 %v4313
          %v4668 = vunpack.c.l.b16 %v4314
          %v4669 = vunpack.c.l.b16 %v4315
          %v4670 = vunpack.c.l.b16 %v4316
          %v4671 = vunpack.c.l.b16 %v4317
          %v4672 = vunpack.c.l.b16 %v4318
          %v4673 = vpack.c.b16 %v4666, %v4665
          %v4674 = vpack.c.b16 %v4668, %v4667
          %v4675 = vpack.c.b16 %v4670, %v4669
          %v4676 = vpack.c.b16 %v4672, %v4671
          %v4685 = vunpack.c.l.b16 %v4649
          %v4686 = vunpack.c.l.b16 %v4650
          %v4687 = vunpack.c.l.b16 %v4651
          %v4688 = vunpack.c.l.b16 %v4652
          %v4689 = vunpack.c.l.b16 %v4653
          %v4690 = vunpack.c.l.b16 %v4654
          %v4691 = vunpack.c.l.b16 %v4655
          %v4692 = vunpack.c.l.b16 %v4656
          %v4693 = vpack.c.b16 %v4686, %v4685
          %v4694 = vpack.c.b16 %v4688, %v4687
          %v4695 = vpack.c.b16 %v4690, %v4689
          %v4696 = vpack.c.b16 %v4692, %v4691
          %v4702 = vsel %vm3989, %v4673, 0
          %v4705 = vsel %vm3989, %v4674, 0
          %v4708 = vsel %vm3989, %v4675, 0
          %v4711 = vsel %vm3989, %v4676, 0
          %4713 = vmatpush.bf16.msra.mxu0 0
          %4714 = vmatpush.bf16.msra.mxu0 0
          %4715 = vmatpush.bf16.msra.mxu0 0
          %4716 = vmatpush.bf16.msra.mxu0 0
          %4717 = vmatpush.bf16.msra.mxu0 %v4696
          %4718 = vmatpush.bf16.msra.mxu0 %v4695
          %4719 = vmatpush.bf16.msra.mxu0 %v4694
          %4720 = vmatpush.bf16.msra.mxu0 %v4693
          %4721 = vmatmul.bf16.gmra.mxu0 %v4702
          %v4722 = vpop.f32.mrf.mxu0
          %v4723 = vadd.f32 0.0, %v4722
          %v4724 = vpop.f32.mrf.mxu0
          %v4725 = vadd.f32 0.0, %v4724
          %4726 = vmatmul.bf16.gmra.mxu0 %v4705
          %v4727 = vpop.f32.mrf.mxu0
          %v4728 = vadd.f32 0.0, %v4727
          %v4729 = vpop.f32.mrf.mxu0
          %v4730 = vadd.f32 0.0, %v4729
          %4731 = vmatmul.bf16.gmra.mxu0 %v4708
          %v4732 = vpop.f32.mrf.mxu0
          %v4733 = vadd.f32 0.0, %v4732
          %v4734 = vpop.f32.mrf.mxu0
          %v4735 = vadd.f32 0.0, %v4734
          %4736 = vmatmul.bf16.gmra.mxu0 %v4711
          %v4737 = vpop.f32.mrf.mxu0
          %v4738 = vadd.f32 0.0, %v4737
          %v4739 = vpop.f32.mrf.mxu0
          %v4740 = vadd.f32 0.0, %v4739
          %4741 = vdwg.mxu0
          %v4742 = vadd.f32 %v4640, %v4723
          %v4743 = vadd.f32 %v4641, %v4725
          %v4744 = vadd.f32 %v4642, %v4728
          %v4745 = vadd.f32 %v4643, %v4730
          %v4746 = vadd.f32 %v4644, %v4733
          %v4747 = vadd.f32 %v4645, %v4735
          %v4748 = vadd.f32 %v4646, %v4738
          %v4749 = vadd.f32 %v4647, %v4740
          %s4750 = scalar_lea.vmem %s2, 128
          %v4751 = vld [vmem:[%s4750] sm:$0xf]
          %v4752 = vld [vmem:[%s4750 + $0x4] sm:$0xf]
          %v4753 = vld [vmem:[%s4750 + $0x8] sm:$0xf]
          %v4754 = vld [vmem:[%s4750 + $0xc] sm:$0xf]
          %v4755 = vld [vmem:[%s4750 + $0x10] sm:$0xf]
          %v4756 = vld [vmem:[%s4750 + $0x14] sm:$0xf]
          %v4757 = vld [vmem:[%s4750 + $0x18] sm:$0xf]
          %v4758 = vld [vmem:[%s4750 + $0x1c] sm:$0xf]
          %v4767 = vunpack.c.l.b16 %v4319
          %v4768 = vunpack.c.l.b16 %v4320
          %v4769 = vunpack.c.l.b16 %v4321
          %v4770 = vunpack.c.l.b16 %v4322
          %v4771 = vunpack.c.l.b16 %v4323
          %v4772 = vunpack.c.l.b16 %v4324
          %v4773 = vunpack.c.l.b16 %v4325
          %v4774 = vunpack.c.l.b16 %v4326
          %v4775 = vpack.c.b16 %v4768, %v4767
          %v4776 = vpack.c.b16 %v4770, %v4769
          %v4777 = vpack.c.b16 %v4772, %v4771
          %v4778 = vpack.c.b16 %v4774, %v4773
          %v4787 = vunpack.c.l.b16 %v4751
          %v4788 = vunpack.c.l.b16 %v4752
          %v4789 = vunpack.c.l.b16 %v4753
          %v4790 = vunpack.c.l.b16 %v4754
          %v4791 = vunpack.c.l.b16 %v4755
          %v4792 = vunpack.c.l.b16 %v4756
          %v4793 = vunpack.c.l.b16 %v4757
          %v4794 = vunpack.c.l.b16 %v4758
          %v4795 = vpack.c.b16 %v4788, %v4787
          %v4796 = vpack.c.b16 %v4790, %v4789
          %v4797 = vpack.c.b16 %v4792, %v4791
          %v4798 = vpack.c.b16 %v4794, %v4793
          %v4804 = vsel %vm3989, %v4775, 0
          %v4807 = vsel %vm3989, %v4776, 0
          %v4810 = vsel %vm3989, %v4777, 0
          %v4813 = vsel %vm3989, %v4778, 0
          %4815 = vmatpush.bf16.msra.mxu0 0
          %4816 = vmatpush.bf16.msra.mxu0 0
          %4817 = vmatpush.bf16.msra.mxu0 0
          %4818 = vmatpush.bf16.msra.mxu0 0
          %4819 = vmatpush.bf16.msra.mxu0 %v4798
          %4820 = vmatpush.bf16.msra.mxu0 %v4797
          %4821 = vmatpush.bf16.msra.mxu0 %v4796
          %4822 = vmatpush.bf16.msra.mxu0 %v4795
          %4823 = vmatmul.bf16.gmra.mxu0 %v4804
          %v4824 = vpop.f32.mrf.mxu0
          %v4825 = vadd.f32 0.0, %v4824
          %v4826 = vpop.f32.mrf.mxu0
          %v4827 = vadd.f32 0.0, %v4826
          %4828 = vmatmul.bf16.gmra.mxu0 %v4807
          %v4829 = vpop.f32.mrf.mxu0
          %v4830 = vadd.f32 0.0, %v4829
          %v4831 = vpop.f32.mrf.mxu0
          %v4832 = vadd.f32 0.0, %v4831
          %4833 = vmatmul.bf16.gmra.mxu0 %v4810
          %v4834 = vpop.f32.mrf.mxu0
          %v4835 = vadd.f32 0.0, %v4834
          %v4836 = vpop.f32.mrf.mxu0
          %v4837 = vadd.f32 0.0, %v4836
          %4838 = vmatmul.bf16.gmra.mxu0 %v4813
          %v4839 = vpop.f32.mrf.mxu0
          %v4840 = vadd.f32 0.0, %v4839
          %v4841 = vpop.f32.mrf.mxu0
          %v4842 = vadd.f32 0.0, %v4841
          %4843 = vdwg.mxu0
          %v4844 = vadd.f32 %v4742, %v4825
          %v4845 = vadd.f32 %v4743, %v4827
          %v4846 = vadd.f32 %v4744, %v4830
          %v4847 = vadd.f32 %v4745, %v4832
          %v4848 = vadd.f32 %v4746, %v4835
          %v4849 = vadd.f32 %v4747, %v4837
          %v4850 = vadd.f32 %v4748, %v4840
          %v4851 = vadd.f32 %v4749, %v4842
          %s4852 = scalar_lea.vmem %s2, 160
          %v4853 = vld [vmem:[%s4852] sm:$0xf]
          %v4854 = vld [vmem:[%s4852 + $0x4] sm:$0xf]
          %v4855 = vld [vmem:[%s4852 + $0x8] sm:$0xf]
          %v4856 = vld [vmem:[%s4852 + $0xc] sm:$0xf]
          %v4857 = vld [vmem:[%s4852 + $0x10] sm:$0xf]
          %v4858 = vld [vmem:[%s4852 + $0x14] sm:$0xf]
          %v4859 = vld [vmem:[%s4852 + $0x18] sm:$0xf]
          %v4860 = vld [vmem:[%s4852 + $0x1c] sm:$0xf]
          %v4869 = vunpack.c.l.b16 %v4327
          %v4870 = vunpack.c.l.b16 %v4328
          %v4871 = vunpack.c.l.b16 %v4329
          %v4872 = vunpack.c.l.b16 %v4330
          %v4873 = vunpack.c.l.b16 %v4331
          %v4874 = vunpack.c.l.b16 %v4332
          %v4875 = vunpack.c.l.b16 %v4333
          %v4876 = vunpack.c.l.b16 %v4334
          %v4877 = vpack.c.b16 %v4870, %v4869
          %v4878 = vpack.c.b16 %v4872, %v4871
          %v4879 = vpack.c.b16 %v4874, %v4873
          %v4880 = vpack.c.b16 %v4876, %v4875
          %v4889 = vunpack.c.l.b16 %v4853
          %v4890 = vunpack.c.l.b16 %v4854
          %v4891 = vunpack.c.l.b16 %v4855
          %v4892 = vunpack.c.l.b16 %v4856
          %v4893 = vunpack.c.l.b16 %v4857
          %v4894 = vunpack.c.l.b16 %v4858
          %v4895 = vunpack.c.l.b16 %v4859
          %v4896 = vunpack.c.l.b16 %v4860
          %v4897 = vpack.c.b16 %v4890, %v4889
          %v4898 = vpack.c.b16 %v4892, %v4891
          %v4899 = vpack.c.b16 %v4894, %v4893
          %v4900 = vpack.c.b16 %v4896, %v4895
          %v4906 = vsel %vm3989, %v4877, 0
          %v4909 = vsel %vm3989, %v4878, 0
          %v4912 = vsel %vm3989, %v4879, 0
          %v4915 = vsel %vm3989, %v4880, 0
          %4917 = vmatpush.bf16.msra.mxu0 0
          %4918 = vmatpush.bf16.msra.mxu0 0
          %4919 = vmatpush.bf16.msra.mxu0 0
          %4920 = vmatpush.bf16.msra.mxu0 0
          %4921 = vmatpush.bf16.msra.mxu0 %v4900
          %4922 = vmatpush.bf16.msra.mxu0 %v4899
          %4923 = vmatpush.bf16.msra.mxu0 %v4898
          %4924 = vmatpush.bf16.msra.mxu0 %v4897
          %4925 = vmatmul.bf16.gmra.mxu0 %v4906
          %v4926 = vpop.f32.mrf.mxu0
          %v4927 = vadd.f32 0.0, %v4926
          %v4928 = vpop.f32.mrf.mxu0
          %v4929 = vadd.f32 0.0, %v4928
          %4930 = vmatmul.bf16.gmra.mxu0 %v4909
          %v4931 = vpop.f32.mrf.mxu0
          %v4932 = vadd.f32 0.0, %v4931
          %v4933 = vpop.f32.mrf.mxu0
          %v4934 = vadd.f32 0.0, %v4933
          %4935 = vmatmul.bf16.gmra.mxu0 %v4912
          %v4936 = vpop.f32.mrf.mxu0
          %v4937 = vadd.f32 0.0, %v4936
          %v4938 = vpop.f32.mrf.mxu0
          %v4939 = vadd.f32 0.0, %v4938
          %4940 = vmatmul.bf16.gmra.mxu0 %v4915
          %v4941 = vpop.f32.mrf.mxu0
          %v4942 = vadd.f32 0.0, %v4941
          %v4943 = vpop.f32.mrf.mxu0
          %v4944 = vadd.f32 0.0, %v4943
          %4945 = vdwg.mxu0
          %v4946 = vadd.f32 %v4844, %v4927
          %v4947 = vadd.f32 %v4845, %v4929
          %v4948 = vadd.f32 %v4846, %v4932
          %v4949 = vadd.f32 %v4847, %v4934
          %v4950 = vadd.f32 %v4848, %v4937
          %v4951 = vadd.f32 %v4849, %v4939
          %v4952 = vadd.f32 %v4850, %v4942
          %v4953 = vadd.f32 %v4851, %v4944
          %s4954 = scalar_lea.vmem %s2, 192
          %v4955 = vld [vmem:[%s4954] sm:$0xf]
          %v4956 = vld [vmem:[%s4954 + $0x4] sm:$0xf]
          %v4957 = vld [vmem:[%s4954 + $0x8] sm:$0xf]
          %v4958 = vld [vmem:[%s4954 + $0xc] sm:$0xf]
          %v4959 = vld [vmem:[%s4954 + $0x10] sm:$0xf]
          %v4960 = vld [vmem:[%s4954 + $0x14] sm:$0xf]
          %v4961 = vld [vmem:[%s4954 + $0x18] sm:$0xf]
          %v4962 = vld [vmem:[%s4954 + $0x1c] sm:$0xf]
          %v4971 = vunpack.c.l.b16 %v4335
          %v4972 = vunpack.c.l.b16 %v4336
          %v4973 = vunpack.c.l.b16 %v4337
          %v4974 = vunpack.c.l.b16 %v4338
          %v4975 = vunpack.c.l.b16 %v4339
          %v4976 = vunpack.c.l.b16 %v4340
          %v4977 = vunpack.c.l.b16 %v4341
          %v4978 = vunpack.c.l.b16 %v4342
          %v4979 = vpack.c.b16 %v4972, %v4971
          %v4980 = vpack.c.b16 %v4974, %v4973
          %v4981 = vpack.c.b16 %v4976, %v4975
          %v4982 = vpack.c.b16 %v4978, %v4977
          %v4991 = vunpack.c.l.b16 %v4955
          %v4992 = vunpack.c.l.b16 %v4956
          %v4993 = vunpack.c.l.b16 %v4957
          %v4994 = vunpack.c.l.b16 %v4958
          %v4995 = vunpack.c.l.b16 %v4959
          %v4996 = vunpack.c.l.b16 %v4960
          %v4997 = vunpack.c.l.b16 %v4961
          %v4998 = vunpack.c.l.b16 %v4962
          %v4999 = vpack.c.b16 %v4992, %v4991
          %v5000 = vpack.c.b16 %v4994, %v4993
          %v5001 = vpack.c.b16 %v4996, %v4995
          %v5002 = vpack.c.b16 %v4998, %v4997
          %v5008 = vsel %vm3989, %v4979, 0
          %v5011 = vsel %vm3989, %v4980, 0
          %v5014 = vsel %vm3989, %v4981, 0
          %v5017 = vsel %vm3989, %v4982, 0
          %5019 = vmatpush.bf16.msra.mxu0 0
          %5020 = vmatpush.bf16.msra.mxu0 0
          %5021 = vmatpush.bf16.msra.mxu0 0
          %5022 = vmatpush.bf16.msra.mxu0 0
          %5023 = vmatpush.bf16.msra.mxu0 %v5002
          %5024 = vmatpush.bf16.msra.mxu0 %v5001
          %5025 = vmatpush.bf16.msra.mxu0 %v5000
          %5026 = vmatpush.bf16.msra.mxu0 %v4999
          %5027 = vmatmul.bf16.gmra.mxu0 %v5008
          %v5028 = vpop.f32.mrf.mxu0
          %v5029 = vadd.f32 0.0, %v5028
          %v5030 = vpop.f32.mrf.mxu0
          %v5031 = vadd.f32 0.0, %v5030
          %5032 = vmatmul.bf16.gmra.mxu0 %v5011
          %v5033 = vpop.f32.mrf.mxu0
          %v5034 = vadd.f32 0.0, %v5033
          %v5035 = vpop.f32.mrf.mxu0
          %v5036 = vadd.f32 0.0, %v5035
          %5037 = vmatmul.bf16.gmra.mxu0 %v5014
          %v5038 = vpop.f32.mrf.mxu0
          %v5039 = vadd.f32 0.0, %v5038
          %v5040 = vpop.f32.mrf.mxu0
          %v5041 = vadd.f32 0.0, %v5040
          %5042 = vmatmul.bf16.gmra.mxu0 %v5017
          %v5043 = vpop.f32.mrf.mxu0
          %v5044 = vadd.f32 0.0, %v5043
          %v5045 = vpop.f32.mrf.mxu0
          %v5046 = vadd.f32 0.0, %v5045
          %5047 = vdwg.mxu0
          %v5048 = vadd.f32 %v4946, %v5029
          %v5049 = vadd.f32 %v4947, %v5031
          %v5050 = vadd.f32 %v4948, %v5034
          %v5051 = vadd.f32 %v4949, %v5036
          %v5052 = vadd.f32 %v4950, %v5039
          %v5053 = vadd.f32 %v4951, %v5041
          %v5054 = vadd.f32 %v4952, %v5044
          %v5055 = vadd.f32 %v4953, %v5046
          %s5056 = scalar_lea.vmem %s2, 224
          %v5057 = vld [vmem:[%s5056] sm:$0xf]
          %v5058 = vld [vmem:[%s5056 + $0x4] sm:$0xf]
          %v5059 = vld [vmem:[%s5056 + $0x8] sm:$0xf]
          %v5060 = vld [vmem:[%s5056 + $0xc] sm:$0xf]
          %v5061 = vld [vmem:[%s5056 + $0x10] sm:$0xf]
          %v5062 = vld [vmem:[%s5056 + $0x14] sm:$0xf]
          %v5063 = vld [vmem:[%s5056 + $0x18] sm:$0xf]
          %v5064 = vld [vmem:[%s5056 + $0x1c] sm:$0xf]
          %v5073 = vunpack.c.l.b16 %v4343
          %v5074 = vunpack.c.l.b16 %v4344
          %v5075 = vunpack.c.l.b16 %v4345
          %v5076 = vunpack.c.l.b16 %v4346
          %v5077 = vunpack.c.l.b16 %v4347
          %v5078 = vunpack.c.l.b16 %v4348
          %v5079 = vunpack.c.l.b16 %v4349
          %v5080 = vunpack.c.l.b16 %v4350
          %v5081 = vpack.c.b16 %v5074, %v5073
          %v5082 = vpack.c.b16 %v5076, %v5075
          %v5083 = vpack.c.b16 %v5078, %v5077
          %v5084 = vpack.c.b16 %v5080, %v5079
          %v5093 = vunpack.c.l.b16 %v5057
          %v5094 = vunpack.c.l.b16 %v5058
          %v5095 = vunpack.c.l.b16 %v5059
          %v5096 = vunpack.c.l.b16 %v5060
          %v5097 = vunpack.c.l.b16 %v5061
          %v5098 = vunpack.c.l.b16 %v5062
          %v5099 = vunpack.c.l.b16 %v5063
          %v5100 = vunpack.c.l.b16 %v5064
          %v5101 = vpack.c.b16 %v5094, %v5093
          %v5102 = vpack.c.b16 %v5096, %v5095
          %v5103 = vpack.c.b16 %v5098, %v5097
          %v5104 = vpack.c.b16 %v5100, %v5099
          %v5110 = vsel %vm3989, %v5081, 0
          %v5113 = vsel %vm3989, %v5082, 0
          %v5116 = vsel %vm3989, %v5083, 0
          %v5119 = vsel %vm3989, %v5084, 0
          %5121 = vmatpush.bf16.msra.mxu0 0
          %5122 = vmatpush.bf16.msra.mxu0 0
          %5123 = vmatpush.bf16.msra.mxu0 0
          %5124 = vmatpush.bf16.msra.mxu0 0
          %5125 = vmatpush.bf16.msra.mxu0 %v5104
          %5126 = vmatpush.bf16.msra.mxu0 %v5103
          %5127 = vmatpush.bf16.msra.mxu0 %v5102
          %5128 = vmatpush.bf16.msra.mxu0 %v5101
          %5129 = vmatmul.bf16.gmra.mxu0 %v5110
          %v5130 = vpop.f32.mrf.mxu0
          %v5131 = vadd.f32 0.0, %v5130
          %v5132 = vpop.f32.mrf.mxu0
          %v5133 = vadd.f32 0.0, %v5132
          %5134 = vmatmul.bf16.gmra.mxu0 %v5113
          %v5135 = vpop.f32.mrf.mxu0
          %v5136 = vadd.f32 0.0, %v5135
          %v5137 = vpop.f32.mrf.mxu0
          %v5138 = vadd.f32 0.0, %v5137
          %5139 = vmatmul.bf16.gmra.mxu0 %v5116
          %v5140 = vpop.f32.mrf.mxu0
          %v5141 = vadd.f32 0.0, %v5140
          %v5142 = vpop.f32.mrf.mxu0
          %v5143 = vadd.f32 0.0, %v5142
          %5144 = vmatmul.bf16.gmra.mxu0 %v5119
          %v5145 = vpop.f32.mrf.mxu0
          %v5146 = vadd.f32 0.0, %v5145
          %v5147 = vpop.f32.mrf.mxu0
          %v5148 = vadd.f32 0.0, %v5147
          %5149 = vdwg.mxu0
          %v5150 = vadd.f32 %v5048, %v5131
          %v5151 = vadd.f32 %v5049, %v5133
          %v5152 = vadd.f32 %v5050, %v5136
          %v5153 = vadd.f32 %v5051, %v5138
          %v5154 = vadd.f32 %v5052, %v5141
          %v5155 = vadd.f32 %v5053, %v5143
          %v5156 = vadd.f32 %v5054, %v5146
          %v5157 = vadd.f32 %v5055, %v5148
          %s5158 = scalar_lea.vmem %s2, 256
          %v5159 = vld [vmem:[%s5158] sm:$0xf]
          %v5160 = vld [vmem:[%s5158 + $0x4] sm:$0xf]
          %v5161 = vld [vmem:[%s5158 + $0x8] sm:$0xf]
          %v5162 = vld [vmem:[%s5158 + $0xc] sm:$0xf]
          %v5163 = vld [vmem:[%s5158 + $0x10] sm:$0xf]
          %v5164 = vld [vmem:[%s5158 + $0x14] sm:$0xf]
          %v5165 = vld [vmem:[%s5158 + $0x18] sm:$0xf]
          %v5166 = vld [vmem:[%s5158 + $0x1c] sm:$0xf]
          %v5175 = vunpack.c.l.b16 %v4351
          %v5176 = vunpack.c.l.b16 %v4352
          %v5177 = vunpack.c.l.b16 %v4353
          %v5178 = vunpack.c.l.b16 %v4354
          %v5179 = vunpack.c.l.b16 %v4355
          %v5180 = vunpack.c.l.b16 %v4356
          %v5181 = vunpack.c.l.b16 %v4357
          %v5182 = vunpack.c.l.b16 %v4358
          %v5183 = vpack.c.b16 %v5176, %v5175
          %v5184 = vpack.c.b16 %v5178, %v5177
          %v5185 = vpack.c.b16 %v5180, %v5179
          %v5186 = vpack.c.b16 %v5182, %v5181
          %v5195 = vunpack.c.l.b16 %v5159
          %v5196 = vunpack.c.l.b16 %v5160
          %v5197 = vunpack.c.l.b16 %v5161
          %v5198 = vunpack.c.l.b16 %v5162
          %v5199 = vunpack.c.l.b16 %v5163
          %v5200 = vunpack.c.l.b16 %v5164
          %v5201 = vunpack.c.l.b16 %v5165
          %v5202 = vunpack.c.l.b16 %v5166
          %v5203 = vpack.c.b16 %v5196, %v5195
          %v5204 = vpack.c.b16 %v5198, %v5197
          %v5205 = vpack.c.b16 %v5200, %v5199
          %v5206 = vpack.c.b16 %v5202, %v5201
          %v5212 = vsel %vm3989, %v5183, 0
          %v5215 = vsel %vm3989, %v5184, 0
          %v5218 = vsel %vm3989, %v5185, 0
          %v5221 = vsel %vm3989, %v5186, 0
          %5223 = vmatpush.bf16.msra.mxu0 0
          %5224 = vmatpush.bf16.msra.mxu0 0
          %5225 = vmatpush.bf16.msra.mxu0 0
          %5226 = vmatpush.bf16.msra.mxu0 0
          %5227 = vmatpush.bf16.msra.mxu0 %v5206
          %5228 = vmatpush.bf16.msra.mxu0 %v5205
          %5229 = vmatpush.bf16.msra.mxu0 %v5204
          %5230 = vmatpush.bf16.msra.mxu0 %v5203
          %5231 = vmatmul.bf16.gmra.mxu0 %v5212
          %v5232 = vpop.f32.mrf.mxu0
          %v5233 = vadd.f32 0.0, %v5232
          %v5234 = vpop.f32.mrf.mxu0
          %v5235 = vadd.f32 0.0, %v5234
          %5236 = vmatmul.bf16.gmra.mxu0 %v5215
          %v5237 = vpop.f32.mrf.mxu0
          %v5238 = vadd.f32 0.0, %v5237
          %v5239 = vpop.f32.mrf.mxu0
          %v5240 = vadd.f32 0.0, %v5239
          %5241 = vmatmul.bf16.gmra.mxu0 %v5218
          %v5242 = vpop.f32.mrf.mxu0
          %v5243 = vadd.f32 0.0, %v5242
          %v5244 = vpop.f32.mrf.mxu0
          %v5245 = vadd.f32 0.0, %v5244
          %5246 = vmatmul.bf16.gmra.mxu0 %v5221
          %v5247 = vpop.f32.mrf.mxu0
          %v5248 = vadd.f32 0.0, %v5247
          %v5249 = vpop.f32.mrf.mxu0
          %v5250 = vadd.f32 0.0, %v5249
          %5251 = vdwg.mxu0
          %v5252 = vadd.f32 %v5150, %v5233
          %v5253 = vadd.f32 %v5151, %v5235
          %v5254 = vadd.f32 %v5152, %v5238
          %v5255 = vadd.f32 %v5153, %v5240
          %v5256 = vadd.f32 %v5154, %v5243
          %v5257 = vadd.f32 %v5155, %v5245
          %v5258 = vadd.f32 %v5156, %v5248
          %v5259 = vadd.f32 %v5157, %v5250
          %s5260 = smul.u32 %s26, 64
          %s5261 = scalar_lea.vmem [#allocation5], %s5260
          %vm5262 = vcmask 261120
          %5263 = vst.msk [vmem:[%s5261] sm:$0xff] %vm5262, %v5252
          %5264 = vst.msk [vmem:[%s5261 + $0x8] sm:$0xff] %vm5262, %v5253
          %5265 = vst.msk [vmem:[%s5261 + $0x10] sm:$0xff] %vm5262, %v5254
          %5266 = vst.msk [vmem:[%s5261 + $0x18] sm:$0xff] %vm5262, %v5255
          %5267 = vst.msk [vmem:[%s5261 + $0x20] sm:$0xff] %vm5262, %v5256
          %5268 = vst.msk [vmem:[%s5261 + $0x28] sm:$0xff] %vm5262, %v5257
          %5269 = vst.msk [vmem:[%s5261 + $0x30] sm:$0xff] %vm5262, %v5258
          %5270 = vst.msk [vmem:[%s5261 + $0x38] sm:$0xff] %vm5262, %v5259
          %v5271 = vld [vmem:[#allocation4] sm:$0x1]
          %v5272 = vsel %vm5262, %v5252, 0.0
          %v5273 = vsel %vm5262, %v5253, 0.0
          %v5274 = vadd.f32 %v5272, %v5273
          %v5275 = vsel %vm5262, %v5254, 0.0
          %v5276 = vadd.f32 %v5274, %v5275
          %v5277 = vsel %vm5262, %v5255, 0.0
          %v5278 = vadd.f32 %v5276, %v5277
          %v5279 = vsel %vm5262, %v5256, 0.0
          %v5280 = vadd.f32 %v5278, %v5279
          %v5281 = vsel %vm5262, %v5257, 0.0
          %v5282 = vadd.f32 %v5280, %v5281
          %v5283 = vsel %vm5262, %v5258, 0.0
          %v5284 = vadd.f32 %v5282, %v5283
          %v5285 = vsel %vm5262, %v5259, 0.0
          %v5286 = vadd.f32 %v5284, %v5285
          %v5287 = vrot.slane %v5286, 4
          %v5288 = vadd.f32 %v5286, %v5287
          %v5289 = vrot.slane %v5288, 2
          %v5290 = vadd.f32 %v5288, %v5289
          %v5291 = vrot.slane %v5290, 1
          %v5292 = vadd.f32 %v5290, %v5291
          %v5293 = vadd.f32 %v5271, %v5292
          %vm5294 = vcmask 253952
          %5295 = vst.msk [vmem:[#allocation4] sm:$0x1] %vm5294, %v5293
          %v5296 = vld [vmem:[#allocation4 + $0x1] sm:$0x1]
          %v5297 = vmul.f32 %v5252, %v5252
          %v5298 = vmul.f32 %v5253, %v5253
          %v5299 = vmul.f32 %v5254, %v5254
          %v5300 = vmul.f32 %v5255, %v5255
          %v5301 = vmul.f32 %v5256, %v5256
          %v5302 = vmul.f32 %v5257, %v5257
          %v5303 = vmul.f32 %v5258, %v5258
          %v5304 = vmul.f32 %v5259, %v5259
          %v5305 = vsel %vm5262, %v5297, 0.0
          %v5306 = vsel %vm5262, %v5298, 0.0
          %v5307 = vadd.f32 %v5305, %v5306
          %v5308 = vsel %vm5262, %v5299, 0.0
          %v5309 = vadd.f32 %v5307, %v5308
          %v5310 = vsel %vm5262, %v5300, 0.0
          %v5311 = vadd.f32 %v5309, %v5310
          %v5312 = vsel %vm5262, %v5301, 0.0
          %v5313 = vadd.f32 %v5311, %v5312
          %v5314 = vsel %vm5262, %v5302, 0.0
          %v5315 = vadd.f32 %v5313, %v5314
          %v5316 = vsel %vm5262, %v5303, 0.0
          %v5317 = vadd.f32 %v5315, %v5316
          %v5318 = vsel %vm5262, %v5304, 0.0
          %v5319 = vadd.f32 %v5317, %v5318
          %v5320 = vrot.slane %v5319, 4
          %v5321 = vadd.f32 %v5319, %v5320
          %v5322 = vrot.slane %v5321, 2
          %v5323 = vadd.f32 %v5321, %v5322
          %v5324 = vrot.slane %v5323, 1
          %v5325 = vadd.f32 %v5323, %v5324
          %v5326 = vadd.f32 %v5296, %v5325
          %5327 = vst.msk [vmem:[#allocation4 + $0x1] sm:$0x1] %vm5294, %v5326
        $region68: #{classifier_forward.1} parent=55 // pred_fallthru
          _
        %p5328 = scmp.eq.s32.totalorder %s25, 2
        // Predicated region
        $region69: #{classifier_forward.1} parent=55 // pred_check
          %p5329 = pneg %p5328
        $region70: #{classifier_forward.1} parent=55 // pred_check_branch
          %5331 = sbr.rel (%p5329) target = $region72
        $region71: #{classifier_forward.1} parent=55 // pred_region
          %v5332 = vld [vmem:[#allocation4] sm:$0x1]
          %v5333 = vmul.f32 %v5332, 0.0078125
          %v5334 = vld [vmem:[#allocation4 + $0x1] sm:$0x1]
          %v5335 = vmul.f32 %v5334, 0.0078125
          %v5336 = vmul.f32 %v5333, %v5333
          %v5337 = vsub.f32 %v5335, %v5336
          %v5338 = vadd.f32 %v5337, 1e-05
          %v5339 = vrsqrt.pop %v5338
          %v5340 = vmul.f32 %v5339, %v5338
          %v5341 = vmul.f32 %v5340, %v5339
          %v5342 = vmul.f32 0.5, %v5341
          %v5343 = vsub.f32 1.5, %v5342
          %v5344 = vmul.f32 %v5339, %v5343
          %vm5345 = vweird.f32 %v5338
          %vm5346 = vweird.f32 %v5339
          %vm5347 = vmor %vm5345, %vm5346
          %v5348 = vsel %vm5347, %v5339, %v5344
          %v5349 = vld [vmem:[%s5] sm:$0x1]
          %v5350 = vmul.f32 %v5348, %v5349
          %s5351 = smul.u32 %s26, 64
          %s5352 = scalar_lea.vmem [#allocation5], %s5351
          %v5353 = vld [vmem:[%s5352] sm:$0xff]
          %v5354 = vld [vmem:[%s5352 + $0x8] sm:$0xff]
          %v5355 = vld [vmem:[%s5352 + $0x10] sm:$0xff]
          %v5356 = vld [vmem:[%s5352 + $0x18] sm:$0xff]
          %v5357 = vld [vmem:[%s5352 + $0x20] sm:$0xff]
          %v5358 = vld [vmem:[%s5352 + $0x28] sm:$0xff]
          %v5359 = vld [vmem:[%s5352 + $0x30] sm:$0xff]
          %v5360 = vld [vmem:[%s5352 + $0x38] sm:$0xff]
          %v5361 = vperm.slane %v5333, 0
          %v5362 = vsub.f32 %v5353, %v5361
          %v5363 = vsub.f32 %v5354, %v5361
          %v5364 = vsub.f32 %v5355, %v5361
          %v5365 = vsub.f32 %v5356, %v5361
          %v5366 = vsub.f32 %v5357, %v5361
          %v5367 = vsub.f32 %v5358, %v5361
          %v5368 = vsub.f32 %v5359, %v5361
          %v5369 = vsub.f32 %v5360, %v5361
          %v5370 = vperm.slane %v5350, 0
          %v5371 = vmul.f32 %v5362, %v5370
          %v5372 = vmul.f32 %v5363, %v5370
          %v5373 = vmul.f32 %v5364, %v5370
          %v5374 = vmul.f32 %v5365, %v5370
          %v5375 = vmul.f32 %v5366, %v5370
          %v5376 = vmul.f32 %v5367, %v5370
          %v5377 = vmul.f32 %v5368, %v5370
          %v5378 = vmul.f32 %v5369, %v5370
          %v5379 = vld [vmem:[%s6] sm:$0x1]
          %v5381 = vperm.slane %v5379, 0
          %v5383 = vadd.f32 %v5371, %v5381
          %v5384 = vadd.f32 %v5372, %v5381
          %v5385 = vadd.f32 %v5373, %v5381
          %v5386 = vadd.f32 %v5374, %v5381
          %v5387 = vadd.f32 %v5375, %v5381
          %v5388 = vadd.f32 %v5376, %v5381
          %v5389 = vadd.f32 %v5377, %v5381
          %v5390 = vadd.f32 %v5378, %v5381
          %vm5391 = vcmp.ge.f32.partialorder %v5383, 0.0
          %vm5392 = vcmp.ge.f32.partialorder %v5384, 0.0
          %vm5393 = vcmp.ge.f32.partialorder %v5385, 0.0
          %vm5394 = vcmp.ge.f32.partialorder %v5386, 0.0
          %vm5395 = vcmp.ge.f32.partialorder %v5387, 0.0
          %vm5396 = vcmp.ge.f32.partialorder %v5388, 0.0
          %vm5397 = vcmp.ge.f32.partialorder %v5389, 0.0
          %vm5398 = vcmp.ge.f32.partialorder %v5390, 0.0
          %v5399 = vmul.f32 %v5383, 0.2
          %v5400 = vmul.f32 %v5384, 0.2
          %v5401 = vmul.f32 %v5385, 0.2
          %v5402 = vmul.f32 %v5386, 0.2
          %v5403 = vmul.f32 %v5387, 0.2
          %v5404 = vmul.f32 %v5388, 0.2
          %v5405 = vmul.f32 %v5389, 0.2
          %v5406 = vmul.f32 %v5390, 0.2
          %v5407 = vsel %vm5391, %v5383, %v5399
          %v5408 = vsel %vm5392, %v5384, %v5400
          %v5409 = vsel %vm5393, %v5385, %v5401
          %v5410 = vsel %vm5394, %v5386, %v5402
          %v5411 = vsel %vm5395, %v5387, %v5403
          %v5412 = vsel %vm5396, %v5388, %v5404
          %v5413 = vsel %vm5397, %v5389, %v5405
          %v5414 = vsel %vm5398, %v5390, %v5406
          %vm5415 = vcmask 261120
          %5416 = vst.msk [vmem:[%s5352] sm:$0xff] %vm5415, %v5407
          %5417 = vst.msk [vmem:[%s5352 + $0x8] sm:$0xff] %vm5415, %v5408
          %5418 = vst.msk [vmem:[%s5352 + $0x10] sm:$0xff] %vm5415, %v5409
          %5419 = vst.msk [vmem:[%s5352 + $0x18] sm:$0xff] %vm5415, %v5410
          %5420 = vst.msk [vmem:[%s5352 + $0x20] sm:$0xff] %vm5415, %v5411
          %5421 = vst.msk [vmem:[%s5352 + $0x28] sm:$0xff] %vm5415, %v5412
          %5422 = vst.msk [vmem:[%s5352 + $0x30] sm:$0xff] %vm5415, %v5413
          %5423 = vst.msk [vmem:[%s5352 + $0x38] sm:$0xff] %vm5415, %v5414
        $region72: #{classifier_forward.1} parent=55 // pred_fallthru
          _
        // Predicated region
        $region73: #{classifier_forward.1} parent=55 // pred_check
          %p5424 = pneg %p244
        $region74: #{classifier_forward.1} parent=55 // pred_check_branch
          %5426 = sbr.rel (%p5424) target = $region76
        $region75: #{classifier_forward.1} parent=55 // pred_region
          %5428 = vsyncadd [#allocation6], 0
          %s5429 = sshll.u32 [#allocation5], 4
          %s5430 = int_to_ptr.vmem [resolvable:$true] %s5429
          %s5431 = sshll.u32 %s9, 4
          %s5432 = int_to_ptr.hbm [resolvable:$true] %s5431
          %5437 = dma.vmem_to_hbm [thread:$0]  %s5430, 2048, %s5432, [#allocation6], 128, 128, 8
        $region76: #{classifier_forward.1} parent=55 // pred_fallthru
          _
        // Predicated region
        $region77: #{classifier_forward.1} parent=55 // pred_check
          %p5438 = pneg %p244
        $region78: #{classifier_forward.1} parent=55 // pred_check_branch
          %5440 = sbr.rel (%p5438) target = $region80
        $region79: #{classifier_forward.1} parent=55 // pred_region
          %5442 = dma.done [#allocation6], 2048
        $region80: #{classifier_forward.1} parent=55 // pred_fallthru
          _
      $region56: #{classifier_forward.1} parent=5 // pred_fallthru
        _
      %p5443 = scmp.le.s32.totalorder 2, %s16
      // Predicated region
      $region81: #{classifier_forward.1} parent=5 // pred_check
        %p5444 = pneg %p5443
      $region82: #{classifier_forward.1} parent=5 // pred_check_branch
        %5446 = sbr.rel (%p5444) target = $region84
      $region83: #{classifier_forward.1} parent=5 // pred_region
        %s5447 = ssub.s32 %s16, 2
      $region84: #{classifier_forward.1} parent=5 // pred_fallthru
        _
    $region6: #{classifier_forward.1} parent=1 // loop_footer
      %s20 = sadd.s32 1, %s16
    $region7: #{classifier_forward.1} parent=1 // loop_footer_branch
      %15 = sbr.rel target = $region3
    $region8: #{classifier_forward.1} parent=1 // loop_exit
      _
    %5448 = vsyncpa [#allocation6], 1
    %s5449 = scalar_lea.sflag [#allocation6], 1
    %5450 = vsyncpa %s5449, 1

</llo_original>
